<compile_context>
chip_gen: v7x
topology: tpu7x:2x2x1
jax: 0.10.0
libtpu: 0.0.40
codegen_flags: <defaults>
</compile_context>

<pallas_src>
import functools
import math

import jax
import jax.numpy as jnp
from jax import lax
from jax.experimental import pallas as pl
from jax.experimental.pallas import tpu as pltpu


# ------------------------------ fused kernel -------------------------------- #

def _fused_transformer_kernel(
    src_ref,    # (1, S, In)   one batch element per grid step
    pe_ref,     # (1, 1, D)    positional-encoding row for this batch element
    emb_w_ref,  # (In, D)
    emb_b_ref,  # (1, D)
    dec_w_ref,  # (D, C)
    dec_b_ref,  # (1, C)
    inw_ref,    # (L, D, 3D)   fused QKV projection weights
    inb_ref,    # (L, 1, 3D)
    outw_ref,   # (L, D, D)
    outb_ref,   # (L, 1, D)
    ln1g_ref,   # (L, 1, D)
    ln1b_ref,   # (L, 1, D)
    ff1w_ref,   # (L, D, F)
    ff1b_ref,   # (L, 1, F)
    ff2w_ref,   # (L, F, D)
    ff2b_ref,   # (L, 1, D)
    ln2g_ref,   # (L, 1, D)
    ln2b_ref,   # (L, 1, D)
    out_ref,    # (1, 1, C)
    *,
    nhead: int,
    eps: float,
):
    S = src_ref.shape[1]
    D = emb_w_ref.shape[1]
    L = inw_ref.shape[0]
    Dh = D // nhead
    scale = 1.0 / math.sqrt(Dh)

    def layer_norm(h, g, b):
        mu = jnp.mean(h, axis=-1, keepdims=True)
        var = jnp.mean((h - mu) ** 2, axis=-1, keepdims=True)
        return (h - mu) * lax.rsqrt(var + eps) * g + b

    # ---- input embedding + positional encoding (pe indexed by batch dim) ----
    x = jnp.dot(src_ref[0], emb_w_ref[...],
                preferred_element_type=jnp.float32) + emb_b_ref[...]       # (S, D)
    x = x + pe_ref[0]                                                      # (1, D) bcast

    # contract the last dim of q with the last dim of k (no explicit k.T)
    qk_dims = (((1,), (1,)), ((), ()))

    for l in range(L):                       # unrolled at trace time (L is static)
        # ---------------- self-attention ----------------
        qkv = jnp.dot(x, inw_ref[l],
                      preferred_element_type=jnp.float32) + inb_ref[l]     # (S, 3D)
        w_o = outw_ref[l]                                                  # (D, D)
        attn = jnp.zeros((S, D), jnp.float32)
        for h in range(nhead):
            qh = qkv[:, h * Dh:(h + 1) * Dh]                               # (S, Dh)
            kh = qkv[:, D + h * Dh:D + (h + 1) * Dh]
            vh = qkv[:, 2 * D + h * Dh:2 * D + (h + 1) * Dh]
            s = lax.dot_general(qh, kh, qk_dims,
                                preferred_element_type=jnp.float32) * scale  # (S, S)
            m = jnp.max(s, axis=-1, keepdims=True)
            p = jnp.exp(s - m)
            denom = jnp.sum(p, axis=-1, keepdims=True)
            p = p * pl.reciprocal(denom, approx=True)                      # EUP slot
            oh = jnp.dot(p, vh, preferred_element_type=jnp.float32)        # (S, Dh)
            # fold each head directly into the output projection:
            #   attn_out @ W_o == sum_h o_h @ W_o[h*Dh:(h+1)*Dh, :]
            attn = attn + jnp.dot(oh, w_o[h * Dh:(h + 1) * Dh, :],
                                  preferred_element_type=jnp.float32)
        attn = attn + outb_ref[l]

        # ---- residual + LayerNorm 1 (post-norm, fused epilogue) ----
        x = layer_norm(x + attn, ln1g_ref[l], ln1b_ref[l])

        # ---------------- feed-forward (relu) ----------------
        ff = jnp.dot(x, ff1w_ref[l],
                     preferred_element_type=jnp.float32) + ff1b_ref[l]     # (S, F)
        ff = jnp.maximum(ff, 0.0)
        ff = jnp.dot(ff, ff2w_ref[l],
                     preferred_element_type=jnp.float32) + ff2b_ref[l]     # (S, D)

        # ---- residual + LayerNorm 2 (fused epilogue) ----
        x = layer_norm(x + ff, ln2g_ref[l], ln2b_ref[l])

    # ---------------- decoder on the last token ----------------
    last = x[S - 1:S, :]                                                   # (1, D)
    out_ref[0] = jnp.dot(last, dec_w_ref[...],
                         preferred_element_type=jnp.float32) + dec_b_ref[...]


# ------------------------------ wrapper ------------------------------------- #

def transformer_forward(src, params, nhead):
    B, S, In = src.shape
    D = params["emb_w"].shape[1]
    C = params["dec_w"].shape[1]
    L = params["inw"].shape[0]
    F = params["ff1w"].shape[2]

    def const(shape):
        n = len(shape)
        return pl.BlockSpec(shape, lambda b, n=n: (0,) * n)   # VMEM-resident weights

    in_specs = [
        pl.BlockSpec((1, S, In), lambda b: (b, 0, 0)),        # src (one batch elem)
        pl.BlockSpec((1, 1, D), lambda b: (b, 0, 0)),         # pe[:B]
        const((In, D)), const((1, D)),                        # embedding
        const((D, C)), const((1, C)),                         # decoder
        const((L, D, 3 * D)), const((L, 1, 3 * D)),           # in_proj (QKV)
        const((L, D, D)), const((L, 1, D)),                   # out_proj
        const((L, 1, D)), const((L, 1, D)),                   # ln1
        const((L, D, F)), const((L, 1, F)),                   # ff1
        const((L, F, D)), const((L, 1, D)),                   # ff2
        const((L, 1, D)), const((L, 1, D)),                   # ln2
    ]

    out = pl.pallas_call(
        functools.partial(_fused_transformer_kernel, nhead=nhead, eps=1e-5),
        out_shape=jax.ShapeDtypeStruct((B, 1, C), jnp.float32),
        grid=(B,),
        in_specs=in_specs,
        out_specs=pl.BlockSpec((1, 1, C), lambda b: (b, 0, 0)),
        compiler_params=pltpu.CompilerParams(
            dimension_semantics=("parallel",)),   # v7x: batch across both TCs
    )(
        src, params["pe"][:B],
        params["emb_w"], params["emb_b"],
        params["dec_w"], params["dec_b"],
        params["inw"], params["inb"],
        params["outw"], params["outb"],
        params["ln1g"], params["ln1b"],
        params["ff1w"], params["ff1b"],
        params["ff2w"], params["ff2b"],
        params["ln2g"], params["ln2b"],
    )
    return out.reshape(B, C)


# ------------------------------ params -------------------------------------- #

def make_positional_encoding(d_model, max_len=64):
    # Mirrors PositionalEncoding.__init__ (shape (max_len, 1, d_model)).
    position = jnp.arange(max_len, dtype=jnp.float32)[:, None]
    div_term = jnp.exp(jnp.arange(0, d_model, 2, dtype=jnp.float32)
                       * (-math.log(10000.0) / d_model))
    pe = jnp.zeros((max_len, d_model), dtype=jnp.float32)
    pe = pe.at[:, 0::2].set(jnp.sin(position * div_term))
    pe = pe.at[:, 1::2].set(jnp.cos(position * div_term))
    return pe[:, None, :]          # (max_len, 1, d_model)


def init_params(key, input_dim, d_model, nhead, num_layers, num_classes):
    d_ff = 4 * d_model
    keys = iter(jax.random.split(key, 4 + 12 * num_layers))

    def w(shape, fan_in):
        return jax.random.normal(next(keys), shape, jnp.float32) / math.sqrt(fan_in)

    def b(shape):
        return 0.05 * jax.random.normal(next(keys), shape, jnp.float32)

    inw, inb, outw, outb = [], [], [], []
    ln1g, ln1b, ff1w, ff1b = [], [], [], []
    ff2w, ff2b, ln2g, ln2b = [], [], [], []
    for _ in range(num_layers):
        inw.append(w((d_model, 3 * d_model), d_model)); inb.append(b((1, 3 * d_model)))
        outw.append(w((d_model, d_model), d_model));    outb.append(b((1, d_model)))
        ln1g.append(1.0 + b((1, d_model)));             ln1b.append(b((1, d_model)))
        ff1w.append(w((d_model, d_ff), d_model));       ff1b.append(b((1, d_ff)))
        ff2w.append(w((d_ff, d_model), d_ff));          ff2b.append(b((1, d_model)))
        ln2g.append(1.0 + b((1, d_model)));             ln2b.append(b((1, d_model)))

    return {
        "emb_w": w((input_dim, d_model), input_dim),
        "emb_b": b((1, d_model)),
        "dec_w": w((d_model, num_classes), d_model),
        "dec_b": b((1, num_classes)),
        "pe": make_positional_encoding(d_model),
        "inw": jnp.stack(inw), "inb": jnp.stack(inb),
        "outw": jnp.stack(outw), "outb": jnp.stack(outb),
        "ln1g": jnp.stack(ln1g), "ln1b": jnp.stack(ln1b),
        "ff1w": jnp.stack(ff1w), "ff1b": jnp.stack(ff1b),
        "ff2w": jnp.stack(ff2w), "ff2b": jnp.stack(ff2b),
        "ln2g": jnp.stack(ln2g), "ln2b": jnp.stack(ln2b),
    }


# --------------------------- pure-JAX reference ----------------------------- #

def reference_forward(src, params, nhead):
    B, S, _ = src.shape
    D = params["emb_w"].shape[1]
    Dh = D // nhead
    L = params["inw"].shape[0]

    def ln(h, g, b, eps=1e-5):
        mu = jnp.mean(h, axis=-1, keepdims=True)
        var = jnp.mean((h - mu) ** 2, axis=-1, keepdims=True)
        return (h - mu) / jnp.sqrt(var + eps) * g + b

    h = src @ params["emb_w"] + params["emb_b"][0]
    h = h + params["pe"][:B]
    for l in range(L):
        qkv = h @ params["inw"][l] + params["inb"][l, 0]
        q, k, v = jnp.split(qkv, 3, axis=-1)

        def heads(t):
            return t.reshape(B, S, nhead, Dh).transpose(0, 2, 1, 3)

        q, k, v = heads(q), heads(k), heads(v)
        s = jnp.einsum("bhqd,bhkd->bhqk", q, k) / math.sqrt(Dh)
        a = jax.nn.softmax(s, axis=-1)
        o = jnp.einsum("bhqk,bhkd->bhqd", a, v).transpose(0, 2, 1, 3).reshape(B, S, D)
        o = o @ params["outw"][l] + params["outb"][l, 0]
        h = ln(h + o, params["ln1g"][l, 0], params["ln1b"][l, 0])
        ff = jnp.maximum(h @ params["ff1w"][l] + params["ff1b"][l, 0], 0.0)
        ff = ff @ params["ff2w"][l] + params["ff2b"][l, 0]
        h = ln(h + ff, params["ln2g"][l, 0], params["ln2b"][l, 0])
    return h[:, -1, :] @ params["dec_w"] + params["dec_b"][0]


# ---------------------------------- main ------------------------------------ #

if __name__ == "__main__":
    input_dim, d_model, nhead, num_layers, num_classes = 16, 32, 4, 2, 5
    batch, seq = 2, 8

    root = jax.random.PRNGKey(0)
    k_params, k_input = jax.random.split(root)

    params = init_params(k_params, input_dim, d_model, nhead, num_layers, num_classes)
    src = jax.random.normal(k_input, (batch, seq, input_dim), jnp.float32)

    fwd = jax.jit(functools.partial(transformer_forward, nhead=nhead))
    out = jax.block_until_ready(fwd(src, params))

    ref = reference_forward(src, params, nhead)
    assert out.shape == (batch, num_classes), out.shape
    # Tolerance covers the EUP approximate-reciprocal softmax denominator vs the
    # exact pure-JAX reference (≲1e-3 level); genuine bugs show up as O(0.1+).
    assert jnp.allclose(out, ref, atol=1e-2, rtol=1e-2), (out, ref)

    print("KERNEL_OK")
</pallas_src>

<mosaic_0001>
module attributes {stable_mosaic.version = 11 : i64} {
  func.func @_fused_transformer_kernel(%arg0: i32, %arg1: memref<1x8x16xf32, #tpu.memory_space<vmem>>, %arg2: memref<1x1x32xf32, #tpu.memory_space<vmem>>, %arg3: memref<16x32xf32, #tpu.memory_space<vmem>>, %arg4: memref<1x32xf32, #tpu.memory_space<vmem>>, %arg5: memref<32x5xf32, #tpu.memory_space<vmem>>, %arg6: memref<1x5xf32, #tpu.memory_space<vmem>>, %arg7: memref<2x32x96xf32, #tpu.memory_space<vmem>>, %arg8: memref<2x1x96xf32, #tpu.memory_space<vmem>>, %arg9: memref<2x32x32xf32, #tpu.memory_space<vmem>>, %arg10: memref<2x1x32xf32, #tpu.memory_space<vmem>>, %arg11: memref<2x1x32xf32, #tpu.memory_space<vmem>>, %arg12: memref<2x1x32xf32, #tpu.memory_space<vmem>>, %arg13: memref<2x32x128xf32, #tpu.memory_space<vmem>>, %arg14: memref<2x1x128xf32, #tpu.memory_space<vmem>>, %arg15: memref<2x128x32xf32, #tpu.memory_space<vmem>>, %arg16: memref<2x1x32xf32, #tpu.memory_space<vmem>>, %arg17: memref<2x1x32xf32, #tpu.memory_space<vmem>>, %arg18: memref<2x1x32xf32, #tpu.memory_space<vmem>>, %arg19: memref<1x1x5xf32, #tpu.memory_space<vmem>>) attributes {dimension_semantics = [#tpu.dimension_semantics<parallel>], iteration_bounds = array<i64: 2>, scalar_prefetch = 0 : i64, scratch_operands = 0 : i64, tpu.core_type = #tpu.core_type<tc>, window_params = [{transform_indices = @transform_0, window_bounds = array<i64: 1, 8, 16>}, {transform_indices = @transform_1, window_bounds = array<i64: 1, 1, 32>}, {pipeline_mode = #tpu.pipeline_mode<synchronous>, transform_indices = @transform_2, window_bounds = array<i64: 16, 32>}, {pipeline_mode = #tpu.pipeline_mode<synchronous>, transform_indices = @transform_3, window_bounds = array<i64: 1, 32>}, {pipeline_mode = #tpu.pipeline_mode<synchronous>, transform_indices = @transform_4, window_bounds = array<i64: 32, 5>}, {pipeline_mode = #tpu.pipeline_mode<synchronous>, transform_indices = @transform_5, window_bounds = array<i64: 1, 5>}, {pipeline_mode = #tpu.pipeline_mode<synchronous>, transform_indices = @transform_6, window_bounds = array<i64: 2, 32, 96>}, {pipeline_mode = #tpu.pipeline_mode<synchronous>, transform_indices = @transform_7, window_bounds = array<i64: 2, 1, 96>}, {pipeline_mode = #tpu.pipeline_mode<synchronous>, transform_indices = @transform_8, window_bounds = array<i64: 2, 32, 32>}, {pipeline_mode = #tpu.pipeline_mode<synchronous>, transform_indices = @transform_9, window_bounds = array<i64: 2, 1, 32>}, {pipeline_mode = #tpu.pipeline_mode<synchronous>, transform_indices = @transform_10, window_bounds = array<i64: 2, 1, 32>}, {pipeline_mode = #tpu.pipeline_mode<synchronous>, transform_indices = @transform_11, window_bounds = array<i64: 2, 1, 32>}, {pipeline_mode = #tpu.pipeline_mode<synchronous>, transform_indices = @transform_12, window_bounds = array<i64: 2, 32, 128>}, {pipeline_mode = #tpu.pipeline_mode<synchronous>, transform_indices = @transform_13, window_bounds = array<i64: 2, 1, 128>}, {pipeline_mode = #tpu.pipeline_mode<synchronous>, transform_indices = @transform_14, window_bounds = array<i64: 2, 128, 32>}, {pipeline_mode = #tpu.pipeline_mode<synchronous>, transform_indices = @transform_15, window_bounds = array<i64: 2, 1, 32>}, {pipeline_mode = #tpu.pipeline_mode<synchronous>, transform_indices = @transform_16, window_bounds = array<i64: 2, 1, 32>}, {pipeline_mode = #tpu.pipeline_mode<synchronous>, transform_indices = @transform_17, window_bounds = array<i64: 2, 1, 32>}, {transform_indices = @transform_18, window_bounds = array<i64: 1, 1, 5>}]} {
    %c0 = arith.constant 0 : index
    %c0_0 = arith.constant 0 : index
    %c0_1 = arith.constant 0 : index
    %0 = vector.load %arg1[%c0, %c0_0, %c0_1] : memref<1x8x16xf32, #tpu.memory_space<vmem>>, vector<1x8x16xf32>
    %1 = vector.shape_cast %0 : vector<1x8x16xf32> to vector<8x16xf32>
    %c0_2 = arith.constant 0 : index
    %c0_3 = arith.constant 0 : index
    %2 = vector.load %arg3[%c0_2, %c0_3] : memref<16x32xf32, #tpu.memory_space<vmem>>, vector<16x32xf32>
    %cst = arith.constant dense<0.000000e+00> : vector<8x32xf32>
    %3 = tpu.matmul %1, %2, %cst {dimension_numbers = #tpu.dot_dimension_numbers<[1], [0], [0], [1], [0, 0, 1, 1], [], []>} : vector<8x16xf32>, vector<16x32xf32>, vector<8x32xf32> -> vector<8x32xf32>
    %c0_4 = arith.constant 0 : index
    %c0_5 = arith.constant 0 : index
    %4 = vector.load %arg4[%c0_4, %c0_5] : memref<1x32xf32, #tpu.memory_space<vmem>>, vector<1x32xf32>
    %5 = vector.broadcast %4 : vector<1x32xf32> to vector<8x32xf32>
    %6 = arith.addf %3, %5 : vector<8x32xf32>
    %c0_6 = arith.constant 0 : index
    %c0_7 = arith.constant 0 : index
    %c0_8 = arith.constant 0 : index
    %7 = vector.load %arg2[%c0_6, %c0_7, %c0_8] : memref<1x1x32xf32, #tpu.memory_space<vmem>>, vector<1x1x32xf32>
    %8 = vector.shape_cast %7 : vector<1x1x32xf32> to vector<1x32xf32>
    %9 = vector.broadcast %8 : vector<1x32xf32> to vector<8x32xf32>
    %10 = arith.addf %6, %9 : vector<8x32xf32>
    %c0_9 = arith.constant 0 : index
    %c0_10 = arith.constant 0 : index
    %c0_11 = arith.constant 0 : index
    %11 = vector.load %arg7[%c0_9, %c0_10, %c0_11] : memref<2x32x96xf32, #tpu.memory_space<vmem>>, vector<1x32x96xf32>
    %12 = vector.shape_cast %11 : vector<1x32x96xf32> to vector<32x96xf32>
    %cst_12 = arith.constant dense<0.000000e+00> : vector<8x96xf32>
    %13 = tpu.matmul %10, %12, %cst_12 {dimension_numbers = #tpu.dot_dimension_numbers<[1], [0], [0], [1], [0, 0, 1, 1], [], []>} : vector<8x32xf32>, vector<32x96xf32>, vector<8x96xf32> -> vector<8x96xf32>
    %c0_13 = arith.constant 0 : index
    %c0_14 = arith.constant 0 : index
    %c0_15 = arith.constant 0 : index
    %14 = vector.load %arg8[%c0_13, %c0_14, %c0_15] : memref<2x1x96xf32, #tpu.memory_space<vmem>>, vector<1x1x96xf32>
    %15 = vector.shape_cast %14 : vector<1x1x96xf32> to vector<1x96xf32>
    %16 = vector.broadcast %15 : vector<1x96xf32> to vector<8x96xf32>
    %17 = arith.addf %13, %16 : vector<8x96xf32>
    %c0_16 = arith.constant 0 : index
    %c0_17 = arith.constant 0 : index
    %c0_18 = arith.constant 0 : index
    %18 = vector.load %arg9[%c0_16, %c0_17, %c0_18] : memref<2x32x32xf32, #tpu.memory_space<vmem>>, vector<1x32x32xf32>
    %19 = vector.shape_cast %18 : vector<1x32x32xf32> to vector<32x32xf32>
    %cst_19 = arith.constant 0.000000e+00 : f32
    %20 = vector.broadcast %cst_19 : f32 to vector<8x32xf32>
    %21 = vector.extract_strided_slice %17 {offsets = [0, 0], sizes = [8, 8], strides = [1, 1]} : vector<8x96xf32> to vector<8x8xf32>
    %22 = vector.extract_strided_slice %17 {offsets = [0, 32], sizes = [8, 8], strides = [1, 1]} : vector<8x96xf32> to vector<8x8xf32>
    %23 = vector.extract_strided_slice %17 {offsets = [0, 64], sizes = [8, 8], strides = [1, 1]} : vector<8x96xf32> to vector<8x8xf32>
    %cst_20 = arith.constant dense<0.000000e+00> : vector<8x8xf32>
    %24 = tpu.matmul %21, %22, %cst_20 {dimension_numbers = #tpu.dot_dimension_numbers<[1], [1], [0], [0], [0, 0, 1, 0], [], []>} : vector<8x8xf32>, vector<8x8xf32>, vector<8x8xf32> -> vector<8x8xf32>
    %cst_21 = arith.constant 0.353553385 : f32
    %25 = vector.broadcast %cst_21 : f32 to vector<8x8xf32>
    %26 = arith.mulf %24, %25 : vector<8x8xf32>
    %cst_22 = arith.constant dense<0xFF800000> : vector<8xf32>
    %27 = vector.multi_reduction <maximumf>, %26, %cst_22 [1] : vector<8x8xf32> to vector<8xf32>
    %28 = vector.shape_cast %27 : vector<8xf32> to vector<8x1xf32>
    %29 = vector.broadcast %28 : vector<8x1xf32> to vector<8x8xf32>
    %30 = arith.subf %26, %29 : vector<8x8xf32>
    %31 = math.exp %30 : vector<8x8xf32>
    %cst_23 = arith.constant dense<0.000000e+00> : vector<8xf32>
    %32 = vector.multi_reduction <add>, %31, %cst_23 [1] : vector<8x8xf32> to vector<8xf32>
    %33 = vector.shape_cast %32 : vector<8xf32> to vector<8x1xf32>
    %34 = tpu.reciprocal %33 {approx = true} : vector<8x1xf32> -> vector<8x1xf32>
    %35 = vector.broadcast %34 : vector<8x1xf32> to vector<8x8xf32>
    %36 = arith.mulf %31, %35 : vector<8x8xf32>
    %cst_24 = arith.constant dense<0.000000e+00> : vector<8x8xf32>
    %37 = tpu.matmul %36, %23, %cst_24 {dimension_numbers = #tpu.dot_dimension_numbers<[1], [0], [0], [1], [0, 0, 1, 1], [], []>} : vector<8x8xf32>, vector<8x8xf32>, vector<8x8xf32> -> vector<8x8xf32>
    %38 = vector.extract_strided_slice %19 {offsets = [0, 0], sizes = [8, 32], strides = [1, 1]} : vector<32x32xf32> to vector<8x32xf32>
    %cst_25 = arith.constant dense<0.000000e+00> : vector<8x32xf32>
    %39 = tpu.matmul %37, %38, %cst_25 {dimension_numbers = #tpu.dot_dimension_numbers<[1], [0], [0], [1], [0, 0, 1, 1], [], []>} : vector<8x8xf32>, vector<8x32xf32>, vector<8x32xf32> -> vector<8x32xf32>
    %40 = arith.addf %20, %39 : vector<8x32xf32>
    %41 = vector.extract_strided_slice %17 {offsets = [0, 8], sizes = [8, 8], strides = [1, 1]} : vector<8x96xf32> to vector<8x8xf32>
    %42 = vector.extract_strided_slice %17 {offsets = [0, 40], sizes = [8, 8], strides = [1, 1]} : vector<8x96xf32> to vector<8x8xf32>
    %43 = vector.extract_strided_slice %17 {offsets = [0, 72], sizes = [8, 8], strides = [1, 1]} : vector<8x96xf32> to vector<8x8xf32>
    %cst_26 = arith.constant dense<0.000000e+00> : vector<8x8xf32>
    %44 = tpu.matmul %41, %42, %cst_26 {dimension_numbers = #tpu.dot_dimension_numbers<[1], [1], [0], [0], [0, 0, 1, 0], [], []>} : vector<8x8xf32>, vector<8x8xf32>, vector<8x8xf32> -> vector<8x8xf32>
    %cst_27 = arith.constant 0.353553385 : f32
    %45 = vector.broadcast %cst_27 : f32 to vector<8x8xf32>
    %46 = arith.mulf %44, %45 : vector<8x8xf32>
    %cst_28 = arith.constant dense<0xFF800000> : vector<8xf32>
    %47 = vector.multi_reduction <maximumf>, %46, %cst_28 [1] : vector<8x8xf32> to vector<8xf32>
    %48 = vector.shape_cast %47 : vector<8xf32> to vector<8x1xf32>
    %49 = vector.broadcast %48 : vector<8x1xf32> to vector<8x8xf32>
    %50 = arith.subf %46, %49 : vector<8x8xf32>
    %51 = math.exp %50 : vector<8x8xf32>
    %cst_29 = arith.constant dense<0.000000e+00> : vector<8xf32>
    %52 = vector.multi_reduction <add>, %51, %cst_29 [1] : vector<8x8xf32> to vector<8xf32>
    %53 = vector.shape_cast %52 : vector<8xf32> to vector<8x1xf32>
    %54 = tpu.reciprocal %53 {approx = true} : vector<8x1xf32> -> vector<8x1xf32>
    %55 = vector.broadcast %54 : vector<8x1xf32> to vector<8x8xf32>
    %56 = arith.mulf %51, %55 : vector<8x8xf32>
    %cst_30 = arith.constant dense<0.000000e+00> : vector<8x8xf32>
    %57 = tpu.matmul %56, %43, %cst_30 {dimension_numbers = #tpu.dot_dimension_numbers<[1], [0], [0], [1], [0, 0, 1, 1], [], []>} : vector<8x8xf32>, vector<8x8xf32>, vector<8x8xf32> -> vector<8x8xf32>
    %58 = vector.extract_strided_slice %19 {offsets = [8, 0], sizes = [8, 32], strides = [1, 1]} : vector<32x32xf32> to vector<8x32xf32>
    %cst_31 = arith.constant dense<0.000000e+00> : vector<8x32xf32>
    %59 = tpu.matmul %57, %58, %cst_31 {dimension_numbers = #tpu.dot_dimension_numbers<[1], [0], [0], [1], [0, 0, 1, 1], [], []>} : vector<8x8xf32>, vector<8x32xf32>, vector<8x32xf32> -> vector<8x32xf32>
    %60 = arith.addf %40, %59 : vector<8x32xf32>
    %61 = vector.extract_strided_slice %17 {offsets = [0, 16], sizes = [8, 8], strides = [1, 1]} : vector<8x96xf32> to vector<8x8xf32>
    %62 = vector.extract_strided_slice %17 {offsets = [0, 48], sizes = [8, 8], strides = [1, 1]} : vector<8x96xf32> to vector<8x8xf32>
    %63 = vector.extract_strided_slice %17 {offsets = [0, 80], sizes = [8, 8], strides = [1, 1]} : vector<8x96xf32> to vector<8x8xf32>
    %cst_32 = arith.constant dense<0.000000e+00> : vector<8x8xf32>
    %64 = tpu.matmul %61, %62, %cst_32 {dimension_numbers = #tpu.dot_dimension_numbers<[1], [1], [0], [0], [0, 0, 1, 0], [], []>} : vector<8x8xf32>, vector<8x8xf32>, vector<8x8xf32> -> vector<8x8xf32>
    %cst_33 = arith.constant 0.353553385 : f32
    %65 = vector.broadcast %cst_33 : f32 to vector<8x8xf32>
    %66 = arith.mulf %64, %65 : vector<8x8xf32>
    %cst_34 = arith.constant dense<0xFF800000> : vector<8xf32>
    %67 = vector.multi_reduction <maximumf>, %66, %cst_34 [1] : vector<8x8xf32> to vector<8xf32>
    %68 = vector.shape_cast %67 : vector<8xf32> to vector<8x1xf32>
    %69 = vector.broadcast %68 : vector<8x1xf32> to vector<8x8xf32>
    %70 = arith.subf %66, %69 : vector<8x8xf32>
    %71 = math.exp %70 : vector<8x8xf32>
    %cst_35 = arith.constant dense<0.000000e+00> : vector<8xf32>
    %72 = vector.multi_reduction <add>, %71, %cst_35 [1] : vector<8x8xf32> to vector<8xf32>
    %73 = vector.shape_cast %72 : vector<8xf32> to vector<8x1xf32>
    %74 = tpu.reciprocal %73 {approx = true} : vector<8x1xf32> -> vector<8x1xf32>
    %75 = vector.broadcast %74 : vector<8x1xf32> to vector<8x8xf32>
    %76 = arith.mulf %71, %75 : vector<8x8xf32>
    %cst_36 = arith.constant dense<0.000000e+00> : vector<8x8xf32>
    %77 = tpu.matmul %76, %63, %cst_36 {dimension_numbers = #tpu.dot_dimension_numbers<[1], [0], [0], [1], [0, 0, 1, 1], [], []>} : vector<8x8xf32>, vector<8x8xf32>, vector<8x8xf32> -> vector<8x8xf32>
    %78 = vector.extract_strided_slice %19 {offsets = [16, 0], sizes = [8, 32], strides = [1, 1]} : vector<32x32xf32> to vector<8x32xf32>
    %cst_37 = arith.constant dense<0.000000e+00> : vector<8x32xf32>
    %79 = tpu.matmul %77, %78, %cst_37 {dimension_numbers = #tpu.dot_dimension_numbers<[1], [0], [0], [1], [0, 0, 1, 1], [], []>} : vector<8x8xf32>, vector<8x32xf32>, vector<8x32xf32> -> vector<8x32xf32>
    %80 = arith.addf %60, %79 : vector<8x32xf32>
    %81 = vector.extract_strided_slice %17 {offsets = [0, 24], sizes = [8, 8], strides = [1, 1]} : vector<8x96xf32> to vector<8x8xf32>
    %82 = vector.extract_strided_slice %17 {offsets = [0, 56], sizes = [8, 8], strides = [1, 1]} : vector<8x96xf32> to vector<8x8xf32>
    %83 = vector.extract_strided_slice %17 {offsets = [0, 88], sizes = [8, 8], strides = [1, 1]} : vector<8x96xf32> to vector<8x8xf32>
    %cst_38 = arith.constant dense<0.000000e+00> : vector<8x8xf32>
    %84 = tpu.matmul %81, %82, %cst_38 {dimension_numbers = #tpu.dot_dimension_numbers<[1], [1], [0], [0], [0, 0, 1, 0], [], []>} : vector<8x8xf32>, vector<8x8xf32>, vector<8x8xf32> -> vector<8x8xf32>
    %cst_39 = arith.constant 0.353553385 : f32
    %85 = vector.broadcast %cst_39 : f32 to vector<8x8xf32>
    %86 = arith.mulf %84, %85 : vector<8x8xf32>
    %cst_40 = arith.constant dense<0xFF800000> : vector<8xf32>
    %87 = vector.multi_reduction <maximumf>, %86, %cst_40 [1] : vector<8x8xf32> to vector<8xf32>
    %88 = vector.shape_cast %87 : vector<8xf32> to vector<8x1xf32>
    %89 = vector.broadcast %88 : vector<8x1xf32> to vector<8x8xf32>
    %90 = arith.subf %86, %89 : vector<8x8xf32>
    %91 = math.exp %90 : vector<8x8xf32>
    %cst_41 = arith.constant dense<0.000000e+00> : vector<8xf32>
    %92 = vector.multi_reduction <add>, %91, %cst_41 [1] : vector<8x8xf32> to vector<8xf32>
    %93 = vector.shape_cast %92 : vector<8xf32> to vector<8x1xf32>
    %94 = tpu.reciprocal %93 {approx = true} : vector<8x1xf32> -> vector<8x1xf32>
    %95 = vector.broadcast %94 : vector<8x1xf32> to vector<8x8xf32>
    %96 = arith.mulf %91, %95 : vector<8x8xf32>
    %cst_42 = arith.constant dense<0.000000e+00> : vector<8x8xf32>
    %97 = tpu.matmul %96, %83, %cst_42 {dimension_numbers = #tpu.dot_dimension_numbers<[1], [0], [0], [1], [0, 0, 1, 1], [], []>} : vector<8x8xf32>, vector<8x8xf32>, vector<8x8xf32> -> vector<8x8xf32>
    %98 = vector.extract_strided_slice %19 {offsets = [24, 0], sizes = [8, 32], strides = [1, 1]} : vector<32x32xf32> to vector<8x32xf32>
    %cst_43 = arith.constant dense<0.000000e+00> : vector<8x32xf32>
    %99 = tpu.matmul %97, %98, %cst_43 {dimension_numbers = #tpu.dot_dimension_numbers<[1], [0], [0], [1], [0, 0, 1, 1], [], []>} : vector<8x8xf32>, vector<8x32xf32>, vector<8x32xf32> -> vector<8x32xf32>
    %100 = arith.addf %80, %99 : vector<8x32xf32>
    %c0_44 = arith.constant 0 : index
    %c0_45 = arith.constant 0 : index
    %c0_46 = arith.constant 0 : index
    %101 = vector.load %arg10[%c0_44, %c0_45, %c0_46] : memref<2x1x32xf32, #tpu.memory_space<vmem>>, vector<1x1x32xf32>
    %102 = vector.shape_cast %101 : vector<1x1x32xf32> to vector<1x32xf32>
    %103 = vector.broadcast %102 : vector<1x32xf32> to vector<8x32xf32>
    %104 = arith.addf %100, %103 : vector<8x32xf32>
    %105 = arith.addf %10, %104 : vector<8x32xf32>
    %c0_47 = arith.constant 0 : index
    %c0_48 = arith.constant 0 : index
    %c0_49 = arith.constant 0 : index
    %106 = vector.load %arg11[%c0_47, %c0_48, %c0_49] : memref<2x1x32xf32, #tpu.memory_space<vmem>>, vector<1x1x32xf32>
    %107 = vector.shape_cast %106 : vector<1x1x32xf32> to vector<1x32xf32>
    %c0_50 = arith.constant 0 : index
    %c0_51 = arith.constant 0 : index
    %c0_52 = arith.constant 0 : index
    %108 = vector.load %arg12[%c0_50, %c0_51, %c0_52] : memref<2x1x32xf32, #tpu.memory_space<vmem>>, vector<1x1x32xf32>
    %109 = vector.shape_cast %108 : vector<1x1x32xf32> to vector<1x32xf32>
    %cst_53 = arith.constant dense<0.000000e+00> : vector<8xf32>
    %110 = vector.multi_reduction <add>, %105, %cst_53 [1] : vector<8x32xf32> to vector<8xf32>
    %111 = vector.shape_cast %110 : vector<8xf32> to vector<8x1xf32>
    %cst_54 = arith.constant 3.200000e+01 : f32
    %112 = vector.broadcast %cst_54 : f32 to vector<8x1xf32>
    %113 = arith.divf %111, %112 : vector<8x1xf32>
    %114 = vector.broadcast %113 : vector<8x1xf32> to vector<8x32xf32>
    %115 = arith.subf %105, %114 : vector<8x32xf32>
    %116 = arith.mulf %115, %115 : vector<8x32xf32>
    %cst_55 = arith.constant dense<0.000000e+00> : vector<8xf32>
    %117 = vector.multi_reduction <add>, %116, %cst_55 [1] : vector<8x32xf32> to vector<8xf32>
    %118 = vector.shape_cast %117 : vector<8xf32> to vector<8x1xf32>
    %cst_56 = arith.constant 3.200000e+01 : f32
    %119 = vector.broadcast %cst_56 : f32 to vector<8x1xf32>
    %120 = arith.divf %118, %119 : vector<8x1xf32>
    %121 = vector.broadcast %113 : vector<8x1xf32> to vector<8x32xf32>
    %122 = arith.subf %105, %121 : vector<8x32xf32>
    %cst_57 = arith.constant 9.99999974E-6 : f32
    %123 = vector.broadcast %cst_57 : f32 to vector<8x1xf32>
    %124 = arith.addf %120, %123 : vector<8x1xf32>
    %125 = math.rsqrt %124 : vector<8x1xf32>
    %126 = vector.broadcast %125 : vector<8x1xf32> to vector<8x32xf32>
    %127 = arith.mulf %122, %126 : vector<8x32xf32>
    %128 = vector.broadcast %107 : vector<1x32xf32> to vector<8x32xf32>
    %129 = arith.mulf %127, %128 : vector<8x32xf32>
    %130 = vector.broadcast %109 : vector<1x32xf32> to vector<8x32xf32>
    %131 = arith.addf %129, %130 : vector<8x32xf32>
    %c0_58 = arith.constant 0 : index
    %c0_59 = arith.constant 0 : index
    %c0_60 = arith.constant 0 : index
    %132 = vector.load %arg13[%c0_58, %c0_59, %c0_60] : memref<2x32x128xf32, #tpu.memory_space<vmem>>, vector<1x32x128xf32>
    %133 = vector.shape_cast %132 : vector<1x32x128xf32> to vector<32x128xf32>
    %cst_61 = arith.constant dense<0.000000e+00> : vector<8x128xf32>
    %134 = tpu.matmul %131, %133, %cst_61 {dimension_numbers = #tpu.dot_dimension_numbers<[1], [0], [0], [1], [0, 0, 1, 1], [], []>} : vector<8x32xf32>, vector<32x128xf32>, vector<8x128xf32> -> vector<8x128xf32>
    %c0_62 = arith.constant 0 : index
    %c0_63 = arith.constant 0 : index
    %c0_64 = arith.constant 0 : index
    %135 = vector.load %arg14[%c0_62, %c0_63, %c0_64] : memref<2x1x128xf32, #tpu.memory_space<vmem>>, vector<1x1x128xf32>
    %136 = vector.shape_cast %135 : vector<1x1x128xf32> to vector<1x128xf32>
    %137 = vector.broadcast %136 : vector<1x128xf32> to vector<8x128xf32>
    %138 = arith.addf %134, %137 : vector<8x128xf32>
    %cst_65 = arith.constant 0.000000e+00 : f32
    %139 = vector.broadcast %cst_65 : f32 to vector<8x128xf32>
    %140 = arith.maximumf %138, %139 : vector<8x128xf32>
    %c0_66 = arith.constant 0 : index
    %c0_67 = arith.constant 0 : index
    %c0_68 = arith.constant 0 : index
    %141 = vector.load %arg15[%c0_66, %c0_67, %c0_68] : memref<2x128x32xf32, #tpu.memory_space<vmem>>, vector<1x128x32xf32>
    %142 = vector.shape_cast %141 : vector<1x128x32xf32> to vector<128x32xf32>
    %cst_69 = arith.constant dense<0.000000e+00> : vector<8x32xf32>
    %143 = tpu.matmul %140, %142, %cst_69 {dimension_numbers = #tpu.dot_dimension_numbers<[1], [0], [0], [1], [0, 0, 1, 1], [], []>} : vector<8x128xf32>, vector<128x32xf32>, vector<8x32xf32> -> vector<8x32xf32>
    %c0_70 = arith.constant 0 : index
    %c0_71 = arith.constant 0 : index
    %c0_72 = arith.constant 0 : index
    %144 = vector.load %arg16[%c0_70, %c0_71, %c0_72] : memref<2x1x32xf32, #tpu.memory_space<vmem>>, vector<1x1x32xf32>
    %145 = vector.shape_cast %144 : vector<1x1x32xf32> to vector<1x32xf32>
    %146 = vector.broadcast %145 : vector<1x32xf32> to vector<8x32xf32>
    %147 = arith.addf %143, %146 : vector<8x32xf32>
    %148 = arith.addf %131, %147 : vector<8x32xf32>
    %c0_73 = arith.constant 0 : index
    %c0_74 = arith.constant 0 : index
    %c0_75 = arith.constant 0 : index
    %149 = vector.load %arg17[%c0_73, %c0_74, %c0_75] : memref<2x1x32xf32, #tpu.memory_space<vmem>>, vector<1x1x32xf32>
    %150 = vector.shape_cast %149 : vector<1x1x32xf32> to vector<1x32xf32>
    %c0_76 = arith.constant 0 : index
    %c0_77 = arith.constant 0 : index
    %c0_78 = arith.constant 0 : index
    %151 = vector.load %arg18[%c0_76, %c0_77, %c0_78] : memref<2x1x32xf32, #tpu.memory_space<vmem>>, vector<1x1x32xf32>
    %152 = vector.shape_cast %151 : vector<1x1x32xf32> to vector<1x32xf32>
    %cst_79 = arith.constant dense<0.000000e+00> : vector<8xf32>
    %153 = vector.multi_reduction <add>, %148, %cst_79 [1] : vector<8x32xf32> to vector<8xf32>
    %154 = vector.shape_cast %153 : vector<8xf32> to vector<8x1xf32>
    %cst_80 = arith.constant 3.200000e+01 : f32
    %155 = vector.broadcast %cst_80 : f32 to vector<8x1xf32>
    %156 = arith.divf %154, %155 : vector<8x1xf32>
    %157 = vector.broadcast %156 : vector<8x1xf32> to vector<8x32xf32>
    %158 = arith.subf %148, %157 : vector<8x32xf32>
    %159 = arith.mulf %158, %158 : vector<8x32xf32>
    %cst_81 = arith.constant dense<0.000000e+00> : vector<8xf32>
    %160 = vector.multi_reduction <add>, %159, %cst_81 [1] : vector<8x32xf32> to vector<8xf32>
    %161 = vector.shape_cast %160 : vector<8xf32> to vector<8x1xf32>
    %cst_82 = arith.constant 3.200000e+01 : f32
    %162 = vector.broadcast %cst_82 : f32 to vector<8x1xf32>
    %163 = arith.divf %161, %162 : vector<8x1xf32>
    %164 = vector.broadcast %156 : vector<8x1xf32> to vector<8x32xf32>
    %165 = arith.subf %148, %164 : vector<8x32xf32>
    %cst_83 = arith.constant 9.99999974E-6 : f32
    %166 = vector.broadcast %cst_83 : f32 to vector<8x1xf32>
    %167 = arith.addf %163, %166 : vector<8x1xf32>
    %168 = math.rsqrt %167 : vector<8x1xf32>
    %169 = vector.broadcast %168 : vector<8x1xf32> to vector<8x32xf32>
    %170 = arith.mulf %165, %169 : vector<8x32xf32>
    %171 = vector.broadcast %150 : vector<1x32xf32> to vector<8x32xf32>
    %172 = arith.mulf %170, %171 : vector<8x32xf32>
    %173 = vector.broadcast %152 : vector<1x32xf32> to vector<8x32xf32>
    %174 = arith.addf %172, %173 : vector<8x32xf32>
    %c1 = arith.constant 1 : index
    %c0_84 = arith.constant 0 : index
    %c0_85 = arith.constant 0 : index
    %175 = vector.load %arg7[%c1, %c0_84, %c0_85] : memref<2x32x96xf32, #tpu.memory_space<vmem>>, vector<1x32x96xf32>
    %176 = vector.shape_cast %175 : vector<1x32x96xf32> to vector<32x96xf32>
    %cst_86 = arith.constant dense<0.000000e+00> : vector<8x96xf32>
    %177 = tpu.matmul %174, %176, %cst_86 {dimension_numbers = #tpu.dot_dimension_numbers<[1], [0], [0], [1], [0, 0, 1, 1], [], []>} : vector<8x32xf32>, vector<32x96xf32>, vector<8x96xf32> -> vector<8x96xf32>
    %c1_87 = arith.constant 1 : index
    %c0_88 = arith.constant 0 : index
    %c0_89 = arith.constant 0 : index
    %178 = vector.load %arg8[%c1_87, %c0_88, %c0_89] : memref<2x1x96xf32, #tpu.memory_space<vmem>>, vector<1x1x96xf32>
    %179 = vector.shape_cast %178 : vector<1x1x96xf32> to vector<1x96xf32>
    %180 = vector.broadcast %179 : vector<1x96xf32> to vector<8x96xf32>
    %181 = arith.addf %177, %180 : vector<8x96xf32>
    %c1_90 = arith.constant 1 : index
    %c0_91 = arith.constant 0 : index
    %c0_92 = arith.constant 0 : index
    %182 = vector.load %arg9[%c1_90, %c0_91, %c0_92] : memref<2x32x32xf32, #tpu.memory_space<vmem>>, vector<1x32x32xf32>
    %183 = vector.shape_cast %182 : vector<1x32x32xf32> to vector<32x32xf32>
    %cst_93 = arith.constant 0.000000e+00 : f32
    %184 = vector.broadcast %cst_93 : f32 to vector<8x32xf32>
    %185 = vector.extract_strided_slice %181 {offsets = [0, 0], sizes = [8, 8], strides = [1, 1]} : vector<8x96xf32> to vector<8x8xf32>
    %186 = vector.extract_strided_slice %181 {offsets = [0, 32], sizes = [8, 8], strides = [1, 1]} : vector<8x96xf32> to vector<8x8xf32>
    %187 = vector.extract_strided_slice %181 {offsets = [0, 64], sizes = [8, 8], strides = [1, 1]} : vector<8x96xf32> to vector<8x8xf32>
    %cst_94 = arith.constant dense<0.000000e+00> : vector<8x8xf32>
    %188 = tpu.matmul %185, %186, %cst_94 {dimension_numbers = #tpu.dot_dimension_numbers<[1], [1], [0], [0], [0, 0, 1, 0], [], []>} : vector<8x8xf32>, vector<8x8xf32>, vector<8x8xf32> -> vector<8x8xf32>
    %cst_95 = arith.constant 0.353553385 : f32
    %189 = vector.broadcast %cst_95 : f32 to vector<8x8xf32>
    %190 = arith.mulf %188, %189 : vector<8x8xf32>
    %cst_96 = arith.constant dense<0xFF800000> : vector<8xf32>
    %191 = vector.multi_reduction <maximumf>, %190, %cst_96 [1] : vector<8x8xf32> to vector<8xf32>
    %192 = vector.shape_cast %191 : vector<8xf32> to vector<8x1xf32>
    %193 = vector.broadcast %192 : vector<8x1xf32> to vector<8x8xf32>
    %194 = arith.subf %190, %193 : vector<8x8xf32>
    %195 = math.exp %194 : vector<8x8xf32>
    %cst_97 = arith.constant dense<0.000000e+00> : vector<8xf32>
    %196 = vector.multi_reduction <add>, %195, %cst_97 [1] : vector<8x8xf32> to vector<8xf32>
    %197 = vector.shape_cast %196 : vector<8xf32> to vector<8x1xf32>
    %198 = tpu.reciprocal %197 {approx = true} : vector<8x1xf32> -> vector<8x1xf32>
    %199 = vector.broadcast %198 : vector<8x1xf32> to vector<8x8xf32>
    %200 = arith.mulf %195, %199 : vector<8x8xf32>
    %cst_98 = arith.constant dense<0.000000e+00> : vector<8x8xf32>
    %201 = tpu.matmul %200, %187, %cst_98 {dimension_numbers = #tpu.dot_dimension_numbers<[1], [0], [0], [1], [0, 0, 1, 1], [], []>} : vector<8x8xf32>, vector<8x8xf32>, vector<8x8xf32> -> vector<8x8xf32>
    %202 = vector.extract_strided_slice %183 {offsets = [0, 0], sizes = [8, 32], strides = [1, 1]} : vector<32x32xf32> to vector<8x32xf32>
    %cst_99 = arith.constant dense<0.000000e+00> : vector<8x32xf32>
    %203 = tpu.matmul %201, %202, %cst_99 {dimension_numbers = #tpu.dot_dimension_numbers<[1], [0], [0], [1], [0, 0, 1, 1], [], []>} : vector<8x8xf32>, vector<8x32xf32>, vector<8x32xf32> -> vector<8x32xf32>
    %204 = arith.addf %184, %203 : vector<8x32xf32>
    %205 = vector.extract_strided_slice %181 {offsets = [0, 8], sizes = [8, 8], strides = [1, 1]} : vector<8x96xf32> to vector<8x8xf32>
    %206 = vector.extract_strided_slice %181 {offsets = [0, 40], sizes = [8, 8], strides = [1, 1]} : vector<8x96xf32> to vector<8x8xf32>
    %207 = vector.extract_strided_slice %181 {offsets = [0, 72], sizes = [8, 8], strides = [1, 1]} : vector<8x96xf32> to vector<8x8xf32>
    %cst_100 = arith.constant dense<0.000000e+00> : vector<8x8xf32>
    %208 = tpu.matmul %205, %206, %cst_100 {dimension_numbers = #tpu.dot_dimension_numbers<[1], [1], [0], [0], [0, 0, 1, 0], [], []>} : vector<8x8xf32>, vector<8x8xf32>, vector<8x8xf32> -> vector<8x8xf32>
    %cst_101 = arith.constant 0.353553385 : f32
    %209 = vector.broadcast %cst_101 : f32 to vector<8x8xf32>
    %210 = arith.mulf %208, %209 : vector<8x8xf32>
    %cst_102 = arith.constant dense<0xFF800000> : vector<8xf32>
    %211 = vector.multi_reduction <maximumf>, %210, %cst_102 [1] : vector<8x8xf32> to vector<8xf32>
    %212 = vector.shape_cast %211 : vector<8xf32> to vector<8x1xf32>
    %213 = vector.broadcast %212 : vector<8x1xf32> to vector<8x8xf32>
    %214 = arith.subf %210, %213 : vector<8x8xf32>
    %215 = math.exp %214 : vector<8x8xf32>
    %cst_103 = arith.constant dense<0.000000e+00> : vector<8xf32>
    %216 = vector.multi_reduction <add>, %215, %cst_103 [1] : vector<8x8xf32> to vector<8xf32>
    %217 = vector.shape_cast %216 : vector<8xf32> to vector<8x1xf32>
    %218 = tpu.reciprocal %217 {approx = true} : vector<8x1xf32> -> vector<8x1xf32>
    %219 = vector.broadcast %218 : vector<8x1xf32> to vector<8x8xf32>
    %220 = arith.mulf %215, %219 : vector<8x8xf32>
    %cst_104 = arith.constant dense<0.000000e+00> : vector<8x8xf32>
    %221 = tpu.matmul %220, %207, %cst_104 {dimension_numbers = #tpu.dot_dimension_numbers<[1], [0], [0], [1], [0, 0, 1, 1], [], []>} : vector<8x8xf32>, vector<8x8xf32>, vector<8x8xf32> -> vector<8x8xf32>
    %222 = vector.extract_strided_slice %183 {offsets = [8, 0], sizes = [8, 32], strides = [1, 1]} : vector<32x32xf32> to vector<8x32xf32>
    %cst_105 = arith.constant dense<0.000000e+00> : vector<8x32xf32>
    %223 = tpu.matmul %221, %222, %cst_105 {dimension_numbers = #tpu.dot_dimension_numbers<[1], [0], [0], [1], [0, 0, 1, 1], [], []>} : vector<8x8xf32>, vector<8x32xf32>, vector<8x32xf32> -> vector<8x32xf32>
    %224 = arith.addf %204, %223 : vector<8x32xf32>
    %225 = vector.extract_strided_slice %181 {offsets = [0, 16], sizes = [8, 8], strides = [1, 1]} : vector<8x96xf32> to vector<8x8xf32>
    %226 = vector.extract_strided_slice %181 {offsets = [0, 48], sizes = [8, 8], strides = [1, 1]} : vector<8x96xf32> to vector<8x8xf32>
    %227 = vector.extract_strided_slice %181 {offsets = [0, 80], sizes = [8, 8], strides = [1, 1]} : vector<8x96xf32> to vector<8x8xf32>
    %cst_106 = arith.constant dense<0.000000e+00> : vector<8x8xf32>
    %228 = tpu.matmul %225, %226, %cst_106 {dimension_numbers = #tpu.dot_dimension_numbers<[1], [1], [0], [0], [0, 0, 1, 0], [], []>} : vector<8x8xf32>, vector<8x8xf32>, vector<8x8xf32> -> vector<8x8xf32>
    %cst_107 = arith.constant 0.353553385 : f32
    %229 = vector.broadcast %cst_107 : f32 to vector<8x8xf32>
    %230 = arith.mulf %228, %229 : vector<8x8xf32>
    %cst_108 = arith.constant dense<0xFF800000> : vector<8xf32>
    %231 = vector.multi_reduction <maximumf>, %230, %cst_108 [1] : vector<8x8xf32> to vector<8xf32>
    %232 = vector.shape_cast %231 : vector<8xf32> to vector<8x1xf32>
    %233 = vector.broadcast %232 : vector<8x1xf32> to vector<8x8xf32>
    %234 = arith.subf %230, %233 : vector<8x8xf32>
    %235 = math.exp %234 : vector<8x8xf32>
    %cst_109 = arith.constant dense<0.000000e+00> : vector<8xf32>
    %236 = vector.multi_reduction <add>, %235, %cst_109 [1] : vector<8x8xf32> to vector<8xf32>
    %237 = vector.shape_cast %236 : vector<8xf32> to vector<8x1xf32>
    %238 = tpu.reciprocal %237 {approx = true} : vector<8x1xf32> -> vector<8x1xf32>
    %239 = vector.broadcast %238 : vector<8x1xf32> to vector<8x8xf32>
    %240 = arith.mulf %235, %239 : vector<8x8xf32>
    %cst_110 = arith.constant dense<0.000000e+00> : vector<8x8xf32>
    %241 = tpu.matmul %240, %227, %cst_110 {dimension_numbers = #tpu.dot_dimension_numbers<[1], [0], [0], [1], [0, 0, 1, 1], [], []>} : vector<8x8xf32>, vector<8x8xf32>, vector<8x8xf32> -> vector<8x8xf32>
    %242 = vector.extract_strided_slice %183 {offsets = [16, 0], sizes = [8, 32], strides = [1, 1]} : vector<32x32xf32> to vector<8x32xf32>
    %cst_111 = arith.constant dense<0.000000e+00> : vector<8x32xf32>
    %243 = tpu.matmul %241, %242, %cst_111 {dimension_numbers = #tpu.dot_dimension_numbers<[1], [0], [0], [1], [0, 0, 1, 1], [], []>} : vector<8x8xf32>, vector<8x32xf32>, vector<8x32xf32> -> vector<8x32xf32>
    %244 = arith.addf %224, %243 : vector<8x32xf32>
    %245 = vector.extract_strided_slice %181 {offsets = [0, 24], sizes = [8, 8], strides = [1, 1]} : vector<8x96xf32> to vector<8x8xf32>
    %246 = vector.extract_strided_slice %181 {offsets = [0, 56], sizes = [8, 8], strides = [1, 1]} : vector<8x96xf32> to vector<8x8xf32>
    %247 = vector.extract_strided_slice %181 {offsets = [0, 88], sizes = [8, 8], strides = [1, 1]} : vector<8x96xf32> to vector<8x8xf32>
    %cst_112 = arith.constant dense<0.000000e+00> : vector<8x8xf32>
    %248 = tpu.matmul %245, %246, %cst_112 {dimension_numbers = #tpu.dot_dimension_numbers<[1], [1], [0], [0], [0, 0, 1, 0], [], []>} : vector<8x8xf32>, vector<8x8xf32>, vector<8x8xf32> -> vector<8x8xf32>
    %cst_113 = arith.constant 0.353553385 : f32
    %249 = vector.broadcast %cst_113 : f32 to vector<8x8xf32>
    %250 = arith.mulf %248, %249 : vector<8x8xf32>
    %cst_114 = arith.constant dense<0xFF800000> : vector<8xf32>
    %251 = vector.multi_reduction <maximumf>, %250, %cst_114 [1] : vector<8x8xf32> to vector<8xf32>
    %252 = vector.shape_cast %251 : vector<8xf32> to vector<8x1xf32>
    %253 = vector.broadcast %252 : vector<8x1xf32> to vector<8x8xf32>
    %254 = arith.subf %250, %253 : vector<8x8xf32>
    %255 = math.exp %254 : vector<8x8xf32>
    %cst_115 = arith.constant dense<0.000000e+00> : vector<8xf32>
    %256 = vector.multi_reduction <add>, %255, %cst_115 [1] : vector<8x8xf32> to vector<8xf32>
    %257 = vector.shape_cast %256 : vector<8xf32> to vector<8x1xf32>
    %258 = tpu.reciprocal %257 {approx = true} : vector<8x1xf32> -> vector<8x1xf32>
    %259 = vector.broadcast %258 : vector<8x1xf32> to vector<8x8xf32>
    %260 = arith.mulf %255, %259 : vector<8x8xf32>
    %cst_116 = arith.constant dense<0.000000e+00> : vector<8x8xf32>
    %261 = tpu.matmul %260, %247, %cst_116 {dimension_numbers = #tpu.dot_dimension_numbers<[1], [0], [0], [1], [0, 0, 1, 1], [], []>} : vector<8x8xf32>, vector<8x8xf32>, vector<8x8xf32> -> vector<8x8xf32>
    %262 = vector.extract_strided_slice %183 {offsets = [24, 0], sizes = [8, 32], strides = [1, 1]} : vector<32x32xf32> to vector<8x32xf32>
    %cst_117 = arith.constant dense<0.000000e+00> : vector<8x32xf32>
    %263 = tpu.matmul %261, %262, %cst_117 {dimension_numbers = #tpu.dot_dimension_numbers<[1], [0], [0], [1], [0, 0, 1, 1], [], []>} : vector<8x8xf32>, vector<8x32xf32>, vector<8x32xf32> -> vector<8x32xf32>
    %264 = arith.addf %244, %263 : vector<8x32xf32>
    %c1_118 = arith.constant 1 : index
    %c0_119 = arith.constant 0 : index
    %c0_120 = arith.constant 0 : index
    %265 = vector.load %arg10[%c1_118, %c0_119, %c0_120] : memref<2x1x32xf32, #tpu.memory_space<vmem>>, vector<1x1x32xf32>
    %266 = vector.shape_cast %265 : vector<1x1x32xf32> to vector<1x32xf32>
    %267 = vector.broadcast %266 : vector<1x32xf32> to vector<8x32xf32>
    %268 = arith.addf %264, %267 : vector<8x32xf32>
    %269 = arith.addf %174, %268 : vector<8x32xf32>
    %c1_121 = arith.constant 1 : index
    %c0_122 = arith.constant 0 : index
    %c0_123 = arith.constant 0 : index
    %270 = vector.load %arg11[%c1_121, %c0_122, %c0_123] : memref<2x1x32xf32, #tpu.memory_space<vmem>>, vector<1x1x32xf32>
    %271 = vector.shape_cast %270 : vector<1x1x32xf32> to vector<1x32xf32>
    %c1_124 = arith.constant 1 : index
    %c0_125 = arith.constant 0 : index
    %c0_126 = arith.constant 0 : index
    %272 = vector.load %arg12[%c1_124, %c0_125, %c0_126] : memref<2x1x32xf32, #tpu.memory_space<vmem>>, vector<1x1x32xf32>
    %273 = vector.shape_cast %272 : vector<1x1x32xf32> to vector<1x32xf32>
    %cst_127 = arith.constant dense<0.000000e+00> : vector<8xf32>
    %274 = vector.multi_reduction <add>, %269, %cst_127 [1] : vector<8x32xf32> to vector<8xf32>
    %275 = vector.shape_cast %274 : vector<8xf32> to vector<8x1xf32>
    %cst_128 = arith.constant 3.200000e+01 : f32
    %276 = vector.broadcast %cst_128 : f32 to vector<8x1xf32>
    %277 = arith.divf %275, %276 : vector<8x1xf32>
    %278 = vector.broadcast %277 : vector<8x1xf32> to vector<8x32xf32>
    %279 = arith.subf %269, %278 : vector<8x32xf32>
    %280 = arith.mulf %279, %279 : vector<8x32xf32>
    %cst_129 = arith.constant dense<0.000000e+00> : vector<8xf32>
    %281 = vector.multi_reduction <add>, %280, %cst_129 [1] : vector<8x32xf32> to vector<8xf32>
    %282 = vector.shape_cast %281 : vector<8xf32> to vector<8x1xf32>
    %cst_130 = arith.constant 3.200000e+01 : f32
    %283 = vector.broadcast %cst_130 : f32 to vector<8x1xf32>
    %284 = arith.divf %282, %283 : vector<8x1xf32>
    %285 = vector.broadcast %277 : vector<8x1xf32> to vector<8x32xf32>
    %286 = arith.subf %269, %285 : vector<8x32xf32>
    %cst_131 = arith.constant 9.99999974E-6 : f32
    %287 = vector.broadcast %cst_131 : f32 to vector<8x1xf32>
    %288 = arith.addf %284, %287 : vector<8x1xf32>
    %289 = math.rsqrt %288 : vector<8x1xf32>
    %290 = vector.broadcast %289 : vector<8x1xf32> to vector<8x32xf32>
    %291 = arith.mulf %286, %290 : vector<8x32xf32>
    %292 = vector.broadcast %271 : vector<1x32xf32> to vector<8x32xf32>
    %293 = arith.mulf %291, %292 : vector<8x32xf32>
    %294 = vector.broadcast %273 : vector<1x32xf32> to vector<8x32xf32>
    %295 = arith.addf %293, %294 : vector<8x32xf32>
    %c1_132 = arith.constant 1 : index
    %c0_133 = arith.constant 0 : index
    %c0_134 = arith.constant 0 : index
    %296 = vector.load %arg13[%c1_132, %c0_133, %c0_134] : memref<2x32x128xf32, #tpu.memory_space<vmem>>, vector<1x32x128xf32>
    %297 = vector.shape_cast %296 : vector<1x32x128xf32> to vector<32x128xf32>
    %cst_135 = arith.constant dense<0.000000e+00> : vector<8x128xf32>
    %298 = tpu.matmul %295, %297, %cst_135 {dimension_numbers = #tpu.dot_dimension_numbers<[1], [0], [0], [1], [0, 0, 1, 1], [], []>} : vector<8x32xf32>, vector<32x128xf32>, vector<8x128xf32> -> vector<8x128xf32>
    %c1_136 = arith.constant 1 : index
    %c0_137 = arith.constant 0 : index
    %c0_138 = arith.constant 0 : index
    %299 = vector.load %arg14[%c1_136, %c0_137, %c0_138] : memref<2x1x128xf32, #tpu.memory_space<vmem>>, vector<1x1x128xf32>
    %300 = vector.shape_cast %299 : vector<1x1x128xf32> to vector<1x128xf32>
    %301 = vector.broadcast %300 : vector<1x128xf32> to vector<8x128xf32>
    %302 = arith.addf %298, %301 : vector<8x128xf32>
    %cst_139 = arith.constant 0.000000e+00 : f32
    %303 = vector.broadcast %cst_139 : f32 to vector<8x128xf32>
    %304 = arith.maximumf %302, %303 : vector<8x128xf32>
    %c1_140 = arith.constant 1 : index
    %c0_141 = arith.constant 0 : index
    %c0_142 = arith.constant 0 : index
    %305 = vector.load %arg15[%c1_140, %c0_141, %c0_142] : memref<2x128x32xf32, #tpu.memory_space<vmem>>, vector<1x128x32xf32>
    %306 = vector.shape_cast %305 : vector<1x128x32xf32> to vector<128x32xf32>
    %cst_143 = arith.constant dense<0.000000e+00> : vector<8x32xf32>
    %307 = tpu.matmul %304, %306, %cst_143 {dimension_numbers = #tpu.dot_dimension_numbers<[1], [0], [0], [1], [0, 0, 1, 1], [], []>} : vector<8x128xf32>, vector<128x32xf32>, vector<8x32xf32> -> vector<8x32xf32>
    %c1_144 = arith.constant 1 : index
    %c0_145 = arith.constant 0 : index
    %c0_146 = arith.constant 0 : index
    %308 = vector.load %arg16[%c1_144, %c0_145, %c0_146] : memref<2x1x32xf32, #tpu.memory_space<vmem>>, vector<1x1x32xf32>
    %309 = vector.shape_cast %308 : vector<1x1x32xf32> to vector<1x32xf32>
    %310 = vector.broadcast %309 : vector<1x32xf32> to vector<8x32xf32>
    %311 = arith.addf %307, %310 : vector<8x32xf32>
    %312 = arith.addf %295, %311 : vector<8x32xf32>
    %c1_147 = arith.constant 1 : index
    %c0_148 = arith.constant 0 : index
    %c0_149 = arith.constant 0 : index
    %313 = vector.load %arg17[%c1_147, %c0_148, %c0_149] : memref<2x1x32xf32, #tpu.memory_space<vmem>>, vector<1x1x32xf32>
    %314 = vector.shape_cast %313 : vector<1x1x32xf32> to vector<1x32xf32>
    %c1_150 = arith.constant 1 : index
    %c0_151 = arith.constant 0 : index
    %c0_152 = arith.constant 0 : index
    %315 = vector.load %arg18[%c1_150, %c0_151, %c0_152] : memref<2x1x32xf32, #tpu.memory_space<vmem>>, vector<1x1x32xf32>
    %316 = vector.shape_cast %315 : vector<1x1x32xf32> to vector<1x32xf32>
    %cst_153 = arith.constant dense<0.000000e+00> : vector<8xf32>
    %317 = vector.multi_reduction <add>, %312, %cst_153 [1] : vector<8x32xf32> to vector<8xf32>
    %318 = vector.shape_cast %317 : vector<8xf32> to vector<8x1xf32>
    %cst_154 = arith.constant 3.200000e+01 : f32
    %319 = vector.broadcast %cst_154 : f32 to vector<8x1xf32>
    %320 = arith.divf %318, %319 : vector<8x1xf32>
    %321 = vector.broadcast %320 : vector<8x1xf32> to vector<8x32xf32>
    %322 = arith.subf %312, %321 : vector<8x32xf32>
    %323 = arith.mulf %322, %322 : vector<8x32xf32>
    %cst_155 = arith.constant dense<0.000000e+00> : vector<8xf32>
    %324 = vector.multi_reduction <add>, %323, %cst_155 [1] : vector<8x32xf32> to vector<8xf32>
    %325 = vector.shape_cast %324 : vector<8xf32> to vector<8x1xf32>
    %cst_156 = arith.constant 3.200000e+01 : f32
    %326 = vector.broadcast %cst_156 : f32 to vector<8x1xf32>
    %327 = arith.divf %325, %326 : vector<8x1xf32>
    %328 = vector.broadcast %320 : vector<8x1xf32> to vector<8x32xf32>
    %329 = arith.subf %312, %328 : vector<8x32xf32>
    %cst_157 = arith.constant 9.99999974E-6 : f32
    %330 = vector.broadcast %cst_157 : f32 to vector<8x1xf32>
    %331 = arith.addf %327, %330 : vector<8x1xf32>
    %332 = math.rsqrt %331 : vector<8x1xf32>
    %333 = vector.broadcast %332 : vector<8x1xf32> to vector<8x32xf32>
    %334 = arith.mulf %329, %333 : vector<8x32xf32>
    %335 = vector.broadcast %314 : vector<1x32xf32> to vector<8x32xf32>
    %336 = arith.mulf %334, %335 : vector<8x32xf32>
    %337 = vector.broadcast %316 : vector<1x32xf32> to vector<8x32xf32>
    %338 = arith.addf %336, %337 : vector<8x32xf32>
    %339 = vector.extract_strided_slice %338 {offsets = [7, 0], sizes = [1, 32], strides = [1, 1]} : vector<8x32xf32> to vector<1x32xf32>
    %c0_158 = arith.constant 0 : index
    %c0_159 = arith.constant 0 : index
    %340 = vector.load %arg5[%c0_158, %c0_159] : memref<32x5xf32, #tpu.memory_space<vmem>>, vector<32x5xf32>
    %cst_160 = arith.constant dense<0.000000e+00> : vector<1x5xf32>
    %341 = tpu.matmul %339, %340, %cst_160 {dimension_numbers = #tpu.dot_dimension_numbers<[1], [0], [0], [1], [0, 0, 1, 1], [], []>} : vector<1x32xf32>, vector<32x5xf32>, vector<1x5xf32> -> vector<1x5xf32>
    %c0_161 = arith.constant 0 : index
    %c0_162 = arith.constant 0 : index
    %342 = vector.load %arg6[%c0_161, %c0_162] : memref<1x5xf32, #tpu.memory_space<vmem>>, vector<1x5xf32>
    %343 = arith.addf %341, %342 : vector<1x5xf32>
    %c0_163 = arith.constant 0 : index
    %c0_164 = arith.constant 0 : index
    %c0_165 = arith.constant 0 : index
    %344 = vector.load %arg19[%c0_163, %c0_164, %c0_165] : memref<1x1x5xf32, #tpu.memory_space<vmem>>, vector<1x1x5xf32>
    %345 = vector.shape_cast %344 : vector<1x1x5xf32> to vector<1x5xf32>
    %346 = vector.shape_cast %343 : vector<1x5xf32> to vector<1x1x5xf32>
    tpu.vector_store %arg19[%c0_163, %c0_164, %c0_165], %346 {strides = array<i32>} : memref<1x1x5xf32, #tpu.memory_space<vmem>>, vector<1x1x5xf32>,
    return
  }
  func.func @transform_0(%arg0: i32) -> (i32, i32, i32) {
    %c0_i32 = arith.constant 0 : i32
    %c0_i32_0 = arith.constant 0 : i32
    %c0_i32_1 = arith.constant 0 : i32
    return %arg0, %c0_i32, %c0_i32_0 : i32, i32, i32
  }
  func.func @transform_1(%arg0: i32) -> (i32, i32, i32) {
    %c0_i32 = arith.constant 0 : i32
    %c0_i32_0 = arith.constant 0 : i32
    %c0_i32_1 = arith.constant 0 : i32
    return %arg0, %c0_i32, %c0_i32_0 : i32, i32, i32
  }
  func.func @transform_2(%arg0: i32) -> (i32, i32) {
    %c0_i32 = arith.constant 0 : i32
    %c0_i32_0 = arith.constant 0 : i32
    %c0_i32_1 = arith.constant 0 : i32
    return %c0_i32, %c0_i32_0 : i32, i32
  }
  func.func @transform_3(%arg0: i32) -> (i32, i32) {
    %c0_i32 = arith.constant 0 : i32
    %c0_i32_0 = arith.constant 0 : i32
    %c0_i32_1 = arith.constant 0 : i32
    return %c0_i32, %c0_i32_0 : i32, i32
  }
  func.func @transform_4(%arg0: i32) -> (i32, i32) {
    %c0_i32 = arith.constant 0 : i32
    %c0_i32_0 = arith.constant 0 : i32
    %c0_i32_1 = arith.constant 0 : i32
    return %c0_i32, %c0_i32_0 : i32, i32
  }
  func.func @transform_5(%arg0: i32) -> (i32, i32) {
    %c0_i32 = arith.constant 0 : i32
    %c0_i32_0 = arith.constant 0 : i32
    %c0_i32_1 = arith.constant 0 : i32
    return %c0_i32, %c0_i32_0 : i32, i32
  }
  func.func @transform_6(%arg0: i32) -> (i32, i32, i32) {
    %c0_i32 = arith.constant 0 : i32
    %c0_i32_0 = arith.constant 0 : i32
    %c0_i32_1 = arith.constant 0 : i32
    %c0_i32_2 = arith.constant 0 : i32
    return %c0_i32, %c0_i32_0, %c0_i32_1 : i32, i32, i32
  }
  func.func @transform_7(%arg0: i32) -> (i32, i32, i32) {
    %c0_i32 = arith.constant 0 : i32
    %c0_i32_0 = arith.constant 0 : i32
    %c0_i32_1 = arith.constant 0 : i32
    %c0_i32_2 = arith.constant 0 : i32
    return %c0_i32, %c0_i32_0, %c0_i32_1 : i32, i32, i32
  }
  func.func @transform_8(%arg0: i32) -> (i32, i32, i32) {
    %c0_i32 = arith.constant 0 : i32
    %c0_i32_0 = arith.constant 0 : i32
    %c0_i32_1 = arith.constant 0 : i32
    %c0_i32_2 = arith.constant 0 : i32
    return %c0_i32, %c0_i32_0, %c0_i32_1 : i32, i32, i32
  }
  func.func @transform_9(%arg0: i32) -> (i32, i32, i32) {
    %c0_i32 = arith.constant 0 : i32
    %c0_i32_0 = arith.constant 0 : i32
    %c0_i32_1 = arith.constant 0 : i32
    %c0_i32_2 = arith.constant 0 : i32
    return %c0_i32, %c0_i32_0, %c0_i32_1 : i32, i32, i32
  }
  func.func @transform_10(%arg0: i32) -> (i32, i32, i32) {
    %c0_i32 = arith.constant 0 : i32
    %c0_i32_0 = arith.constant 0 : i32
    %c0_i32_1 = arith.constant 0 : i32
    %c0_i32_2 = arith.constant 0 : i32
    return %c0_i32, %c0_i32_0, %c0_i32_1 : i32, i32, i32
  }
  func.func @transform_11(%arg0: i32) -> (i32, i32, i32) {
    %c0_i32 = arith.constant 0 : i32
    %c0_i32_0 = arith.constant 0 : i32
    %c0_i32_1 = arith.constant 0 : i32
    %c0_i32_2 = arith.constant 0 : i32
    return %c0_i32, %c0_i32_0, %c0_i32_1 : i32, i32, i32
  }
  func.func @transform_12(%arg0: i32) -> (i32, i32, i32) {
    %c0_i32 = arith.constant 0 : i32
    %c0_i32_0 = arith.constant 0 : i32
    %c0_i32_1 = arith.constant 0 : i32
    %c0_i32_2 = arith.constant 0 : i32
    return %c0_i32, %c0_i32_0, %c0_i32_1 : i32, i32, i32
  }
  func.func @transform_13(%arg0: i32) -> (i32, i32, i32) {
    %c0_i32 = arith.constant 0 : i32
    %c0_i32_0 = arith.constant 0 : i32
    %c0_i32_1 = arith.constant 0 : i32
    %c0_i32_2 = arith.constant 0 : i32
    return %c0_i32, %c0_i32_0, %c0_i32_1 : i32, i32, i32
  }
  func.func @transform_14(%arg0: i32) -> (i32, i32, i32) {
    %c0_i32 = arith.constant 0 : i32
    %c0_i32_0 = arith.constant 0 : i32
    %c0_i32_1 = arith.constant 0 : i32
    %c0_i32_2 = arith.constant 0 : i32
    return %c0_i32, %c0_i32_0, %c0_i32_1 : i32, i32, i32
  }
  func.func @transform_15(%arg0: i32) -> (i32, i32, i32) {
    %c0_i32 = arith.constant 0 : i32
    %c0_i32_0 = arith.constant 0 : i32
    %c0_i32_1 = arith.constant 0 : i32
    %c0_i32_2 = arith.constant 0 : i32
    return %c0_i32, %c0_i32_0, %c0_i32_1 : i32, i32, i32
  }
  func.func @transform_16(%arg0: i32) -> (i32, i32, i32) {
    %c0_i32 = arith.constant 0 : i32
    %c0_i32_0 = arith.constant 0 : i32
    %c0_i32_1 = arith.constant 0 : i32
    %c0_i32_2 = arith.constant 0 : i32
    return %c0_i32, %c0_i32_0, %c0_i32_1 : i32, i32, i32
  }
  func.func @transform_17(%arg0: i32) -> (i32, i32, i32) {
    %c0_i32 = arith.constant 0 : i32
    %c0_i32_0 = arith.constant 0 : i32
    %c0_i32_1 = arith.constant 0 : i32
    %c0_i32_2 = arith.constant 0 : i32
    return %c0_i32, %c0_i32_0, %c0_i32_1 : i32, i32, i32
  }
  func.func @transform_18(%arg0: i32) -> (i32, i32, i32) {
    %c0_i32 = arith.constant 0 : i32
    %c0_i32_0 = arith.constant 0 : i32
    %c0_i32_1 = arith.constant 0 : i32
    return %arg0, %c0_i32, %c0_i32_0 : i32, i32, i32
  }
}

</mosaic_0001>

<llo_original>
// kernel: transformer_forward.1
$region0: #{transformer_forward.1}
  #allocation0 [shape = 'u32[]', space=smem, size = 0x4, offset = 0x4, fixed_abs, tag = 'smem constant byte address 0x4 - core index']
  #allocation1 [shape = 'u32[144,128]{1,0:T(1,128)}', space=vmem, size = 0x12000, scoped, tag = 'internal scratch']
  %s0 = inlined_call_operand.vmem [shape: f32[2,8,16], index: 0, kind: input, shape index: {}]
  %s1 = inlined_call_operand.vmem [shape: f32[2,1,32], index: 1, kind: input, shape index: {}]
  %s2 = inlined_call_operand.vmem [shape: f32[16,32], index: 2, kind: input, shape index: {}]
  %s3 = inlined_call_operand.vmem [shape: f32[1,32], index: 3, kind: input, shape index: {}]
  %s4 = inlined_call_operand.vmem [shape: f32[32,5], index: 4, kind: input, shape index: {}]
  %s5 = inlined_call_operand.vmem [shape: f32[1,5], index: 5, kind: input, shape index: {}]
  %s6 = inlined_call_operand.vmem [shape: f32[2,32,96], index: 6, kind: input, shape index: {}]
  %s7 = inlined_call_operand.vmem [shape: f32[2,1,96], index: 7, kind: input, shape index: {}]
  %s8 = inlined_call_operand.vmem [shape: f32[2,32,32], index: 8, kind: input, shape index: {}]
  %s9 = inlined_call_operand.vmem [shape: f32[2,1,32], index: 9, kind: input, shape index: {}]
  %s10 = inlined_call_operand.vmem [shape: f32[2,1,32], index: 10, kind: input, shape index: {}]
  %s11 = inlined_call_operand.vmem [shape: f32[2,1,32], index: 11, kind: input, shape index: {}]
  %s12 = inlined_call_operand.vmem [shape: f32[2,32,128], index: 12, kind: input, shape index: {}]
  %s13 = inlined_call_operand.vmem [shape: f32[2,1,128], index: 13, kind: input, shape index: {}]
  %s14 = inlined_call_operand.vmem [shape: f32[2,128,32], index: 14, kind: input, shape index: {}]
  %s15 = inlined_call_operand.vmem [shape: f32[2,1,32], index: 15, kind: input, shape index: {}]
  %s16 = inlined_call_operand.vmem [shape: f32[2,1,32], index: 16, kind: input, shape index: {}]
  %s17 = inlined_call_operand.vmem [shape: f32[2,1,32], index: 17, kind: input, shape index: {}]
  %s18 = inlined_call_operand.hbm [shape: f32[2,1,5], index: 18, kind: output, shape index: {}]
  %s19 = sld [smem:[#allocation0]]
  $region105: #{transformer_forward.1} parent=0
    _
  %s21 = ssub.s32 1, %s19
  %s22 = scalar_select 0, %s21, %s19
  $region1: #{transformer_forward.1} parent=0
    #allocation2 [shape = 'u8[1024]{0}', space=vmem, size = 0x400, scoped, tag = 'output window, operand 0']
    #allocation3 [shape = 's32[2]{0}', space=sflag, size = 0x8, scoped, tag = 'scoped memory for transformer_forward.1']
    %23 = vsyncpa [#allocation3], 0
    %s24 = scalar_lea.sflag [#allocation3], 1
    %25 = vsyncpa %s24, 0
    loop: start=0, step=1, limit=4
    $region2: #{transformer_forward.1} parent=1 // loop_pre_header
      _
    $region3: #{transformer_forward.1} parent=1 // loop_header
      %s27 = sphi 0, %s31
      %p28 = scmp.ge.s32.totalorder %s27, 4
      %s37 = sphi 0, %s39
      %s40 = sphi 0, %s37
      %s41 = sphi 0, %s40
      %s57 = sphi 0, %s41
      %s63 = sphi 0, %s65
      %s66 = sphi 0, %s63
      %s67 = sphi 0, %s66
      %s83 = sphi 0, %s67
      %s87 = sphi 0, %s87
      %s89 = sphi 0, %s87
      %s90 = sphi 0, %s89
      %s104 = sphi 0, %s90
      %s108 = sphi 0, %s108
      %s110 = sphi 0, %s108
      %s111 = sphi 0, %s110
      %s125 = sphi 0, %s111
      %s129 = sphi 0, %s129
      %s131 = sphi 0, %s129
      %s132 = sphi 0, %s131
      %s146 = sphi 0, %s132
      %s150 = sphi 0, %s150
      %s152 = sphi 0, %s150
      %s153 = sphi 0, %s152
      %s167 = sphi 0, %s153
      %s171 = sphi 0, %s171
      %s173 = sphi 0, %s171
      %s174 = sphi 0, %s173
      %s188 = sphi 0, %s174
      %s192 = sphi 0, %s192
      %s194 = sphi 0, %s192
      %s195 = sphi 0, %s194
      %s209 = sphi 0, %s195
      %s213 = sphi 0, %s213
      %s215 = sphi 0, %s213
      %s216 = sphi 0, %s215
      %s230 = sphi 0, %s216
      %s234 = sphi 0, %s234
      %s236 = sphi 0, %s234
      %s237 = sphi 0, %s236
      %s251 = sphi 0, %s237
      %s255 = sphi 0, %s255
      %s257 = sphi 0, %s255
      %s258 = sphi 0, %s257
      %s272 = sphi 0, %s258
      %s276 = sphi 0, %s276
      %s278 = sphi 0, %s276
      %s279 = sphi 0, %s278
      %s293 = sphi 0, %s279
      %s297 = sphi 0, %s297
      %s299 = sphi 0, %s297
      %s300 = sphi 0, %s299
      %s314 = sphi 0, %s300
      %s318 = sphi 0, %s318
      %s320 = sphi 0, %s318
      %s321 = sphi 0, %s320
      %s335 = sphi 0, %s321
      %s339 = sphi 0, %s339
      %s341 = sphi 0, %s339
      %s342 = sphi 0, %s341
      %s356 = sphi 0, %s342
      %s360 = sphi 0, %s360
      %s362 = sphi 0, %s360
      %s363 = sphi 0, %s362
      %s377 = sphi 0, %s363
      %s381 = sphi 0, %s381
      %s383 = sphi 0, %s381
      %s384 = sphi 0, %s383
      %s398 = sphi 0, %s384
      %s402 = sphi 0, %s402
      %s404 = sphi 0, %s402
      %s405 = sphi 0, %s404
      %s419 = sphi 0, %s405
      %s425 = sphi 0, %s427
      %s428 = sphi 0, %s425
      %s429 = sphi 0, %s428
      %s445 = sphi 0, %s429
    $region4: #{transformer_forward.1} parent=1 // loop_header_branch
      %30 = sbr.rel (%p28) target = $region8
    $region5: #{transformer_forward.1} parent=1 // loop_body
      %s32 = ssub.s32 %s27, 1
      %s33 = ssub.s32 %s27, 2
      %s34 = sadd.s32 %s27, 1
      %s35 = ssub.s32 %s27, %s34
      %p36 = scmp.eq.s32.totalorder %s35, 0
      %s38 = sadd.s32 %s37, 1
      %s39 = scalar_select %p36, %s37, %s38
      %p42 = pneg %p36
      %p43 = scmp.eq.s32.totalorder %s27, 1
      %p44 = por %p42, %p43
      %p45 = scmp.ne.s32.totalorder %s37, %s40
      %p46 = scmp.eq.s32.totalorder %s27, 0
      %p47 = por %p45, %p46
      %p48 = scmp.ne.s32.totalorder %s37, %s40
      %p49 = scmp.eq.s32.totalorder %s32, 1
      %p50 = por %p48, %p49
      %p51 = scmp.ne.s32.totalorder %s40, %s41
      %p52 = scmp.eq.s32.totalorder %s32, 0
      %p53 = por %p51, %p52
      %p54 = scmp.ne.s32.totalorder %s40, %s41
      %p55 = scmp.eq.s32.totalorder %s33, 1
      %p56 = por %p54, %p55
      %p58 = scmp.ne.s32.totalorder %s41, %s57
      %p59 = scmp.eq.s32.totalorder %s33, 0
      %p60 = por %p58, %p59
      %s61 = ssub.s32 %s27, %s34
      %p62 = scmp.eq.s32.totalorder %s61, 0
      %s64 = sadd.s32 %s63, 1
      %s65 = scalar_select %p62, %s63, %s64
      %p68 = pneg %p62
      %p69 = scmp.eq.s32.totalorder %s27, 1
      %p70 = por %p68, %p69
      %p71 = scmp.ne.s32.totalorder %s63, %s66
      %p72 = scmp.eq.s32.totalorder %s27, 0
      %p73 = por %p71, %p72
      %p74 = scmp.ne.s32.totalorder %s63, %s66
      %p75 = scmp.eq.s32.totalorder %s32, 1
      %p76 = por %p74, %p75
      %p77 = scmp.ne.s32.totalorder %s66, %s67
      %p78 = scmp.eq.s32.totalorder %s32, 0
      %p79 = por %p77, %p78
      %p80 = scmp.ne.s32.totalorder %s66, %s67
      %p81 = scmp.eq.s32.totalorder %s33, 1
      %p82 = por %p80, %p81
      %p84 = scmp.ne.s32.totalorder %s67, %s83
      %p85 = scmp.eq.s32.totalorder %s33, 0
      %p86 = por %p84, %p85
      %s88 = sadd.s32 %s87, 1
      %p91 = scmp.eq.s32.totalorder %s27, 1
      %p92 = scmp.ne.s32.totalorder %s87, %s89
      %p93 = scmp.eq.s32.totalorder %s27, 0
      %p94 = por %p92, %p93
      %p95 = scmp.ne.s32.totalorder %s87, %s89
      %p96 = scmp.eq.s32.totalorder %s32, 1
      %p97 = por %p95, %p96
      %p98 = scmp.ne.s32.totalorder %s89, %s90
      %p99 = scmp.eq.s32.totalorder %s32, 0
      %p100 = por %p98, %p99
      %p101 = scmp.ne.s32.totalorder %s89, %s90
      %p102 = scmp.eq.s32.totalorder %s33, 1
      %p103 = por %p101, %p102
      %p105 = scmp.ne.s32.totalorder %s90, %s104
      %p106 = scmp.eq.s32.totalorder %s33, 0
      %p107 = por %p105, %p106
      %s109 = sadd.s32 %s108, 1
      %p112 = scmp.eq.s32.totalorder %s27, 1
      %p113 = scmp.ne.s32.totalorder %s108, %s110
      %p114 = scmp.eq.s32.totalorder %s27, 0
      %p115 = por %p113, %p114
      %p116 = scmp.ne.s32.totalorder %s108, %s110
      %p117 = scmp.eq.s32.totalorder %s32, 1
      %p118 = por %p116, %p117
      %p119 = scmp.ne.s32.totalorder %s110, %s111
      %p120 = scmp.eq.s32.totalorder %s32, 0
      %p121 = por %p119, %p120
      %p122 = scmp.ne.s32.totalorder %s110, %s111
      %p123 = scmp.eq.s32.totalorder %s33, 1
      %p124 = por %p122, %p123
      %p126 = scmp.ne.s32.totalorder %s111, %s125
      %p127 = scmp.eq.s32.totalorder %s33, 0
      %p128 = por %p126, %p127
      %s130 = sadd.s32 %s129, 1
      %p133 = scmp.eq.s32.totalorder %s27, 1
      %p134 = scmp.ne.s32.totalorder %s129, %s131
      %p135 = scmp.eq.s32.totalorder %s27, 0
      %p136 = por %p134, %p135
      %p137 = scmp.ne.s32.totalorder %s129, %s131
      %p138 = scmp.eq.s32.totalorder %s32, 1
      %p139 = por %p137, %p138
      %p140 = scmp.ne.s32.totalorder %s131, %s132
      %p141 = scmp.eq.s32.totalorder %s32, 0
      %p142 = por %p140, %p141
      %p143 = scmp.ne.s32.totalorder %s131, %s132
      %p144 = scmp.eq.s32.totalorder %s33, 1
      %p145 = por %p143, %p144
      %p147 = scmp.ne.s32.totalorder %s132, %s146
      %p148 = scmp.eq.s32.totalorder %s33, 0
      %p149 = por %p147, %p148
      %s151 = sadd.s32 %s150, 1
      %p154 = scmp.eq.s32.totalorder %s27, 1
      %p155 = scmp.ne.s32.totalorder %s150, %s152
      %p156 = scmp.eq.s32.totalorder %s27, 0
      %p157 = por %p155, %p156
      %p158 = scmp.ne.s32.totalorder %s150, %s152
      %p159 = scmp.eq.s32.totalorder %s32, 1
      %p160 = por %p158, %p159
      %p161 = scmp.ne.s32.totalorder %s152, %s153
      %p162 = scmp.eq.s32.totalorder %s32, 0
      %p163 = por %p161, %p162
      %p164 = scmp.ne.s32.totalorder %s152, %s153
      %p165 = scmp.eq.s32.totalorder %s33, 1
      %p166 = por %p164, %p165
      %p168 = scmp.ne.s32.totalorder %s153, %s167
      %p169 = scmp.eq.s32.totalorder %s33, 0
      %p170 = por %p168, %p169
      %s172 = sadd.s32 %s171, 1
      %p175 = scmp.eq.s32.totalorder %s27, 1
      %p176 = scmp.ne.s32.totalorder %s171, %s173
      %p177 = scmp.eq.s32.totalorder %s27, 0
      %p178 = por %p176, %p177
      %p179 = scmp.ne.s32.totalorder %s171, %s173
      %p180 = scmp.eq.s32.totalorder %s32, 1
      %p181 = por %p179, %p180
      %p182 = scmp.ne.s32.totalorder %s173, %s174
      %p183 = scmp.eq.s32.totalorder %s32, 0
      %p184 = por %p182, %p183
      %p185 = scmp.ne.s32.totalorder %s173, %s174
      %p186 = scmp.eq.s32.totalorder %s33, 1
      %p187 = por %p185, %p186
      %p189 = scmp.ne.s32.totalorder %s174, %s188
      %p190 = scmp.eq.s32.totalorder %s33, 0
      %p191 = por %p189, %p190
      %s193 = sadd.s32 %s192, 1
      %p196 = scmp.eq.s32.totalorder %s27, 1
      %p197 = scmp.ne.s32.totalorder %s192, %s194
      %p198 = scmp.eq.s32.totalorder %s27, 0
      %p199 = por %p197, %p198
      %p200 = scmp.ne.s32.totalorder %s192, %s194
      %p201 = scmp.eq.s32.totalorder %s32, 1
      %p202 = por %p200, %p201
      %p203 = scmp.ne.s32.totalorder %s194, %s195
      %p204 = scmp.eq.s32.totalorder %s32, 0
      %p205 = por %p203, %p204
      %p206 = scmp.ne.s32.totalorder %s194, %s195
      %p207 = scmp.eq.s32.totalorder %s33, 1
      %p208 = por %p206, %p207
      %p210 = scmp.ne.s32.totalorder %s195, %s209
      %p211 = scmp.eq.s32.totalorder %s33, 0
      %p212 = por %p210, %p211
      %s214 = sadd.s32 %s213, 1
      %p217 = scmp.eq.s32.totalorder %s27, 1
      %p218 = scmp.ne.s32.totalorder %s213, %s215
      %p219 = scmp.eq.s32.totalorder %s27, 0
      %p220 = por %p218, %p219
      %p221 = scmp.ne.s32.totalorder %s213, %s215
      %p222 = scmp.eq.s32.totalorder %s32, 1
      %p223 = por %p221, %p222
      %p224 = scmp.ne.s32.totalorder %s215, %s216
      %p225 = scmp.eq.s32.totalorder %s32, 0
      %p226 = por %p224, %p225
      %p227 = scmp.ne.s32.totalorder %s215, %s216
      %p228 = scmp.eq.s32.totalorder %s33, 1
      %p229 = por %p227, %p228
      %p231 = scmp.ne.s32.totalorder %s216, %s230
      %p232 = scmp.eq.s32.totalorder %s33, 0
      %p233 = por %p231, %p232
      %s235 = sadd.s32 %s234, 1
      %p238 = scmp.eq.s32.totalorder %s27, 1
      %p239 = scmp.ne.s32.totalorder %s234, %s236
      %p240 = scmp.eq.s32.totalorder %s27, 0
      %p241 = por %p239, %p240
      %p242 = scmp.ne.s32.totalorder %s234, %s236
      %p243 = scmp.eq.s32.totalorder %s32, 1
      %p244 = por %p242, %p243
      %p245 = scmp.ne.s32.totalorder %s236, %s237
      %p246 = scmp.eq.s32.totalorder %s32, 0
      %p247 = por %p245, %p246
      %p248 = scmp.ne.s32.totalorder %s236, %s237
      %p249 = scmp.eq.s32.totalorder %s33, 1
      %p250 = por %p248, %p249
      %p252 = scmp.ne.s32.totalorder %s237, %s251
      %p253 = scmp.eq.s32.totalorder %s33, 0
      %p254 = por %p252, %p253
      %s256 = sadd.s32 %s255, 1
      %p259 = scmp.eq.s32.totalorder %s27, 1
      %p260 = scmp.ne.s32.totalorder %s255, %s257
      %p261 = scmp.eq.s32.totalorder %s27, 0
      %p262 = por %p260, %p261
      %p263 = scmp.ne.s32.totalorder %s255, %s257
      %p264 = scmp.eq.s32.totalorder %s32, 1
      %p265 = por %p263, %p264
      %p266 = scmp.ne.s32.totalorder %s257, %s258
      %p267 = scmp.eq.s32.totalorder %s32, 0
      %p268 = por %p266, %p267
      %p269 = scmp.ne.s32.totalorder %s257, %s258
      %p270 = scmp.eq.s32.totalorder %s33, 1
      %p271 = por %p269, %p270
      %p273 = scmp.ne.s32.totalorder %s258, %s272
      %p274 = scmp.eq.s32.totalorder %s33, 0
      %p275 = por %p273, %p274
      %s277 = sadd.s32 %s276, 1
      %p280 = scmp.eq.s32.totalorder %s27, 1
      %p281 = scmp.ne.s32.totalorder %s276, %s278
      %p282 = scmp.eq.s32.totalorder %s27, 0
      %p283 = por %p281, %p282
      %p284 = scmp.ne.s32.totalorder %s276, %s278
      %p285 = scmp.eq.s32.totalorder %s32, 1
      %p286 = por %p284, %p285
      %p287 = scmp.ne.s32.totalorder %s278, %s279
      %p288 = scmp.eq.s32.totalorder %s32, 0
      %p289 = por %p287, %p288
      %p290 = scmp.ne.s32.totalorder %s278, %s279
      %p291 = scmp.eq.s32.totalorder %s33, 1
      %p292 = por %p290, %p291
      %p294 = scmp.ne.s32.totalorder %s279, %s293
      %p295 = scmp.eq.s32.totalorder %s33, 0
      %p296 = por %p294, %p295
      %s298 = sadd.s32 %s297, 1
      %p301 = scmp.eq.s32.totalorder %s27, 1
      %p302 = scmp.ne.s32.totalorder %s297, %s299
      %p303 = scmp.eq.s32.totalorder %s27, 0
      %p304 = por %p302, %p303
      %p305 = scmp.ne.s32.totalorder %s297, %s299
      %p306 = scmp.eq.s32.totalorder %s32, 1
      %p307 = por %p305, %p306
      %p308 = scmp.ne.s32.totalorder %s299, %s300
      %p309 = scmp.eq.s32.totalorder %s32, 0
      %p310 = por %p308, %p309
      %p311 = scmp.ne.s32.totalorder %s299, %s300
      %p312 = scmp.eq.s32.totalorder %s33, 1
      %p313 = por %p311, %p312
      %p315 = scmp.ne.s32.totalorder %s300, %s314
      %p316 = scmp.eq.s32.totalorder %s33, 0
      %p317 = por %p315, %p316
      %s319 = sadd.s32 %s318, 1
      %p322 = scmp.eq.s32.totalorder %s27, 1
      %p323 = scmp.ne.s32.totalorder %s318, %s320
      %p324 = scmp.eq.s32.totalorder %s27, 0
      %p325 = por %p323, %p324
      %p326 = scmp.ne.s32.totalorder %s318, %s320
      %p327 = scmp.eq.s32.totalorder %s32, 1
      %p328 = por %p326, %p327
      %p329 = scmp.ne.s32.totalorder %s320, %s321
      %p330 = scmp.eq.s32.totalorder %s32, 0
      %p331 = por %p329, %p330
      %p332 = scmp.ne.s32.totalorder %s320, %s321
      %p333 = scmp.eq.s32.totalorder %s33, 1
      %p334 = por %p332, %p333
      %p336 = scmp.ne.s32.totalorder %s321, %s335
      %p337 = scmp.eq.s32.totalorder %s33, 0
      %p338 = por %p336, %p337
      %s340 = sadd.s32 %s339, 1
      %p343 = scmp.eq.s32.totalorder %s27, 1
      %p344 = scmp.ne.s32.totalorder %s339, %s341
      %p345 = scmp.eq.s32.totalorder %s27, 0
      %p346 = por %p344, %p345
      %p347 = scmp.ne.s32.totalorder %s339, %s341
      %p348 = scmp.eq.s32.totalorder %s32, 1
      %p349 = por %p347, %p348
      %p350 = scmp.ne.s32.totalorder %s341, %s342
      %p351 = scmp.eq.s32.totalorder %s32, 0
      %p352 = por %p350, %p351
      %p353 = scmp.ne.s32.totalorder %s341, %s342
      %p354 = scmp.eq.s32.totalorder %s33, 1
      %p355 = por %p353, %p354
      %p357 = scmp.ne.s32.totalorder %s342, %s356
      %p358 = scmp.eq.s32.totalorder %s33, 0
      %p359 = por %p357, %p358
      %s361 = sadd.s32 %s360, 1
      %p364 = scmp.eq.s32.totalorder %s27, 1
      %p365 = scmp.ne.s32.totalorder %s360, %s362
      %p366 = scmp.eq.s32.totalorder %s27, 0
      %p367 = por %p365, %p366
      %p368 = scmp.ne.s32.totalorder %s360, %s362
      %p369 = scmp.eq.s32.totalorder %s32, 1
      %p370 = por %p368, %p369
      %p371 = scmp.ne.s32.totalorder %s362, %s363
      %p372 = scmp.eq.s32.totalorder %s32, 0
      %p373 = por %p371, %p372
      %p374 = scmp.ne.s32.totalorder %s362, %s363
      %p375 = scmp.eq.s32.totalorder %s33, 1
      %p376 = por %p374, %p375
      %p378 = scmp.ne.s32.totalorder %s363, %s377
      %p379 = scmp.eq.s32.totalorder %s33, 0
      %p380 = por %p378, %p379
      %s382 = sadd.s32 %s381, 1
      %p385 = scmp.eq.s32.totalorder %s27, 1
      %p386 = scmp.ne.s32.totalorder %s381, %s383
      %p387 = scmp.eq.s32.totalorder %s27, 0
      %p388 = por %p386, %p387
      %p389 = scmp.ne.s32.totalorder %s381, %s383
      %p390 = scmp.eq.s32.totalorder %s32, 1
      %p391 = por %p389, %p390
      %p392 = scmp.ne.s32.totalorder %s383, %s384
      %p393 = scmp.eq.s32.totalorder %s32, 0
      %p394 = por %p392, %p393
      %p395 = scmp.ne.s32.totalorder %s383, %s384
      %p396 = scmp.eq.s32.totalorder %s33, 1
      %p397 = por %p395, %p396
      %p399 = scmp.ne.s32.totalorder %s384, %s398
      %p400 = scmp.eq.s32.totalorder %s33, 0
      %p401 = por %p399, %p400
      %s403 = sadd.s32 %s402, 1
      %p406 = scmp.eq.s32.totalorder %s27, 1
      %p407 = scmp.ne.s32.totalorder %s402, %s404
      %p408 = scmp.eq.s32.totalorder %s27, 0
      %p409 = por %p407, %p408
      %p410 = scmp.ne.s32.totalorder %s402, %s404
      %p411 = scmp.eq.s32.totalorder %s32, 1
      %p412 = por %p410, %p411
      %p413 = scmp.ne.s32.totalorder %s404, %s405
      %p414 = scmp.eq.s32.totalorder %s32, 0
      %p415 = por %p413, %p414
      %p416 = scmp.ne.s32.totalorder %s404, %s405
      %p417 = scmp.eq.s32.totalorder %s33, 1
      %p418 = por %p416, %p417
      %p420 = scmp.ne.s32.totalorder %s405, %s419
      %p421 = scmp.eq.s32.totalorder %s33, 0
      %p422 = por %p420, %p421
      %s423 = ssub.s32 %s27, %s34
      %p424 = scmp.eq.s32.totalorder %s423, 0
      %s426 = sadd.s32 %s425, 1
      %s427 = scalar_select %p424, %s425, %s426
      %p430 = pneg %p424
      %p431 = scmp.eq.s32.totalorder %s27, 1
      %p432 = por %p430, %p431
      %p433 = scmp.ne.s32.totalorder %s425, %s428
      %p434 = scmp.eq.s32.totalorder %s27, 0
      %p435 = por %p433, %p434
      %p436 = scmp.ne.s32.totalorder %s425, %s428
      %p437 = scmp.eq.s32.totalorder %s32, 1
      %p438 = por %p436, %p437
      %p439 = scmp.ne.s32.totalorder %s428, %s429
      %p440 = scmp.eq.s32.totalorder %s32, 0
      %p441 = por %p439, %p440
      %p442 = scmp.ne.s32.totalorder %s428, %s429
      %p443 = scmp.eq.s32.totalorder %s33, 1
      %p444 = por %p442, %p443
      %p446 = scmp.ne.s32.totalorder %s429, %s445
      %p447 = scmp.eq.s32.totalorder %s33, 0
      %p448 = por %p446, %p447
      %p449 = scmp.le.s32.totalorder 1, %s27
      %p450 = scmp.lt.s32.totalorder %s27, 3
      %p451 = pnand %p449, %p450
      %p452 = pneg %p451
      // Predicated region
      $region9: #{transformer_forward.1} parent=5 // pred_check
        _
      $region10: #{transformer_forward.1} parent=5 // pred_check_branch
        %454 = sbr.rel (%p451) target = $region12
      $region11: #{transformer_forward.1} parent=5 // pred_region
        %s455 = ssub.s32 %s27, 1
        // Predicated region
        $region13: #{transformer_forward.1} parent=11 // pred_check
          %p456 = pneg %p100
        $region14: #{transformer_forward.1} parent=11 // pred_check_branch
          %458 = sbr.rel (%p456) target = $region16
        $region15: #{transformer_forward.1} parent=11 // pred_region
          _
        $region16: #{transformer_forward.1} parent=11 // pred_fallthru
          _
        // Predicated region
        $region17: #{transformer_forward.1} parent=11 // pred_check
          %p459 = pneg %p121
        $region18: #{transformer_forward.1} parent=11 // pred_check_branch
          %461 = sbr.rel (%p459) target = $region20
        $region19: #{transformer_forward.1} parent=11 // pred_region
          _
        $region20: #{transformer_forward.1} parent=11 // pred_fallthru
          _
        // Predicated region
        $region21: #{transformer_forward.1} parent=11 // pred_check
          %p462 = pneg %p142
        $region22: #{transformer_forward.1} parent=11 // pred_check_branch
          %464 = sbr.rel (%p462) target = $region24
        $region23: #{transformer_forward.1} parent=11 // pred_region
          _
        $region24: #{transformer_forward.1} parent=11 // pred_fallthru
          _
        // Predicated region
        $region25: #{transformer_forward.1} parent=11 // pred_check
          %p465 = pneg %p163
        $region26: #{transformer_forward.1} parent=11 // pred_check_branch
          %467 = sbr.rel (%p465) target = $region28
        $region27: #{transformer_forward.1} parent=11 // pred_region
          _
        $region28: #{transformer_forward.1} parent=11 // pred_fallthru
          _
        // Predicated region
        $region29: #{transformer_forward.1} parent=11 // pred_check
          %p468 = pneg %p184
        $region30: #{transformer_forward.1} parent=11 // pred_check_branch
          %470 = sbr.rel (%p468) target = $region32
        $region31: #{transformer_forward.1} parent=11 // pred_region
          _
        $region32: #{transformer_forward.1} parent=11 // pred_fallthru
          _
        // Predicated region
        $region33: #{transformer_forward.1} parent=11 // pred_check
          %p471 = pneg %p205
        $region34: #{transformer_forward.1} parent=11 // pred_check_branch
          %473 = sbr.rel (%p471) target = $region36
        $region35: #{transformer_forward.1} parent=11 // pred_region
          _
        $region36: #{transformer_forward.1} parent=11 // pred_fallthru
          _
        // Predicated region
        $region37: #{transformer_forward.1} parent=11 // pred_check
          %p474 = pneg %p226
        $region38: #{transformer_forward.1} parent=11 // pred_check_branch
          %476 = sbr.rel (%p474) target = $region40
        $region39: #{transformer_forward.1} parent=11 // pred_region
          _
        $region40: #{transformer_forward.1} parent=11 // pred_fallthru
          _
        // Predicated region
        $region41: #{transformer_forward.1} parent=11 // pred_check
          %p477 = pneg %p247
        $region42: #{transformer_forward.1} parent=11 // pred_check_branch
          %479 = sbr.rel (%p477) target = $region44
        $region43: #{transformer_forward.1} parent=11 // pred_region
          _
        $region44: #{transformer_forward.1} parent=11 // pred_fallthru
          _
        // Predicated region
        $region45: #{transformer_forward.1} parent=11 // pred_check
          %p480 = pneg %p268
        $region46: #{transformer_forward.1} parent=11 // pred_check_branch
          %482 = sbr.rel (%p480) target = $region48
        $region47: #{transformer_forward.1} parent=11 // pred_region
          _
        $region48: #{transformer_forward.1} parent=11 // pred_fallthru
          _
        // Predicated region
        $region49: #{transformer_forward.1} parent=11 // pred_check
          %p483 = pneg %p289
        $region50: #{transformer_forward.1} parent=11 // pred_check_branch
          %485 = sbr.rel (%p483) target = $region52
        $region51: #{transformer_forward.1} parent=11 // pred_region
          _
        $region52: #{transformer_forward.1} parent=11 // pred_fallthru
          _
        // Predicated region
        $region53: #{transformer_forward.1} parent=11 // pred_check
          %p486 = pneg %p310
        $region54: #{transformer_forward.1} parent=11 // pred_check_branch
          %488 = sbr.rel (%p486) target = $region56
        $region55: #{transformer_forward.1} parent=11 // pred_region
          _
        $region56: #{transformer_forward.1} parent=11 // pred_fallthru
          _
        // Predicated region
        $region57: #{transformer_forward.1} parent=11 // pred_check
          %p489 = pneg %p331
        $region58: #{transformer_forward.1} parent=11 // pred_check_branch
          %491 = sbr.rel (%p489) target = $region60
        $region59: #{transformer_forward.1} parent=11 // pred_region
          _
        $region60: #{transformer_forward.1} parent=11 // pred_fallthru
          _
        // Predicated region
        $region61: #{transformer_forward.1} parent=11 // pred_check
          %p492 = pneg %p352
        $region62: #{transformer_forward.1} parent=11 // pred_check_branch
          %494 = sbr.rel (%p492) target = $region64
        $region63: #{transformer_forward.1} parent=11 // pred_region
          _
        $region64: #{transformer_forward.1} parent=11 // pred_fallthru
          _
        // Predicated region
        $region65: #{transformer_forward.1} parent=11 // pred_check
          %p495 = pneg %p373
        $region66: #{transformer_forward.1} parent=11 // pred_check_branch
          %497 = sbr.rel (%p495) target = $region68
        $region67: #{transformer_forward.1} parent=11 // pred_region
          _
        $region68: #{transformer_forward.1} parent=11 // pred_fallthru
          _
        // Predicated region
        $region69: #{transformer_forward.1} parent=11 // pred_check
          %p498 = pneg %p394
        $region70: #{transformer_forward.1} parent=11 // pred_check_branch
          %500 = sbr.rel (%p498) target = $region72
        $region71: #{transformer_forward.1} parent=11 // pred_region
          _
        $region72: #{transformer_forward.1} parent=11 // pred_fallthru
          _
        // Predicated region
        $region73: #{transformer_forward.1} parent=11 // pred_check
          %p501 = pneg %p415
        $region74: #{transformer_forward.1} parent=11 // pred_check_branch
          %503 = sbr.rel (%p501) target = $region76
        $region75: #{transformer_forward.1} parent=11 // pred_region
          _
        $region76: #{transformer_forward.1} parent=11 // pred_fallthru
          _
      $region12: #{transformer_forward.1} parent=5 // pred_fallthru
        _
      %p504 = scmp.lt.s32.totalorder %s27, 2
      // Predicated region
      $region77: #{transformer_forward.1} parent=5 // pred_check
        %p505 = pneg %p504
      $region78: #{transformer_forward.1} parent=5 // pred_check_branch
        %507 = sbr.rel (%p505) target = $region80
      $region79: #{transformer_forward.1} parent=5 // pred_region
        // Predicated region
        $region81: #{transformer_forward.1} parent=79 // pred_check
          %p508 = pneg %p47
        $region82: #{transformer_forward.1} parent=79 // pred_check_branch
          %510 = sbr.rel (%p508) target = $region84
        $region83: #{transformer_forward.1} parent=79 // pred_region
          %p511 = scmp.lt.s32.totalorder %s27, 1
          %s512 = scalar_select %p511, %s27, 1
          %s513 = smul.addr %s512, 8
          %s514 = scalar_lea.vmem %s0, %s513
        $region84: #{transformer_forward.1} parent=79 // pred_fallthru
          _
        // Predicated region
        $region85: #{transformer_forward.1} parent=79 // pred_check
          %p515 = pneg %p73
        $region86: #{transformer_forward.1} parent=79 // pred_check_branch
          %517 = sbr.rel (%p515) target = $region88
        $region87: #{transformer_forward.1} parent=79 // pred_region
          %p518 = scmp.lt.s32.totalorder %s27, 1
          %s519 = scalar_select %p518, %s27, 1
          %s520 = scalar_lea.vmem %s1, %s519
        $region88: #{transformer_forward.1} parent=79 // pred_fallthru
          _
      $region80: #{transformer_forward.1} parent=5 // pred_fallthru
        _
      %p521 = scmp.le.s32.totalorder 1, %s27
      %p522 = scmp.lt.s32.totalorder %s27, 3
      %p523 = pnand %p521, %p522
      %p524 = pneg %p523
      // Predicated region
      $region89: #{transformer_forward.1} parent=5 // pred_check
        _
      $region90: #{transformer_forward.1} parent=5 // pred_check_branch
        %526 = sbr.rel (%p523) target = $region92
      $region91: #{transformer_forward.1} parent=5 // pred_region
        %s527 = ssub.s32 %s27, 1
        %p528 = scmp.lt.s32.totalorder %s32, 1
        %s529 = scalar_select %p528, %s32, 1
        %s530 = smul.addr %s529, 8
        %s531 = scalar_lea.vmem %s0, %s530
        %p532 = pneg %p53
        %p533 = pneg %p50
        %p534 = scmp.lt.s32.totalorder %s32, 1
        %s535 = scalar_select %p534, %s32, 1
        %s536 = scalar_lea.vmem %s1, %s535
        %p537 = pneg %p79
        %p538 = pneg %p76
        %p539 = pneg %p100
        %p540 = pneg %p97
        %p541 = pneg %p121
        %p542 = pneg %p118
        %p543 = pneg %p142
        %p544 = pneg %p139
        %p545 = pneg %p163
        %p546 = pneg %p160
        %p547 = pneg %p184
        %p548 = pneg %p181
        %p549 = pneg %p205
        %p550 = pneg %p202
        %p551 = pneg %p226
        %p552 = pneg %p223
        %p553 = pneg %p247
        %p554 = pneg %p244
        %p555 = pneg %p268
        %p556 = pneg %p265
        %p557 = pneg %p289
        %p558 = pneg %p286
        %p559 = pneg %p310
        %p560 = pneg %p307
        %p561 = pneg %p331
        %p562 = pneg %p328
        %p563 = pneg %p352
        %p564 = pneg %p349
        %p565 = pneg %p373
        %p566 = pneg %p370
        %p567 = pneg %p394
        %p568 = pneg %p391
        %p569 = pneg %p415
        %p570 = pneg %p412
        %p571 = pneg %p441
        %p572 = pneg %p438
        %s573 = sand.u32 %s428, 1
        %s574 = scalar_lea.sflag [#allocation3], %s573
        %s575 = sand.u32 %s428, 1
        %s576 = scalar_lea.vmem [#allocation2], %s575
        %p577 = scmp.lt.s32.totalorder %s32, 1
        %s578 = scalar_select %p577, %s32, 1
        %s579 = smul.addr %s578, 8
        %s580 = scalar_lea.vmem %s0, %s579
        %p581 = scmp.lt.s32.totalorder %s32, 1
        %s582 = scalar_select %p581, %s32, 1
        %s583 = scalar_lea.vmem %s1, %s582
        %v584 = vld [vmem:[%s580] sm:$0xff]
        %v585 = vld [vmem:[%s2] sm:$0xff]
        %v586 = vld [vmem:[%s2 + $0x8] sm:$0xff]
        %v587 = vld [vmem:[%s3] sm:$0x1]
        %v589 = vlaneseq
        %v590 = vshrl.u32 %v589, 7
        %v591 = vsub.s32 0, %v590
        %v592 = vrot.slane %v587, %v591
        %vm594 = vcmask 130048
        %v596 = vsel %vm594, %v584, 0
        %598 = vmatprep.subr.mxu0 0.0
        %599 = vmatpush1.msra.mxu0 %v585
        %600 = vmatprep.subr.mxu0 0.0
        %601 = vmatpush1.msra.mxu0 %v586
        %602 = vmatprep.subr.mxu0 0.0
        %603 = vmatpush1.msra.mxu0 0.0
        %604 = vmatprep.subr.mxu0 0.0
        %605 = vmatpush1.msra.mxu0 0.0
        %606 = vmatprep.subr.mxu0 0.0
        %607 = vmatpush1.msra.mxu0 0.0
        %608 = vmatprep.subr.mxu0 0.0
        %609 = vmatpush1.msra.mxu0 0.0
        %610 = vmatprep.subr.mxu0 0.0
        %611 = vmatpush1.msra.mxu0 0.0
        %612 = vmatprep.subr.mxu0 0.0
        %613 = vmatpush1.msra.mxu0 0.0
        %614 = vmatprep.subr.mxu0 0.0
        %615 = vmatpush1.msra.mxu0 0.0
        %616 = vmatprep.subr.mxu0 0.0
        %617 = vmatpush1.msra.mxu0 0.0
        %618 = vmatprep.subr.mxu0 0.0
        %619 = vmatpush1.msra.mxu0 0.0
        %620 = vmatprep.subr.mxu0 0.0
        %621 = vmatpush1.msra.mxu0 0.0
        %622 = vmatprep.subr.mxu0 0.0
        %623 = vmatpush1.msra.mxu0 0.0
        %624 = vmatprep.subr.mxu0 0.0
        %625 = vmatpush1.msra.mxu0 0.0
        %626 = vmatprep.subr.mxu0 0.0
        %627 = vmatpush1.msra.mxu0 0.0
        %628 = vmatprep.subr.mxu0 0.0
        %629 = vmatpush1.msra.mxu0 0.0
        %630 = vmatprep.subr.mxu0 0.0
        %631 = vmatpush1.msra.mxu0 0.0
        %632 = vmatprep.subr.mxu0 0.0
        %633 = vmatpush1.msra.mxu0 0.0
        %634 = vmatprep.subr.mxu0 0.0
        %635 = vmatpush1.msra.mxu0 0.0
        %636 = vmatprep.subr.mxu0 0.0
        %637 = vmatpush1.msra.mxu0 0.0
        %638 = vmatprep.subr.mxu0 0.0
        %639 = vmatpush1.msra.mxu0 0.0
        %640 = vmatprep.subr.mxu0 0.0
        %641 = vmatpush1.msra.mxu0 0.0
        %642 = vmatprep.subr.mxu0 0.0
        %643 = vmatpush1.msra.mxu0 0.0
        %644 = vmatprep.subr.mxu0 0.0
        %645 = vmatpush1.msra.mxu0 0.0
        %646 = vmatprep.subr.mxu0 0.0
        %647 = vmatpush1.msra.mxu0 0.0
        %648 = vmatprep.subr.mxu0 0.0
        %649 = vmatpush1.msra.mxu0 0.0
        %650 = vmatprep.subr.mxu0 0.0
        %651 = vmatpush1.msra.mxu0 0.0
        %652 = vmatprep.subr.mxu0 0.0
        %653 = vmatpush1.msra.mxu0 0.0
        %654 = vmatprep.subr.mxu0 0.0
        %655 = vmatpush1.msra.mxu0 0.0
        %656 = vmatprep.subr.mxu0 0.0
        %657 = vmatpush1.msra.mxu0 0.0
        %658 = vmatprep.subr.mxu0 0.0
        %659 = vmatpush1.msra.mxu0 0.0
        %660 = vmatprep.subr.mxu0 0.0
        %661 = vmatpush1.msra.mxu0 0.0
        %662 = vmatprep.mubr.f32.mxu0 0.0
        %663 = vmatmul.mubr.f32.gmra.mrb[0].mxu0 %v596
        %v664 = vpop.f32.mrb[0].mxu0
        %v665 = vadd.f32 %v592, %v664
        %v666 = vpop.f32.mrb[0].mxu0
        %667 = vdwg.mxu0
        %v668 = vld [vmem:[%s583] sm:$0x1]
        %v670 = vlaneseq
        %v671 = vshrl.u32 %v670, 7
        %v672 = vsub.s32 0, %v671
        %v673 = vrot.slane %v668, %v672
        %v675 = vadd.f32 %v665, %v673
        %v676 = vld [vmem:[%s6] sm:$0xff]
        %v677 = vld [vmem:[%s6 + $0x8] sm:$0xff]
        %v678 = vld [vmem:[%s6 + $0x10] sm:$0xff]
        %v679 = vld [vmem:[%s6 + $0x18] sm:$0xff]
        %v680 = vld [vmem:[%s7] sm:$0x1]
        %v682 = vlaneseq
        %v683 = vshrl.u32 %v682, 7
        %v684 = vsub.s32 0, %v683
        %v685 = vrot.slane %v680, %v684
        %vm687 = vcmask 261120
        %v689 = vsel %vm687, %v675, 0
        %691 = vmatprep.subr.mxu0 0.0
        %692 = vmatpush1.msra.mxu0 %v676
        %693 = vmatprep.subr.mxu0 0.0
        %694 = vmatpush1.msra.mxu0 %v677
        %695 = vmatprep.subr.mxu0 0.0
        %696 = vmatpush1.msra.mxu0 %v678
        %697 = vmatprep.subr.mxu0 0.0
        %698 = vmatpush1.msra.mxu0 %v679
        %699 = vmatprep.subr.mxu0 0.0
        %700 = vmatpush1.msra.mxu0 0.0
        %701 = vmatprep.subr.mxu0 0.0
        %702 = vmatpush1.msra.mxu0 0.0
        %703 = vmatprep.subr.mxu0 0.0
        %704 = vmatpush1.msra.mxu0 0.0
        %705 = vmatprep.subr.mxu0 0.0
        %706 = vmatpush1.msra.mxu0 0.0
        %707 = vmatprep.subr.mxu0 0.0
        %708 = vmatpush1.msra.mxu0 0.0
        %709 = vmatprep.subr.mxu0 0.0
        %710 = vmatpush1.msra.mxu0 0.0
        %711 = vmatprep.subr.mxu0 0.0
        %712 = vmatpush1.msra.mxu0 0.0
        %713 = vmatprep.subr.mxu0 0.0
        %714 = vmatpush1.msra.mxu0 0.0
        %715 = vmatprep.subr.mxu0 0.0
        %716 = vmatpush1.msra.mxu0 0.0
        %717 = vmatprep.subr.mxu0 0.0
        %718 = vmatpush1.msra.mxu0 0.0
        %719 = vmatprep.subr.mxu0 0.0
        %720 = vmatpush1.msra.mxu0 0.0
        %721 = vmatprep.subr.mxu0 0.0
        %722 = vmatpush1.msra.mxu0 0.0
        %723 = vmatprep.subr.mxu0 0.0
        %724 = vmatpush1.msra.mxu0 0.0
        %725 = vmatprep.subr.mxu0 0.0
        %726 = vmatpush1.msra.mxu0 0.0
        %727 = vmatprep.subr.mxu0 0.0
        %728 = vmatpush1.msra.mxu0 0.0
        %729 = vmatprep.subr.mxu0 0.0
        %730 = vmatpush1.msra.mxu0 0.0
        %731 = vmatprep.subr.mxu0 0.0
        %732 = vmatpush1.msra.mxu0 0.0
        %733 = vmatprep.subr.mxu0 0.0
        %734 = vmatpush1.msra.mxu0 0.0
        %735 = vmatprep.subr.mxu0 0.0
        %736 = vmatpush1.msra.mxu0 0.0
        %737 = vmatprep.subr.mxu0 0.0
        %738 = vmatpush1.msra.mxu0 0.0
        %739 = vmatprep.subr.mxu0 0.0
        %740 = vmatpush1.msra.mxu0 0.0
        %741 = vmatprep.subr.mxu0 0.0
        %742 = vmatpush1.msra.mxu0 0.0
        %743 = vmatprep.subr.mxu0 0.0
        %744 = vmatpush1.msra.mxu0 0.0
        %745 = vmatprep.subr.mxu0 0.0
        %746 = vmatpush1.msra.mxu0 0.0
        %747 = vmatprep.subr.mxu0 0.0
        %748 = vmatpush1.msra.mxu0 0.0
        %749 = vmatprep.subr.mxu0 0.0
        %750 = vmatpush1.msra.mxu0 0.0
        %751 = vmatprep.subr.mxu0 0.0
        %752 = vmatpush1.msra.mxu0 0.0
        %753 = vmatprep.subr.mxu0 0.0
        %754 = vmatpush1.msra.mxu0 0.0
        %755 = vmatprep.mubr.f32.mxu0 0.0
        %756 = vmatmul.mubr.f32.gmra.mrb[0].mxu0 %v689
        %v757 = vpop.f32.mrb[0].mxu0
        %v758 = vadd.f32 %v685, %v757
        %v759 = vpop.f32.mrb[0].mxu0
        %760 = vdwg.mxu0
        %v761 = vld [vmem:[%s8] sm:$0xff]
        %v762 = vld [vmem:[%s8 + $0x8] sm:$0xff]
        %v763 = vld [vmem:[%s8 + $0x10] sm:$0xff]
        %v764 = vld [vmem:[%s8 + $0x18] sm:$0xff]
        %766 = vrot.lane.b32.xlu0 %v758, 96
        %v767 = vpop.permute.xlu0 %766
        %vm768 = vcmask 64512
        %v769 = vsel %vm768, %v758, 0
        %v771 = vsel %vm768, %v767, 0
        %773 = vmatprep.subr.mxu0 0.0
        %774 = vmatpush1.xpose.msra.mxu0 %v771
        %775 = vmatprep.subr.mxu0 0.0
        %776 = vmatpush1.xpose.msra.mxu0 0.0
        %777 = vmatprep.subr.mxu0 0.0
        %778 = vmatpush1.xpose.msra.mxu0 0.0
        %779 = vmatprep.subr.mxu0 0.0
        %780 = vmatpush1.xpose.msra.mxu0 0.0
        %781 = vmatprep.subr.mxu0 0.0
        %782 = vmatpush1.xpose.msra.mxu0 0.0
        %783 = vmatprep.subr.mxu0 0.0
        %784 = vmatpush1.xpose.msra.mxu0 0.0
        %785 = vmatprep.subr.mxu0 0.0
        %786 = vmatpush1.xpose.msra.mxu0 0.0
        %787 = vmatprep.subr.mxu0 0.0
        %788 = vmatpush1.xpose.msra.mxu0 0.0
        %789 = vmatprep.subr.mxu0 0.0
        %790 = vmatpush1.xpose.msra.mxu0 0.0
        %791 = vmatprep.subr.mxu0 0.0
        %792 = vmatpush1.xpose.msra.mxu0 0.0
        %793 = vmatprep.subr.mxu0 0.0
        %794 = vmatpush1.xpose.msra.mxu0 0.0
        %795 = vmatprep.subr.mxu0 0.0
        %796 = vmatpush1.xpose.msra.mxu0 0.0
        %797 = vmatprep.subr.mxu0 0.0
        %798 = vmatpush1.xpose.msra.mxu0 0.0
        %799 = vmatprep.subr.mxu0 0.0
        %800 = vmatpush1.xpose.msra.mxu0 0.0
        %801 = vmatprep.subr.mxu0 0.0
        %802 = vmatpush1.xpose.msra.mxu0 0.0
        %803 = vmatprep.subr.mxu0 0.0
        %804 = vmatpush1.xpose.msra.mxu0 0.0
        %805 = vmatprep.subr.mxu0 0.0
        %806 = vmatpush1.xpose.msra.mxu0 0.0
        %807 = vmatprep.subr.mxu0 0.0
        %808 = vmatpush1.xpose.msra.mxu0 0.0
        %809 = vmatprep.subr.mxu0 0.0
        %810 = vmatpush1.xpose.msra.mxu0 0.0
        %811 = vmatprep.subr.mxu0 0.0
        %812 = vmatpush1.xpose.msra.mxu0 0.0
        %813 = vmatprep.subr.mxu0 0.0
        %814 = vmatpush1.xpose.msra.mxu0 0.0
        %815 = vmatprep.subr.mxu0 0.0
        %816 = vmatpush1.xpose.msra.mxu0 0.0
        %817 = vmatprep.subr.mxu0 0.0
        %818 = vmatpush1.xpose.msra.mxu0 0.0
        %819 = vmatprep.subr.mxu0 0.0
        %820 = vmatpush1.xpose.msra.mxu0 0.0
        %821 = vmatprep.subr.mxu0 0.0
        %822 = vmatpush1.xpose.msra.mxu0 0.0
        %823 = vmatprep.subr.mxu0 0.0
        %824 = vmatpush1.xpose.msra.mxu0 0.0
        %825 = vmatprep.subr.mxu0 0.0
        %826 = vmatpush1.xpose.msra.mxu0 0.0
        %827 = vmatprep.subr.mxu0 0.0
        %828 = vmatpush1.xpose.msra.mxu0 0.0
        %829 = vmatprep.subr.mxu0 0.0
        %830 = vmatpush1.xpose.msra.mxu0 0.0
        %831 = vmatprep.subr.mxu0 0.0
        %832 = vmatpush1.xpose.msra.mxu0 0.0
        %833 = vmatprep.subr.mxu0 0.0
        %834 = vmatpush1.xpose.msra.mxu0 0.0
        %835 = vmatprep.subr.mxu0 0.0
        %836 = vmatpush1.xpose.msra.mxu0 0.0
        %837 = vmatprep.mubr.f32.mxu0 0.0
        %838 = vmatmul.mubr.f32.gmra.mrb[0].mxu0 %v769
        %v839 = vpop.f32.mrb[0].mxu0
        %v840 = vadd.f32 0.0, %v839
        %v841 = vpop.f32.mrb[0].mxu0
        %842 = vdwg.mxu0
        %v843 = vmul.f32 %v840, 0.35355338
        %v844 = vsel %vm768, %v843, -inf
        %845 = vmax.xlane.f32.xlu0 %v844
        %v846 = vpop.xlane.xlu0 %845
        %v847 = vsub.f32 %v843, %v846
        %v848 = vmul.f32 %v847, 1.442695
        %v849 = vpow.pop %v848
        %v850 = vsel %vm768, %v849, 0.0
        %851 = vadd.xlane.f32.xlu0 %v850
        %v852 = vpop.xlane.xlu0 %851
        %v853 = vrcp.pop %v852
        %v854 = vmul.f32 %v849, %v853
        %855 = vrot.lane.b32.xlu0 %v758, 64
        %v856 = vpop.permute.xlu0 %855
        %v859 = vsel %vm768, %v854, 0
        %861 = vmatprep.subr.mxu0 0.0
        %862 = vmatpush1.msra.mxu0 %v856
        %863 = vmatprep.subr.mxu0 0.0
        %864 = vmatpush1.msra.mxu0 0.0
        %865 = vmatprep.subr.mxu0 0.0
        %866 = vmatpush1.msra.mxu0 0.0
        %867 = vmatprep.subr.mxu0 0.0
        %868 = vmatpush1.msra.mxu0 0.0
        %869 = vmatprep.subr.mxu0 0.0
        %870 = vmatpush1.msra.mxu0 0.0
        %871 = vmatprep.subr.mxu0 0.0
        %872 = vmatpush1.msra.mxu0 0.0
        %873 = vmatprep.subr.mxu0 0.0
        %874 = vmatpush1.msra.mxu0 0.0
        %875 = vmatprep.subr.mxu0 0.0
        %876 = vmatpush1.msra.mxu0 0.0
        %877 = vmatprep.subr.mxu0 0.0
        %878 = vmatpush1.msra.mxu0 0.0
        %879 = vmatprep.subr.mxu0 0.0
        %880 = vmatpush1.msra.mxu0 0.0
        %881 = vmatprep.subr.mxu0 0.0
        %882 = vmatpush1.msra.mxu0 0.0
        %883 = vmatprep.subr.mxu0 0.0
        %884 = vmatpush1.msra.mxu0 0.0
        %885 = vmatprep.subr.mxu0 0.0
        %886 = vmatpush1.msra.mxu0 0.0
        %887 = vmatprep.subr.mxu0 0.0
        %888 = vmatpush1.msra.mxu0 0.0
        %889 = vmatprep.subr.mxu0 0.0
        %890 = vmatpush1.msra.mxu0 0.0
        %891 = vmatprep.subr.mxu0 0.0
        %892 = vmatpush1.msra.mxu0 0.0
        %893 = vmatprep.subr.mxu0 0.0
        %894 = vmatpush1.msra.mxu0 0.0
        %895 = vmatprep.subr.mxu0 0.0
        %896 = vmatpush1.msra.mxu0 0.0
        %897 = vmatprep.subr.mxu0 0.0
        %898 = vmatpush1.msra.mxu0 0.0
        %899 = vmatprep.subr.mxu0 0.0
        %900 = vmatpush1.msra.mxu0 0.0
        %901 = vmatprep.subr.mxu0 0.0
        %902 = vmatpush1.msra.mxu0 0.0
        %903 = vmatprep.subr.mxu0 0.0
        %904 = vmatpush1.msra.mxu0 0.0
        %905 = vmatprep.subr.mxu0 0.0
        %906 = vmatpush1.msra.mxu0 0.0
        %907 = vmatprep.subr.mxu0 0.0
        %908 = vmatpush1.msra.mxu0 0.0
        %909 = vmatprep.subr.mxu0 0.0
        %910 = vmatpush1.msra.mxu0 0.0
        %911 = vmatprep.subr.mxu0 0.0
        %912 = vmatpush1.msra.mxu0 0.0
        %913 = vmatprep.subr.mxu0 0.0
        %914 = vmatpush1.msra.mxu0 0.0
        %915 = vmatprep.subr.mxu0 0.0
        %916 = vmatpush1.msra.mxu0 0.0
        %917 = vmatprep.subr.mxu0 0.0
        %918 = vmatpush1.msra.mxu0 0.0
        %919 = vmatprep.subr.mxu0 0.0
        %920 = vmatpush1.msra.mxu0 0.0
        %921 = vmatprep.subr.mxu0 0.0
        %922 = vmatpush1.msra.mxu0 0.0
        %923 = vmatprep.subr.mxu0 0.0
        %924 = vmatpush1.msra.mxu0 0.0
        %925 = vmatprep.mubr.f32.mxu0 0.0
        %926 = vmatmul.mubr.f32.gmra.mrb[0].mxu0 %v859
        %v927 = vpop.f32.mrb[0].mxu0
        %v928 = vadd.f32 0.0, %v927
        %v929 = vpop.f32.mrb[0].mxu0
        %930 = vdwg.mxu0
        %931 = vrot.lane.b32.xlu0 %v758, 120
        %v932 = vpop.permute.xlu0 %931
        %933 = vrot.lane.b32.xlu0 %v758, 88
        %v934 = vpop.permute.xlu0 %933
        %v935 = vsel %vm768, %v932, 0
        %v937 = vsel %vm768, %v934, 0
        %939 = vmatprep.subr.mxu0 0.0
        %940 = vmatpush1.xpose.msra.mxu0 %v937
        %941 = vmatprep.subr.mxu0 0.0
        %942 = vmatpush1.xpose.msra.mxu0 0.0
        %943 = vmatprep.subr.mxu0 0.0
        %944 = vmatpush1.xpose.msra.mxu0 0.0
        %945 = vmatprep.subr.mxu0 0.0
        %946 = vmatpush1.xpose.msra.mxu0 0.0
        %947 = vmatprep.subr.mxu0 0.0
        %948 = vmatpush1.xpose.msra.mxu0 0.0
        %949 = vmatprep.subr.mxu0 0.0
        %950 = vmatpush1.xpose.msra.mxu0 0.0
        %951 = vmatprep.subr.mxu0 0.0
        %952 = vmatpush1.xpose.msra.mxu0 0.0
        %953 = vmatprep.subr.mxu0 0.0
        %954 = vmatpush1.xpose.msra.mxu0 0.0
        %955 = vmatprep.subr.mxu0 0.0
        %956 = vmatpush1.xpose.msra.mxu0 0.0
        %957 = vmatprep.subr.mxu0 0.0
        %958 = vmatpush1.xpose.msra.mxu0 0.0
        %959 = vmatprep.subr.mxu0 0.0
        %960 = vmatpush1.xpose.msra.mxu0 0.0
        %961 = vmatprep.subr.mxu0 0.0
        %962 = vmatpush1.xpose.msra.mxu0 0.0
        %963 = vmatprep.subr.mxu0 0.0
        %964 = vmatpush1.xpose.msra.mxu0 0.0
        %965 = vmatprep.subr.mxu0 0.0
        %966 = vmatpush1.xpose.msra.mxu0 0.0
        %967 = vmatprep.subr.mxu0 0.0
        %968 = vmatpush1.xpose.msra.mxu0 0.0
        %969 = vmatprep.subr.mxu0 0.0
        %970 = vmatpush1.xpose.msra.mxu0 0.0
        %971 = vmatprep.subr.mxu0 0.0
        %972 = vmatpush1.xpose.msra.mxu0 0.0
        %973 = vmatprep.subr.mxu0 0.0
        %974 = vmatpush1.xpose.msra.mxu0 0.0
        %975 = vmatprep.subr.mxu0 0.0
        %976 = vmatpush1.xpose.msra.mxu0 0.0
        %977 = vmatprep.subr.mxu0 0.0
        %978 = vmatpush1.xpose.msra.mxu0 0.0
        %979 = vmatprep.subr.mxu0 0.0
        %980 = vmatpush1.xpose.msra.mxu0 0.0
        %981 = vmatprep.subr.mxu0 0.0
        %982 = vmatpush1.xpose.msra.mxu0 0.0
        %983 = vmatprep.subr.mxu0 0.0
        %984 = vmatpush1.xpose.msra.mxu0 0.0
        %985 = vmatprep.subr.mxu0 0.0
        %986 = vmatpush1.xpose.msra.mxu0 0.0
        %987 = vmatprep.subr.mxu0 0.0
        %988 = vmatpush1.xpose.msra.mxu0 0.0
        %989 = vmatprep.subr.mxu0 0.0
        %990 = vmatpush1.xpose.msra.mxu0 0.0
        %991 = vmatprep.subr.mxu0 0.0
        %992 = vmatpush1.xpose.msra.mxu0 0.0
        %993 = vmatprep.subr.mxu0 0.0
        %994 = vmatpush1.xpose.msra.mxu0 0.0
        %995 = vmatprep.subr.mxu0 0.0
        %996 = vmatpush1.xpose.msra.mxu0 0.0
        %997 = vmatprep.subr.mxu0 0.0
        %998 = vmatpush1.xpose.msra.mxu0 0.0
        %999 = vmatprep.subr.mxu0 0.0
        %1000 = vmatpush1.xpose.msra.mxu0 0.0
        %1001 = vmatprep.subr.mxu0 0.0
        %1002 = vmatpush1.xpose.msra.mxu0 0.0
        %1003 = vmatprep.mubr.f32.mxu0 0.0
        %1004 = vmatmul.mubr.f32.gmra.mrb[0].mxu0 %v935
        %v1005 = vpop.f32.mrb[0].mxu0
        %v1006 = vadd.f32 0.0, %v1005
        %v1007 = vpop.f32.mrb[0].mxu0
        %1008 = vdwg.mxu0
        %v1009 = vmul.f32 %v1006, 0.35355338
        %v1010 = vsel %vm768, %v1009, -inf
        %1011 = vmax.xlane.f32.xlu0 %v1010
        %v1012 = vpop.xlane.xlu0 %1011
        %v1013 = vsub.f32 %v1009, %v1012
        %v1014 = vmul.f32 %v1013, 1.442695
        %v1015 = vpow.pop %v1014
        %v1016 = vsel %vm768, %v1015, 0.0
        %1017 = vadd.xlane.f32.xlu0 %v1016
        %v1018 = vpop.xlane.xlu0 %1017
        %v1019 = vrcp.pop %v1018
        %v1020 = vmul.f32 %v1015, %v1019
        %1021 = vrot.lane.b32.xlu0 %v758, 56
        %v1022 = vpop.permute.xlu0 %1021
        %v1025 = vsel %vm768, %v1020, 0
        %1027 = vmatprep.subr.mxu0 0.0
        %1028 = vmatpush1.msra.mxu0 %v1022
        %1029 = vmatprep.subr.mxu0 0.0
        %1030 = vmatpush1.msra.mxu0 0.0
        %1031 = vmatprep.subr.mxu0 0.0
        %1032 = vmatpush1.msra.mxu0 0.0
        %1033 = vmatprep.subr.mxu0 0.0
        %1034 = vmatpush1.msra.mxu0 0.0
        %1035 = vmatprep.subr.mxu0 0.0
        %1036 = vmatpush1.msra.mxu0 0.0
        %1037 = vmatprep.subr.mxu0 0.0
        %1038 = vmatpush1.msra.mxu0 0.0
        %1039 = vmatprep.subr.mxu0 0.0
        %1040 = vmatpush1.msra.mxu0 0.0
        %1041 = vmatprep.subr.mxu0 0.0
        %1042 = vmatpush1.msra.mxu0 0.0
        %1043 = vmatprep.subr.mxu0 0.0
        %1044 = vmatpush1.msra.mxu0 0.0
        %1045 = vmatprep.subr.mxu0 0.0
        %1046 = vmatpush1.msra.mxu0 0.0
        %1047 = vmatprep.subr.mxu0 0.0
        %1048 = vmatpush1.msra.mxu0 0.0
        %1049 = vmatprep.subr.mxu0 0.0
        %1050 = vmatpush1.msra.mxu0 0.0
        %1051 = vmatprep.subr.mxu0 0.0
        %1052 = vmatpush1.msra.mxu0 0.0
        %1053 = vmatprep.subr.mxu0 0.0
        %1054 = vmatpush1.msra.mxu0 0.0
        %1055 = vmatprep.subr.mxu0 0.0
        %1056 = vmatpush1.msra.mxu0 0.0
        %1057 = vmatprep.subr.mxu0 0.0
        %1058 = vmatpush1.msra.mxu0 0.0
        %1059 = vmatprep.subr.mxu0 0.0
        %1060 = vmatpush1.msra.mxu0 0.0
        %1061 = vmatprep.subr.mxu0 0.0
        %1062 = vmatpush1.msra.mxu0 0.0
        %1063 = vmatprep.subr.mxu0 0.0
        %1064 = vmatpush1.msra.mxu0 0.0
        %1065 = vmatprep.subr.mxu0 0.0
        %1066 = vmatpush1.msra.mxu0 0.0
        %1067 = vmatprep.subr.mxu0 0.0
        %1068 = vmatpush1.msra.mxu0 0.0
        %1069 = vmatprep.subr.mxu0 0.0
        %1070 = vmatpush1.msra.mxu0 0.0
        %1071 = vmatprep.subr.mxu0 0.0
        %1072 = vmatpush1.msra.mxu0 0.0
        %1073 = vmatprep.subr.mxu0 0.0
        %1074 = vmatpush1.msra.mxu0 0.0
        %1075 = vmatprep.subr.mxu0 0.0
        %1076 = vmatpush1.msra.mxu0 0.0
        %1077 = vmatprep.subr.mxu0 0.0
        %1078 = vmatpush1.msra.mxu0 0.0
        %1079 = vmatprep.subr.mxu0 0.0
        %1080 = vmatpush1.msra.mxu0 0.0
        %1081 = vmatprep.subr.mxu0 0.0
        %1082 = vmatpush1.msra.mxu0 0.0
        %1083 = vmatprep.subr.mxu0 0.0
        %1084 = vmatpush1.msra.mxu0 0.0
        %1085 = vmatprep.subr.mxu0 0.0
        %1086 = vmatpush1.msra.mxu0 0.0
        %1087 = vmatprep.subr.mxu0 0.0
        %1088 = vmatpush1.msra.mxu0 0.0
        %1089 = vmatprep.subr.mxu0 0.0
        %1090 = vmatpush1.msra.mxu0 0.0
        %1091 = vmatprep.mubr.f32.mxu0 0.0
        %1092 = vmatmul.mubr.f32.gmra.mrb[0].mxu0 %v1025
        %v1093 = vpop.f32.mrb[0].mxu0
        %v1094 = vadd.f32 0.0, %v1093
        %v1095 = vpop.f32.mrb[0].mxu0
        %1096 = vdwg.mxu0
        %v1098 = vsel %vm768, %v1094, 0
        %1100 = vmatprep.subr.mxu0 0.0
        %1101 = vmatpush1.msra.mxu0 %v762
        %1102 = vmatprep.subr.mxu0 0.0
        %1103 = vmatpush1.msra.mxu0 0.0
        %1104 = vmatprep.subr.mxu0 0.0
        %1105 = vmatpush1.msra.mxu0 0.0
        %1106 = vmatprep.subr.mxu0 0.0
        %1107 = vmatpush1.msra.mxu0 0.0
        %1108 = vmatprep.subr.mxu0 0.0
        %1109 = vmatpush1.msra.mxu0 0.0
        %1110 = vmatprep.subr.mxu0 0.0
        %1111 = vmatpush1.msra.mxu0 0.0
        %1112 = vmatprep.subr.mxu0 0.0
        %1113 = vmatpush1.msra.mxu0 0.0
        %1114 = vmatprep.subr.mxu0 0.0
        %1115 = vmatpush1.msra.mxu0 0.0
        %1116 = vmatprep.subr.mxu0 0.0
        %1117 = vmatpush1.msra.mxu0 0.0
        %1118 = vmatprep.subr.mxu0 0.0
        %1119 = vmatpush1.msra.mxu0 0.0
        %1120 = vmatprep.subr.mxu0 0.0
        %1121 = vmatpush1.msra.mxu0 0.0
        %1122 = vmatprep.subr.mxu0 0.0
        %1123 = vmatpush1.msra.mxu0 0.0
        %1124 = vmatprep.subr.mxu0 0.0
        %1125 = vmatpush1.msra.mxu0 0.0
        %1126 = vmatprep.subr.mxu0 0.0
        %1127 = vmatpush1.msra.mxu0 0.0
        %1128 = vmatprep.subr.mxu0 0.0
        %1129 = vmatpush1.msra.mxu0 0.0
        %1130 = vmatprep.subr.mxu0 0.0
        %1131 = vmatpush1.msra.mxu0 0.0
        %1132 = vmatprep.subr.mxu0 0.0
        %1133 = vmatpush1.msra.mxu0 0.0
        %1134 = vmatprep.subr.mxu0 0.0
        %1135 = vmatpush1.msra.mxu0 0.0
        %1136 = vmatprep.subr.mxu0 0.0
        %1137 = vmatpush1.msra.mxu0 0.0
        %1138 = vmatprep.subr.mxu0 0.0
        %1139 = vmatpush1.msra.mxu0 0.0
        %1140 = vmatprep.subr.mxu0 0.0
        %1141 = vmatpush1.msra.mxu0 0.0
        %1142 = vmatprep.subr.mxu0 0.0
        %1143 = vmatpush1.msra.mxu0 0.0
        %1144 = vmatprep.subr.mxu0 0.0
        %1145 = vmatpush1.msra.mxu0 0.0
        %1146 = vmatprep.subr.mxu0 0.0
        %1147 = vmatpush1.msra.mxu0 0.0
        %1148 = vmatprep.subr.mxu0 0.0
        %1149 = vmatpush1.msra.mxu0 0.0
        %1150 = vmatprep.subr.mxu0 0.0
        %1151 = vmatpush1.msra.mxu0 0.0
        %1152 = vmatprep.subr.mxu0 0.0
        %1153 = vmatpush1.msra.mxu0 0.0
        %1154 = vmatprep.subr.mxu0 0.0
        %1155 = vmatpush1.msra.mxu0 0.0
        %1156 = vmatprep.subr.mxu0 0.0
        %1157 = vmatpush1.msra.mxu0 0.0
        %1158 = vmatprep.subr.mxu0 0.0
        %1159 = vmatpush1.msra.mxu0 0.0
        %1160 = vmatprep.subr.mxu0 0.0
        %1161 = vmatpush1.msra.mxu0 0.0
        %1162 = vmatprep.subr.mxu0 0.0
        %1163 = vmatpush1.msra.mxu0 0.0
        %1164 = vmatprep.mubr.f32.mxu0 0.0
        %1165 = vmatmul.mubr.f32.gmra.mrb[0].mxu0 %v1098
        %v1166 = vpop.f32.mrb[0].mxu0
        %v1167 = vadd.f32 0.0, %v1166
        %v1168 = vpop.f32.mrb[0].mxu0
        %1169 = vdwg.mxu0
        %v1171 = vsel %vm768, %v928, 0
        %1173 = vmatprep.subr.mxu0 0.0
        %1174 = vmatpush1.msra.mxu0 %v761
        %1175 = vmatprep.subr.mxu0 0.0
        %1176 = vmatpush1.msra.mxu0 0.0
        %1177 = vmatprep.subr.mxu0 0.0
        %1178 = vmatpush1.msra.mxu0 0.0
        %1179 = vmatprep.subr.mxu0 0.0
        %1180 = vmatpush1.msra.mxu0 0.0
        %1181 = vmatprep.subr.mxu0 0.0
        %1182 = vmatpush1.msra.mxu0 0.0
        %1183 = vmatprep.subr.mxu0 0.0
        %1184 = vmatpush1.msra.mxu0 0.0
        %1185 = vmatprep.subr.mxu0 0.0
        %1186 = vmatpush1.msra.mxu0 0.0
        %1187 = vmatprep.subr.mxu0 0.0
        %1188 = vmatpush1.msra.mxu0 0.0
        %1189 = vmatprep.subr.mxu0 0.0
        %1190 = vmatpush1.msra.mxu0 0.0
        %1191 = vmatprep.subr.mxu0 0.0
        %1192 = vmatpush1.msra.mxu0 0.0
        %1193 = vmatprep.subr.mxu0 0.0
        %1194 = vmatpush1.msra.mxu0 0.0
        %1195 = vmatprep.subr.mxu0 0.0
        %1196 = vmatpush1.msra.mxu0 0.0
        %1197 = vmatprep.subr.mxu0 0.0
        %1198 = vmatpush1.msra.mxu0 0.0
        %1199 = vmatprep.subr.mxu0 0.0
        %1200 = vmatpush1.msra.mxu0 0.0
        %1201 = vmatprep.subr.mxu0 0.0
        %1202 = vmatpush1.msra.mxu0 0.0
        %1203 = vmatprep.subr.mxu0 0.0
        %1204 = vmatpush1.msra.mxu0 0.0
        %1205 = vmatprep.subr.mxu0 0.0
        %1206 = vmatpush1.msra.mxu0 0.0
        %1207 = vmatprep.subr.mxu0 0.0
        %1208 = vmatpush1.msra.mxu0 0.0
        %1209 = vmatprep.subr.mxu0 0.0
        %1210 = vmatpush1.msra.mxu0 0.0
        %1211 = vmatprep.subr.mxu0 0.0
        %1212 = vmatpush1.msra.mxu0 0.0
        %1213 = vmatprep.subr.mxu0 0.0
        %1214 = vmatpush1.msra.mxu0 0.0
        %1215 = vmatprep.subr.mxu0 0.0
        %1216 = vmatpush1.msra.mxu0 0.0
        %1217 = vmatprep.subr.mxu0 0.0
        %1218 = vmatpush1.msra.mxu0 0.0
        %1219 = vmatprep.subr.mxu0 0.0
        %1220 = vmatpush1.msra.mxu0 0.0
        %1221 = vmatprep.subr.mxu0 0.0
        %1222 = vmatpush1.msra.mxu0 0.0
        %1223 = vmatprep.subr.mxu0 0.0
        %1224 = vmatpush1.msra.mxu0 0.0
        %1225 = vmatprep.subr.mxu0 0.0
        %1226 = vmatpush1.msra.mxu0 0.0
        %1227 = vmatprep.subr.mxu0 0.0
        %1228 = vmatpush1.msra.mxu0 0.0
        %1229 = vmatprep.subr.mxu0 0.0
        %1230 = vmatpush1.msra.mxu0 0.0
        %1231 = vmatprep.subr.mxu0 0.0
        %1232 = vmatpush1.msra.mxu0 0.0
        %1233 = vmatprep.subr.mxu0 0.0
        %1234 = vmatpush1.msra.mxu0 0.0
        %1235 = vmatprep.subr.mxu0 0.0
        %1236 = vmatpush1.msra.mxu0 0.0
        %1237 = vmatprep.mubr.f32.mxu0 0.0
        %1238 = vmatmul.mubr.f32.gmra.mrb[0].mxu0 %v1171
        %v1239 = vpop.f32.mrb[0].mxu0
        %v1240 = vadd.f32 %v1167, %v1239
        %v1241 = vpop.f32.mrb[0].mxu0
        %1242 = vdwg.mxu0
        %1243 = vrot.lane.b32.xlu0 %v758, 112
        %v1244 = vpop.permute.xlu0 %1243
        %1245 = vrot.lane.b32.xlu0 %v758, 80
        %v1246 = vpop.permute.xlu0 %1245
        %v1247 = vsel %vm768, %v1244, 0
        %v1249 = vsel %vm768, %v1246, 0
        %1251 = vmatprep.subr.mxu0 0.0
        %1252 = vmatpush1.xpose.msra.mxu0 %v1249
        %1253 = vmatprep.subr.mxu0 0.0
        %1254 = vmatpush1.xpose.msra.mxu0 0.0
        %1255 = vmatprep.subr.mxu0 0.0
        %1256 = vmatpush1.xpose.msra.mxu0 0.0
        %1257 = vmatprep.subr.mxu0 0.0
        %1258 = vmatpush1.xpose.msra.mxu0 0.0
        %1259 = vmatprep.subr.mxu0 0.0
        %1260 = vmatpush1.xpose.msra.mxu0 0.0
        %1261 = vmatprep.subr.mxu0 0.0
        %1262 = vmatpush1.xpose.msra.mxu0 0.0
        %1263 = vmatprep.subr.mxu0 0.0
        %1264 = vmatpush1.xpose.msra.mxu0 0.0
        %1265 = vmatprep.subr.mxu0 0.0
        %1266 = vmatpush1.xpose.msra.mxu0 0.0
        %1267 = vmatprep.subr.mxu0 0.0
        %1268 = vmatpush1.xpose.msra.mxu0 0.0
        %1269 = vmatprep.subr.mxu0 0.0
        %1270 = vmatpush1.xpose.msra.mxu0 0.0
        %1271 = vmatprep.subr.mxu0 0.0
        %1272 = vmatpush1.xpose.msra.mxu0 0.0
        %1273 = vmatprep.subr.mxu0 0.0
        %1274 = vmatpush1.xpose.msra.mxu0 0.0
        %1275 = vmatprep.subr.mxu0 0.0
        %1276 = vmatpush1.xpose.msra.mxu0 0.0
        %1277 = vmatprep.subr.mxu0 0.0
        %1278 = vmatpush1.xpose.msra.mxu0 0.0
        %1279 = vmatprep.subr.mxu0 0.0
        %1280 = vmatpush1.xpose.msra.mxu0 0.0
        %1281 = vmatprep.subr.mxu0 0.0
        %1282 = vmatpush1.xpose.msra.mxu0 0.0
        %1283 = vmatprep.subr.mxu0 0.0
        %1284 = vmatpush1.xpose.msra.mxu0 0.0
        %1285 = vmatprep.subr.mxu0 0.0
        %1286 = vmatpush1.xpose.msra.mxu0 0.0
        %1287 = vmatprep.subr.mxu0 0.0
        %1288 = vmatpush1.xpose.msra.mxu0 0.0
        %1289 = vmatprep.subr.mxu0 0.0
        %1290 = vmatpush1.xpose.msra.mxu0 0.0
        %1291 = vmatprep.subr.mxu0 0.0
        %1292 = vmatpush1.xpose.msra.mxu0 0.0
        %1293 = vmatprep.subr.mxu0 0.0
        %1294 = vmatpush1.xpose.msra.mxu0 0.0
        %1295 = vmatprep.subr.mxu0 0.0
        %1296 = vmatpush1.xpose.msra.mxu0 0.0
        %1297 = vmatprep.subr.mxu0 0.0
        %1298 = vmatpush1.xpose.msra.mxu0 0.0
        %1299 = vmatprep.subr.mxu0 0.0
        %1300 = vmatpush1.xpose.msra.mxu0 0.0
        %1301 = vmatprep.subr.mxu0 0.0
        %1302 = vmatpush1.xpose.msra.mxu0 0.0
        %1303 = vmatprep.subr.mxu0 0.0
        %1304 = vmatpush1.xpose.msra.mxu0 0.0
        %1305 = vmatprep.subr.mxu0 0.0
        %1306 = vmatpush1.xpose.msra.mxu0 0.0
        %1307 = vmatprep.subr.mxu0 0.0
        %1308 = vmatpush1.xpose.msra.mxu0 0.0
        %1309 = vmatprep.subr.mxu0 0.0
        %1310 = vmatpush1.xpose.msra.mxu0 0.0
        %1311 = vmatprep.subr.mxu0 0.0
        %1312 = vmatpush1.xpose.msra.mxu0 0.0
        %1313 = vmatprep.subr.mxu0 0.0
        %1314 = vmatpush1.xpose.msra.mxu0 0.0
        %1315 = vmatprep.mubr.f32.mxu0 0.0
        %1316 = vmatmul.mubr.f32.gmra.mrb[0].mxu0 %v1247
        %v1317 = vpop.f32.mrb[0].mxu0
        %v1318 = vadd.f32 0.0, %v1317
        %v1319 = vpop.f32.mrb[0].mxu0
        %1320 = vdwg.mxu0
        %v1321 = vmul.f32 %v1318, 0.35355338
        %v1322 = vsel %vm768, %v1321, -inf
        %1323 = vmax.xlane.f32.xlu0 %v1322
        %v1324 = vpop.xlane.xlu0 %1323
        %v1325 = vsub.f32 %v1321, %v1324
        %v1326 = vmul.f32 %v1325, 1.442695
        %v1327 = vpow.pop %v1326
        %v1328 = vsel %vm768, %v1327, 0.0
        %1329 = vadd.xlane.f32.xlu0 %v1328
        %v1330 = vpop.xlane.xlu0 %1329
        %v1331 = vrcp.pop %v1330
        %v1332 = vmul.f32 %v1327, %v1331
        %1333 = vrot.lane.b32.xlu0 %v758, 48
        %v1334 = vpop.permute.xlu0 %1333
        %v1337 = vsel %vm768, %v1332, 0
        %1339 = vmatprep.subr.mxu0 0.0
        %1340 = vmatpush1.msra.mxu0 %v1334
        %1341 = vmatprep.subr.mxu0 0.0
        %1342 = vmatpush1.msra.mxu0 0.0
        %1343 = vmatprep.subr.mxu0 0.0
        %1344 = vmatpush1.msra.mxu0 0.0
        %1345 = vmatprep.subr.mxu0 0.0
        %1346 = vmatpush1.msra.mxu0 0.0
        %1347 = vmatprep.subr.mxu0 0.0
        %1348 = vmatpush1.msra.mxu0 0.0
        %1349 = vmatprep.subr.mxu0 0.0
        %1350 = vmatpush1.msra.mxu0 0.0
        %1351 = vmatprep.subr.mxu0 0.0
        %1352 = vmatpush1.msra.mxu0 0.0
        %1353 = vmatprep.subr.mxu0 0.0
        %1354 = vmatpush1.msra.mxu0 0.0
        %1355 = vmatprep.subr.mxu0 0.0
        %1356 = vmatpush1.msra.mxu0 0.0
        %1357 = vmatprep.subr.mxu0 0.0
        %1358 = vmatpush1.msra.mxu0 0.0
        %1359 = vmatprep.subr.mxu0 0.0
        %1360 = vmatpush1.msra.mxu0 0.0
        %1361 = vmatprep.subr.mxu0 0.0
        %1362 = vmatpush1.msra.mxu0 0.0
        %1363 = vmatprep.subr.mxu0 0.0
        %1364 = vmatpush1.msra.mxu0 0.0
        %1365 = vmatprep.subr.mxu0 0.0
        %1366 = vmatpush1.msra.mxu0 0.0
        %1367 = vmatprep.subr.mxu0 0.0
        %1368 = vmatpush1.msra.mxu0 0.0
        %1369 = vmatprep.subr.mxu0 0.0
        %1370 = vmatpush1.msra.mxu0 0.0
        %1371 = vmatprep.subr.mxu0 0.0
        %1372 = vmatpush1.msra.mxu0 0.0
        %1373 = vmatprep.subr.mxu0 0.0
        %1374 = vmatpush1.msra.mxu0 0.0
        %1375 = vmatprep.subr.mxu0 0.0
        %1376 = vmatpush1.msra.mxu0 0.0
        %1377 = vmatprep.subr.mxu0 0.0
        %1378 = vmatpush1.msra.mxu0 0.0
        %1379 = vmatprep.subr.mxu0 0.0
        %1380 = vmatpush1.msra.mxu0 0.0
        %1381 = vmatprep.subr.mxu0 0.0
        %1382 = vmatpush1.msra.mxu0 0.0
        %1383 = vmatprep.subr.mxu0 0.0
        %1384 = vmatpush1.msra.mxu0 0.0
        %1385 = vmatprep.subr.mxu0 0.0
        %1386 = vmatpush1.msra.mxu0 0.0
        %1387 = vmatprep.subr.mxu0 0.0
        %1388 = vmatpush1.msra.mxu0 0.0
        %1389 = vmatprep.subr.mxu0 0.0
        %1390 = vmatpush1.msra.mxu0 0.0
        %1391 = vmatprep.subr.mxu0 0.0
        %1392 = vmatpush1.msra.mxu0 0.0
        %1393 = vmatprep.subr.mxu0 0.0
        %1394 = vmatpush1.msra.mxu0 0.0
        %1395 = vmatprep.subr.mxu0 0.0
        %1396 = vmatpush1.msra.mxu0 0.0
        %1397 = vmatprep.subr.mxu0 0.0
        %1398 = vmatpush1.msra.mxu0 0.0
        %1399 = vmatprep.subr.mxu0 0.0
        %1400 = vmatpush1.msra.mxu0 0.0
        %1401 = vmatprep.subr.mxu0 0.0
        %1402 = vmatpush1.msra.mxu0 0.0
        %1403 = vmatprep.mubr.f32.mxu0 0.0
        %1404 = vmatmul.mubr.f32.gmra.mrb[0].mxu0 %v1337
        %v1405 = vpop.f32.mrb[0].mxu0
        %v1406 = vadd.f32 0.0, %v1405
        %v1407 = vpop.f32.mrb[0].mxu0
        %1408 = vdwg.mxu0
        %v1410 = vsel %vm768, %v1406, 0
        %1412 = vmatprep.subr.mxu0 0.0
        %1413 = vmatpush1.msra.mxu0 %v763
        %1414 = vmatprep.subr.mxu0 0.0
        %1415 = vmatpush1.msra.mxu0 0.0
        %1416 = vmatprep.subr.mxu0 0.0
        %1417 = vmatpush1.msra.mxu0 0.0
        %1418 = vmatprep.subr.mxu0 0.0
        %1419 = vmatpush1.msra.mxu0 0.0
        %1420 = vmatprep.subr.mxu0 0.0
        %1421 = vmatpush1.msra.mxu0 0.0
        %1422 = vmatprep.subr.mxu0 0.0
        %1423 = vmatpush1.msra.mxu0 0.0
        %1424 = vmatprep.subr.mxu0 0.0
        %1425 = vmatpush1.msra.mxu0 0.0
        %1426 = vmatprep.subr.mxu0 0.0
        %1427 = vmatpush1.msra.mxu0 0.0
        %1428 = vmatprep.subr.mxu0 0.0
        %1429 = vmatpush1.msra.mxu0 0.0
        %1430 = vmatprep.subr.mxu0 0.0
        %1431 = vmatpush1.msra.mxu0 0.0
        %1432 = vmatprep.subr.mxu0 0.0
        %1433 = vmatpush1.msra.mxu0 0.0
        %1434 = vmatprep.subr.mxu0 0.0
        %1435 = vmatpush1.msra.mxu0 0.0
        %1436 = vmatprep.subr.mxu0 0.0
        %1437 = vmatpush1.msra.mxu0 0.0
        %1438 = vmatprep.subr.mxu0 0.0
        %1439 = vmatpush1.msra.mxu0 0.0
        %1440 = vmatprep.subr.mxu0 0.0
        %1441 = vmatpush1.msra.mxu0 0.0
        %1442 = vmatprep.subr.mxu0 0.0
        %1443 = vmatpush1.msra.mxu0 0.0
        %1444 = vmatprep.subr.mxu0 0.0
        %1445 = vmatpush1.msra.mxu0 0.0
        %1446 = vmatprep.subr.mxu0 0.0
        %1447 = vmatpush1.msra.mxu0 0.0
        %1448 = vmatprep.subr.mxu0 0.0
        %1449 = vmatpush1.msra.mxu0 0.0
        %1450 = vmatprep.subr.mxu0 0.0
        %1451 = vmatpush1.msra.mxu0 0.0
        %1452 = vmatprep.subr.mxu0 0.0
        %1453 = vmatpush1.msra.mxu0 0.0
        %1454 = vmatprep.subr.mxu0 0.0
        %1455 = vmatpush1.msra.mxu0 0.0
        %1456 = vmatprep.subr.mxu0 0.0
        %1457 = vmatpush1.msra.mxu0 0.0
        %1458 = vmatprep.subr.mxu0 0.0
        %1459 = vmatpush1.msra.mxu0 0.0
        %1460 = vmatprep.subr.mxu0 0.0
        %1461 = vmatpush1.msra.mxu0 0.0
        %1462 = vmatprep.subr.mxu0 0.0
        %1463 = vmatpush1.msra.mxu0 0.0
        %1464 = vmatprep.subr.mxu0 0.0
        %1465 = vmatpush1.msra.mxu0 0.0
        %1466 = vmatprep.subr.mxu0 0.0
        %1467 = vmatpush1.msra.mxu0 0.0
        %1468 = vmatprep.subr.mxu0 0.0
        %1469 = vmatpush1.msra.mxu0 0.0
        %1470 = vmatprep.subr.mxu0 0.0
        %1471 = vmatpush1.msra.mxu0 0.0
        %1472 = vmatprep.subr.mxu0 0.0
        %1473 = vmatpush1.msra.mxu0 0.0
        %1474 = vmatprep.subr.mxu0 0.0
        %1475 = vmatpush1.msra.mxu0 0.0
        %1476 = vmatprep.mubr.f32.mxu0 0.0
        %1477 = vmatmul.mubr.f32.gmra.mrb[0].mxu0 %v1410
        %v1478 = vpop.f32.mrb[0].mxu0
        %v1479 = vadd.f32 0.0, %v1478
        %v1480 = vpop.f32.mrb[0].mxu0
        %1481 = vdwg.mxu0
        %v1482 = vadd.f32 %v1240, %v1479
        %1483 = vrot.lane.b32.xlu0 %v758, 104
        %v1484 = vpop.permute.xlu0 %1483
        %1485 = vrot.lane.b32.xlu0 %v758, 72
        %v1486 = vpop.permute.xlu0 %1485
        %v1487 = vsel %vm768, %v1484, 0
        %v1489 = vsel %vm768, %v1486, 0
        %1491 = vmatprep.subr.mxu0 0.0
        %1492 = vmatpush1.xpose.msra.mxu0 %v1489
        %1493 = vmatprep.subr.mxu0 0.0
        %1494 = vmatpush1.xpose.msra.mxu0 0.0
        %1495 = vmatprep.subr.mxu0 0.0
        %1496 = vmatpush1.xpose.msra.mxu0 0.0
        %1497 = vmatprep.subr.mxu0 0.0
        %1498 = vmatpush1.xpose.msra.mxu0 0.0
        %1499 = vmatprep.subr.mxu0 0.0
        %1500 = vmatpush1.xpose.msra.mxu0 0.0
        %1501 = vmatprep.subr.mxu0 0.0
        %1502 = vmatpush1.xpose.msra.mxu0 0.0
        %1503 = vmatprep.subr.mxu0 0.0
        %1504 = vmatpush1.xpose.msra.mxu0 0.0
        %1505 = vmatprep.subr.mxu0 0.0
        %1506 = vmatpush1.xpose.msra.mxu0 0.0
        %1507 = vmatprep.subr.mxu0 0.0
        %1508 = vmatpush1.xpose.msra.mxu0 0.0
        %1509 = vmatprep.subr.mxu0 0.0
        %1510 = vmatpush1.xpose.msra.mxu0 0.0
        %1511 = vmatprep.subr.mxu0 0.0
        %1512 = vmatpush1.xpose.msra.mxu0 0.0
        %1513 = vmatprep.subr.mxu0 0.0
        %1514 = vmatpush1.xpose.msra.mxu0 0.0
        %1515 = vmatprep.subr.mxu0 0.0
        %1516 = vmatpush1.xpose.msra.mxu0 0.0
        %1517 = vmatprep.subr.mxu0 0.0
        %1518 = vmatpush1.xpose.msra.mxu0 0.0
        %1519 = vmatprep.subr.mxu0 0.0
        %1520 = vmatpush1.xpose.msra.mxu0 0.0
        %1521 = vmatprep.subr.mxu0 0.0
        %1522 = vmatpush1.xpose.msra.mxu0 0.0
        %1523 = vmatprep.subr.mxu0 0.0
        %1524 = vmatpush1.xpose.msra.mxu0 0.0
        %1525 = vmatprep.subr.mxu0 0.0
        %1526 = vmatpush1.xpose.msra.mxu0 0.0
        %1527 = vmatprep.subr.mxu0 0.0
        %1528 = vmatpush1.xpose.msra.mxu0 0.0
        %1529 = vmatprep.subr.mxu0 0.0
        %1530 = vmatpush1.xpose.msra.mxu0 0.0
        %1531 = vmatprep.subr.mxu0 0.0
        %1532 = vmatpush1.xpose.msra.mxu0 0.0
        %1533 = vmatprep.subr.mxu0 0.0
        %1534 = vmatpush1.xpose.msra.mxu0 0.0
        %1535 = vmatprep.subr.mxu0 0.0
        %1536 = vmatpush1.xpose.msra.mxu0 0.0
        %1537 = vmatprep.subr.mxu0 0.0
        %1538 = vmatpush1.xpose.msra.mxu0 0.0
        %1539 = vmatprep.subr.mxu0 0.0
        %1540 = vmatpush1.xpose.msra.mxu0 0.0
        %1541 = vmatprep.subr.mxu0 0.0
        %1542 = vmatpush1.xpose.msra.mxu0 0.0
        %1543 = vmatprep.subr.mxu0 0.0
        %1544 = vmatpush1.xpose.msra.mxu0 0.0
        %1545 = vmatprep.subr.mxu0 0.0
        %1546 = vmatpush1.xpose.msra.mxu0 0.0
        %1547 = vmatprep.subr.mxu0 0.0
        %1548 = vmatpush1.xpose.msra.mxu0 0.0
        %1549 = vmatprep.subr.mxu0 0.0
        %1550 = vmatpush1.xpose.msra.mxu0 0.0
        %1551 = vmatprep.subr.mxu0 0.0
        %1552 = vmatpush1.xpose.msra.mxu0 0.0
        %1553 = vmatprep.subr.mxu0 0.0
        %1554 = vmatpush1.xpose.msra.mxu0 0.0
        %1555 = vmatprep.mubr.f32.mxu0 0.0
        %1556 = vmatmul.mubr.f32.gmra.mrb[0].mxu0 %v1487
        %v1557 = vpop.f32.mrb[0].mxu0
        %v1558 = vadd.f32 0.0, %v1557
        %v1559 = vpop.f32.mrb[0].mxu0
        %1560 = vdwg.mxu0
        %v1561 = vmul.f32 %v1558, 0.35355338
        %v1562 = vsel %vm768, %v1561, -inf
        %1563 = vmax.xlane.f32.xlu0 %v1562
        %v1564 = vpop.xlane.xlu0 %1563
        %v1565 = vsub.f32 %v1561, %v1564
        %v1566 = vmul.f32 %v1565, 1.442695
        %v1567 = vpow.pop %v1566
        %v1568 = vsel %vm768, %v1567, 0.0
        %1569 = vadd.xlane.f32.xlu0 %v1568
        %v1570 = vpop.xlane.xlu0 %1569
        %v1571 = vrcp.pop %v1570
        %v1572 = vmul.f32 %v1567, %v1571
        %1573 = vrot.lane.b32.xlu0 %v758, 40
        %v1574 = vpop.permute.xlu0 %1573
        %v1577 = vsel %vm768, %v1572, 0
        %1579 = vmatprep.subr.mxu0 0.0
        %1580 = vmatpush1.msra.mxu0 %v1574
        %1581 = vmatprep.subr.mxu0 0.0
        %1582 = vmatpush1.msra.mxu0 0.0
        %1583 = vmatprep.subr.mxu0 0.0
        %1584 = vmatpush1.msra.mxu0 0.0
        %1585 = vmatprep.subr.mxu0 0.0
        %1586 = vmatpush1.msra.mxu0 0.0
        %1587 = vmatprep.subr.mxu0 0.0
        %1588 = vmatpush1.msra.mxu0 0.0
        %1589 = vmatprep.subr.mxu0 0.0
        %1590 = vmatpush1.msra.mxu0 0.0
        %1591 = vmatprep.subr.mxu0 0.0
        %1592 = vmatpush1.msra.mxu0 0.0
        %1593 = vmatprep.subr.mxu0 0.0
        %1594 = vmatpush1.msra.mxu0 0.0
        %1595 = vmatprep.subr.mxu0 0.0
        %1596 = vmatpush1.msra.mxu0 0.0
        %1597 = vmatprep.subr.mxu0 0.0
        %1598 = vmatpush1.msra.mxu0 0.0
        %1599 = vmatprep.subr.mxu0 0.0
        %1600 = vmatpush1.msra.mxu0 0.0
        %1601 = vmatprep.subr.mxu0 0.0
        %1602 = vmatpush1.msra.mxu0 0.0
        %1603 = vmatprep.subr.mxu0 0.0
        %1604 = vmatpush1.msra.mxu0 0.0
        %1605 = vmatprep.subr.mxu0 0.0
        %1606 = vmatpush1.msra.mxu0 0.0
        %1607 = vmatprep.subr.mxu0 0.0
        %1608 = vmatpush1.msra.mxu0 0.0
        %1609 = vmatprep.subr.mxu0 0.0
        %1610 = vmatpush1.msra.mxu0 0.0
        %1611 = vmatprep.subr.mxu0 0.0
        %1612 = vmatpush1.msra.mxu0 0.0
        %1613 = vmatprep.subr.mxu0 0.0
        %1614 = vmatpush1.msra.mxu0 0.0
        %1615 = vmatprep.subr.mxu0 0.0
        %1616 = vmatpush1.msra.mxu0 0.0
        %1617 = vmatprep.subr.mxu0 0.0
        %1618 = vmatpush1.msra.mxu0 0.0
        %1619 = vmatprep.subr.mxu0 0.0
        %1620 = vmatpush1.msra.mxu0 0.0
        %1621 = vmatprep.subr.mxu0 0.0
        %1622 = vmatpush1.msra.mxu0 0.0
        %1623 = vmatprep.subr.mxu0 0.0
        %1624 = vmatpush1.msra.mxu0 0.0
        %1625 = vmatprep.subr.mxu0 0.0
        %1626 = vmatpush1.msra.mxu0 0.0
        %1627 = vmatprep.subr.mxu0 0.0
        %1628 = vmatpush1.msra.mxu0 0.0
        %1629 = vmatprep.subr.mxu0 0.0
        %1630 = vmatpush1.msra.mxu0 0.0
        %1631 = vmatprep.subr.mxu0 0.0
        %1632 = vmatpush1.msra.mxu0 0.0
        %1633 = vmatprep.subr.mxu0 0.0
        %1634 = vmatpush1.msra.mxu0 0.0
        %1635 = vmatprep.subr.mxu0 0.0
        %1636 = vmatpush1.msra.mxu0 0.0
        %1637 = vmatprep.subr.mxu0 0.0
        %1638 = vmatpush1.msra.mxu0 0.0
        %1639 = vmatprep.subr.mxu0 0.0
        %1640 = vmatpush1.msra.mxu0 0.0
        %1641 = vmatprep.subr.mxu0 0.0
        %1642 = vmatpush1.msra.mxu0 0.0
        %1643 = vmatprep.mubr.f32.mxu0 0.0
        %1644 = vmatmul.mubr.f32.gmra.mrb[0].mxu0 %v1577
        %v1645 = vpop.f32.mrb[0].mxu0
        %v1646 = vadd.f32 0.0, %v1645
        %v1647 = vpop.f32.mrb[0].mxu0
        %1648 = vdwg.mxu0
        %v1650 = vsel %vm768, %v1646, 0
        %1652 = vmatprep.subr.mxu0 0.0
        %1653 = vmatpush1.msra.mxu0 %v764
        %1654 = vmatprep.subr.mxu0 0.0
        %1655 = vmatpush1.msra.mxu0 0.0
        %1656 = vmatprep.subr.mxu0 0.0
        %1657 = vmatpush1.msra.mxu0 0.0
        %1658 = vmatprep.subr.mxu0 0.0
        %1659 = vmatpush1.msra.mxu0 0.0
        %1660 = vmatprep.subr.mxu0 0.0
        %1661 = vmatpush1.msra.mxu0 0.0
        %1662 = vmatprep.subr.mxu0 0.0
        %1663 = vmatpush1.msra.mxu0 0.0
        %1664 = vmatprep.subr.mxu0 0.0
        %1665 = vmatpush1.msra.mxu0 0.0
        %1666 = vmatprep.subr.mxu0 0.0
        %1667 = vmatpush1.msra.mxu0 0.0
        %1668 = vmatprep.subr.mxu0 0.0
        %1669 = vmatpush1.msra.mxu0 0.0
        %1670 = vmatprep.subr.mxu0 0.0
        %1671 = vmatpush1.msra.mxu0 0.0
        %1672 = vmatprep.subr.mxu0 0.0
        %1673 = vmatpush1.msra.mxu0 0.0
        %1674 = vmatprep.subr.mxu0 0.0
        %1675 = vmatpush1.msra.mxu0 0.0
        %1676 = vmatprep.subr.mxu0 0.0
        %1677 = vmatpush1.msra.mxu0 0.0
        %1678 = vmatprep.subr.mxu0 0.0
        %1679 = vmatpush1.msra.mxu0 0.0
        %1680 = vmatprep.subr.mxu0 0.0
        %1681 = vmatpush1.msra.mxu0 0.0
        %1682 = vmatprep.subr.mxu0 0.0
        %1683 = vmatpush1.msra.mxu0 0.0
        %1684 = vmatprep.subr.mxu0 0.0
        %1685 = vmatpush1.msra.mxu0 0.0
        %1686 = vmatprep.subr.mxu0 0.0
        %1687 = vmatpush1.msra.mxu0 0.0
        %1688 = vmatprep.subr.mxu0 0.0
        %1689 = vmatpush1.msra.mxu0 0.0
        %1690 = vmatprep.subr.mxu0 0.0
        %1691 = vmatpush1.msra.mxu0 0.0
        %1692 = vmatprep.subr.mxu0 0.0
        %1693 = vmatpush1.msra.mxu0 0.0
        %1694 = vmatprep.subr.mxu0 0.0
        %1695 = vmatpush1.msra.mxu0 0.0
        %1696 = vmatprep.subr.mxu0 0.0
        %1697 = vmatpush1.msra.mxu0 0.0
        %1698 = vmatprep.subr.mxu0 0.0
        %1699 = vmatpush1.msra.mxu0 0.0
        %1700 = vmatprep.subr.mxu0 0.0
        %1701 = vmatpush1.msra.mxu0 0.0
        %1702 = vmatprep.subr.mxu0 0.0
        %1703 = vmatpush1.msra.mxu0 0.0
        %1704 = vmatprep.subr.mxu0 0.0
        %1705 = vmatpush1.msra.mxu0 0.0
        %1706 = vmatprep.subr.mxu0 0.0
        %1707 = vmatpush1.msra.mxu0 0.0
        %1708 = vmatprep.subr.mxu0 0.0
        %1709 = vmatpush1.msra.mxu0 0.0
        %1710 = vmatprep.subr.mxu0 0.0
        %1711 = vmatpush1.msra.mxu0 0.0
        %1712 = vmatprep.subr.mxu0 0.0
        %1713 = vmatpush1.msra.mxu0 0.0
        %1714 = vmatprep.subr.mxu0 0.0
        %1715 = vmatpush1.msra.mxu0 0.0
        %1716 = vmatprep.mubr.f32.mxu0 0.0
        %1717 = vmatmul.mubr.f32.gmra.mrb[0].mxu0 %v1650
        %v1718 = vpop.f32.mrb[0].mxu0
        %v1719 = vadd.f32 0.0, %v1718
        %v1720 = vpop.f32.mrb[0].mxu0
        %1721 = vdwg.mxu0
        %v1722 = vadd.f32 %v1482, %v1719
        %v1723 = vld [vmem:[%s9] sm:$0x1]
        %v1725 = vlaneseq
        %v1726 = vshrl.u32 %v1725, 7
        %v1727 = vsub.s32 0, %v1726
        %v1728 = vrot.slane %v1723, %v1727
        %v1730 = vadd.f32 %v1722, %v1728
        %v1731 = vadd.f32 %v675, %v1730
        %v1732 = vld [vmem:[%s10] sm:$0x1]
        %v1733 = vld [vmem:[%s11] sm:$0x1]
        %v1734 = vsel %vm687, %v1731, 0.0
        %1735 = vadd.xlane.f32.xlu0 %v1734
        %v1736 = vpop.xlane.xlu0 %1735
        %v1737 = vrcp.pop 32.0
        %v1738 = vmul.f32 %v1736, %v1737
        %v1739 = vsub.f32 %v1731, %v1738
        %v1740 = vmul.f32 %v1739, %v1739
        %v1741 = vsel %vm687, %v1740, 0.0
        %1742 = vadd.xlane.f32.xlu0 %v1741
        %v1743 = vpop.xlane.xlu0 %1742
        %v1744 = vmul.f32 %v1743, %v1737
        %v1745 = vadd.f32 %v1744, 1e-05
        %v1746 = vrsqrt.pop %v1745
        %v1747 = vmul.f32 %v1739, %v1746
        %v1749 = vlaneseq
        %v1750 = vshrl.u32 %v1749, 7
        %v1751 = vsub.s32 0, %v1750
        %v1752 = vrot.slane %v1732, %v1751
        %v1754 = vmul.f32 %v1747, %v1752
        %v1756 = vlaneseq
        %v1757 = vshrl.u32 %v1756, 7
        %v1758 = vsub.s32 0, %v1757
        %v1759 = vrot.slane %v1733, %v1758
        %v1761 = vadd.f32 %v1754, %v1759
        %v1762 = vld [vmem:[%s12] sm:$0xff]
        %v1763 = vld [vmem:[%s12 + $0x8] sm:$0xff]
        %v1764 = vld [vmem:[%s12 + $0x10] sm:$0xff]
        %v1765 = vld [vmem:[%s12 + $0x18] sm:$0xff]
        %v1766 = vld [vmem:[%s13] sm:$0x1]
        %v1768 = vlaneseq
        %v1769 = vshrl.u32 %v1768, 7
        %v1770 = vsub.s32 0, %v1769
        %v1771 = vrot.slane %v1766, %v1770
        %v1774 = vsel %vm687, %v1761, 0
        %1776 = vmatprep.subr.mxu0 0.0
        %1777 = vmatpush1.msra.mxu0 %v1762
        %1778 = vmatprep.subr.mxu0 0.0
        %1779 = vmatpush1.msra.mxu0 %v1763
        %1780 = vmatprep.subr.mxu0 0.0
        %1781 = vmatpush1.msra.mxu0 %v1764
        %1782 = vmatprep.subr.mxu0 0.0
        %1783 = vmatpush1.msra.mxu0 %v1765
        %1784 = vmatprep.subr.mxu0 0.0
        %1785 = vmatpush1.msra.mxu0 0.0
        %1786 = vmatprep.subr.mxu0 0.0
        %1787 = vmatpush1.msra.mxu0 0.0
        %1788 = vmatprep.subr.mxu0 0.0
        %1789 = vmatpush1.msra.mxu0 0.0
        %1790 = vmatprep.subr.mxu0 0.0
        %1791 = vmatpush1.msra.mxu0 0.0
        %1792 = vmatprep.subr.mxu0 0.0
        %1793 = vmatpush1.msra.mxu0 0.0
        %1794 = vmatprep.subr.mxu0 0.0
        %1795 = vmatpush1.msra.mxu0 0.0
        %1796 = vmatprep.subr.mxu0 0.0
        %1797 = vmatpush1.msra.mxu0 0.0
        %1798 = vmatprep.subr.mxu0 0.0
        %1799 = vmatpush1.msra.mxu0 0.0
        %1800 = vmatprep.subr.mxu0 0.0
        %1801 = vmatpush1.msra.mxu0 0.0
        %1802 = vmatprep.subr.mxu0 0.0
        %1803 = vmatpush1.msra.mxu0 0.0
        %1804 = vmatprep.subr.mxu0 0.0
        %1805 = vmatpush1.msra.mxu0 0.0
        %1806 = vmatprep.subr.mxu0 0.0
        %1807 = vmatpush1.msra.mxu0 0.0
        %1808 = vmatprep.subr.mxu0 0.0
        %1809 = vmatpush1.msra.mxu0 0.0
        %1810 = vmatprep.subr.mxu0 0.0
        %1811 = vmatpush1.msra.mxu0 0.0
        %1812 = vmatprep.subr.mxu0 0.0
        %1813 = vmatpush1.msra.mxu0 0.0
        %1814 = vmatprep.subr.mxu0 0.0
        %1815 = vmatpush1.msra.mxu0 0.0
        %1816 = vmatprep.subr.mxu0 0.0
        %1817 = vmatpush1.msra.mxu0 0.0
        %1818 = vmatprep.subr.mxu0 0.0
        %1819 = vmatpush1.msra.mxu0 0.0
        %1820 = vmatprep.subr.mxu0 0.0
        %1821 = vmatpush1.msra.mxu0 0.0
        %1822 = vmatprep.subr.mxu0 0.0
        %1823 = vmatpush1.msra.mxu0 0.0
        %1824 = vmatprep.subr.mxu0 0.0
        %1825 = vmatpush1.msra.mxu0 0.0
        %1826 = vmatprep.subr.mxu0 0.0
        %1827 = vmatpush1.msra.mxu0 0.0
        %1828 = vmatprep.subr.mxu0 0.0
        %1829 = vmatpush1.msra.mxu0 0.0
        %1830 = vmatprep.subr.mxu0 0.0
        %1831 = vmatpush1.msra.mxu0 0.0
        %1832 = vmatprep.subr.mxu0 0.0
        %1833 = vmatpush1.msra.mxu0 0.0
        %1834 = vmatprep.subr.mxu0 0.0
        %1835 = vmatpush1.msra.mxu0 0.0
        %1836 = vmatprep.subr.mxu0 0.0
        %1837 = vmatpush1.msra.mxu0 0.0
        %1838 = vmatprep.subr.mxu0 0.0
        %1839 = vmatpush1.msra.mxu0 0.0
        %1840 = vmatprep.mubr.f32.mxu0 0.0
        %1841 = vmatmul.mubr.f32.gmra.mrb[0].mxu0 %v1774
        %v1842 = vpop.f32.mrb[0].mxu0
        %v1843 = vadd.f32 %v1771, %v1842
        %v1844 = vpop.f32.mrb[0].mxu0
        %1845 = vdwg.mxu0
        %v1846 = vmax.f32 %v1843, 0.0
        %v1847 = vld [vmem:[%s14] sm:$0xff]
        %v1848 = vld [vmem:[%s14 + $0x8] sm:$0xff]
        %v1849 = vld [vmem:[%s14 + $0x10] sm:$0xff]
        %v1850 = vld [vmem:[%s14 + $0x18] sm:$0xff]
        %v1851 = vld [vmem:[%s14 + $0x20] sm:$0xff]
        %v1852 = vld [vmem:[%s14 + $0x28] sm:$0xff]
        %v1853 = vld [vmem:[%s14 + $0x30] sm:$0xff]
        %v1854 = vld [vmem:[%s14 + $0x38] sm:$0xff]
        %v1855 = vld [vmem:[%s14 + $0x40] sm:$0xff]
        %v1856 = vld [vmem:[%s14 + $0x48] sm:$0xff]
        %v1857 = vld [vmem:[%s14 + $0x50] sm:$0xff]
        %v1858 = vld [vmem:[%s14 + $0x58] sm:$0xff]
        %v1859 = vld [vmem:[%s14 + $0x60] sm:$0xff]
        %v1860 = vld [vmem:[%s14 + $0x68] sm:$0xff]
        %v1861 = vld [vmem:[%s14 + $0x70] sm:$0xff]
        %v1862 = vld [vmem:[%s14 + $0x78] sm:$0xff]
        %v1863 = vld [vmem:[%s15] sm:$0x1]
        %v1865 = vlaneseq
        %v1866 = vshrl.u32 %v1865, 7
        %v1867 = vsub.s32 0, %v1866
        %v1868 = vrot.slane %v1863, %v1867
        %1870 = vmatprep.subr.mxu0 0.0
        %1871 = vmatpush1.msra.mxu0 %v1847
        %1872 = vmatprep.subr.mxu0 0.0
        %1873 = vmatpush1.msra.mxu0 %v1848
        %1874 = vmatprep.subr.mxu0 0.0
        %1875 = vmatpush1.msra.mxu0 %v1849
        %1876 = vmatprep.subr.mxu0 0.0
        %1877 = vmatpush1.msra.mxu0 %v1850
        %1878 = vmatprep.subr.mxu0 0.0
        %1879 = vmatpush1.msra.mxu0 %v1851
        %1880 = vmatprep.subr.mxu0 0.0
        %1881 = vmatpush1.msra.mxu0 %v1852
        %1882 = vmatprep.subr.mxu0 0.0
        %1883 = vmatpush1.msra.mxu0 %v1853
        %1884 = vmatprep.subr.mxu0 0.0
        %1885 = vmatpush1.msra.mxu0 %v1854
        %1886 = vmatprep.subr.mxu0 0.0
        %1887 = vmatpush1.msra.mxu0 %v1855
        %1888 = vmatprep.subr.mxu0 0.0
        %1889 = vmatpush1.msra.mxu0 %v1856
        %1890 = vmatprep.subr.mxu0 0.0
        %1891 = vmatpush1.msra.mxu0 %v1857
        %1892 = vmatprep.subr.mxu0 0.0
        %1893 = vmatpush1.msra.mxu0 %v1858
        %1894 = vmatprep.subr.mxu0 0.0
        %1895 = vmatpush1.msra.mxu0 %v1859
        %1896 = vmatprep.subr.mxu0 0.0
        %1897 = vmatpush1.msra.mxu0 %v1860
        %1898 = vmatprep.subr.mxu0 0.0
        %1899 = vmatpush1.msra.mxu0 %v1861
        %1900 = vmatprep.subr.mxu0 0.0
        %1901 = vmatpush1.msra.mxu0 %v1862
        %1902 = vmatprep.subr.mxu0 0.0
        %1903 = vmatpush1.msra.mxu0 0.0
        %1904 = vmatprep.subr.mxu0 0.0
        %1905 = vmatpush1.msra.mxu0 0.0
        %1906 = vmatprep.subr.mxu0 0.0
        %1907 = vmatpush1.msra.mxu0 0.0
        %1908 = vmatprep.subr.mxu0 0.0
        %1909 = vmatpush1.msra.mxu0 0.0
        %1910 = vmatprep.subr.mxu0 0.0
        %1911 = vmatpush1.msra.mxu0 0.0
        %1912 = vmatprep.subr.mxu0 0.0
        %1913 = vmatpush1.msra.mxu0 0.0
        %1914 = vmatprep.subr.mxu0 0.0
        %1915 = vmatpush1.msra.mxu0 0.0
        %1916 = vmatprep.subr.mxu0 0.0
        %1917 = vmatpush1.msra.mxu0 0.0
        %1918 = vmatprep.subr.mxu0 0.0
        %1919 = vmatpush1.msra.mxu0 0.0
        %1920 = vmatprep.subr.mxu0 0.0
        %1921 = vmatpush1.msra.mxu0 0.0
        %1922 = vmatprep.subr.mxu0 0.0
        %1923 = vmatpush1.msra.mxu0 0.0
        %1924 = vmatprep.subr.mxu0 0.0
        %1925 = vmatpush1.msra.mxu0 0.0
        %1926 = vmatprep.subr.mxu0 0.0
        %1927 = vmatpush1.msra.mxu0 0.0
        %1928 = vmatprep.subr.mxu0 0.0
        %1929 = vmatpush1.msra.mxu0 0.0
        %1930 = vmatprep.subr.mxu0 0.0
        %1931 = vmatpush1.msra.mxu0 0.0
        %1932 = vmatprep.subr.mxu0 0.0
        %1933 = vmatpush1.msra.mxu0 0.0
        %1934 = vmatprep.mubr.f32.mxu0 0.0
        %1935 = vmatmul.mubr.f32.gmra.mrb[0].mxu0 %v1846
        %v1936 = vpop.f32.mrb[0].mxu0
        %v1937 = vadd.f32 %v1868, %v1936
        %v1938 = vpop.f32.mrb[0].mxu0
        %1939 = vdwg.mxu0
        %v1940 = vadd.f32 %v1761, %v1937
        %v1941 = vld [vmem:[%s16] sm:$0x1]
        %v1942 = vld [vmem:[%s17] sm:$0x1]
        %v1943 = vsel %vm687, %v1940, 0.0
        %1944 = vadd.xlane.f32.xlu0 %v1943
        %v1945 = vpop.xlane.xlu0 %1944
        %v1946 = vmul.f32 %v1945, %v1737
        %v1947 = vsub.f32 %v1940, %v1946
        %v1948 = vmul.f32 %v1947, %v1947
        %v1949 = vsel %vm687, %v1948, 0.0
        %1950 = vadd.xlane.f32.xlu0 %v1949
        %v1951 = vpop.xlane.xlu0 %1950
        %v1952 = vmul.f32 %v1951, %v1737
        %v1953 = vadd.f32 %v1952, 1e-05
        %v1954 = vrsqrt.pop %v1953
        %v1955 = vmul.f32 %v1947, %v1954
        %v1957 = vlaneseq
        %v1958 = vshrl.u32 %v1957, 7
        %v1959 = vsub.s32 0, %v1958
        %v1960 = vrot.slane %v1941, %v1959
        %v1962 = vmul.f32 %v1955, %v1960
        %v1964 = vlaneseq
        %v1965 = vshrl.u32 %v1964, 7
        %v1966 = vsub.s32 0, %v1965
        %v1967 = vrot.slane %v1942, %v1966
        %v1969 = vadd.f32 %v1962, %v1967
        %s1970 = scalar_lea.vmem %s6, 32
        %v1971 = vld [vmem:[%s1970] sm:$0xff]
        %v1972 = vld [vmem:[%s1970 + $0x8] sm:$0xff]
        %v1973 = vld [vmem:[%s1970 + $0x10] sm:$0xff]
        %v1974 = vld [vmem:[%s1970 + $0x18] sm:$0xff]
        %s1975 = scalar_lea.vmem %s7, 1
        %v1976 = vld [vmem:[%s1975] sm:$0x1]
        %v1978 = vlaneseq
        %v1979 = vshrl.u32 %v1978, 7
        %v1980 = vsub.s32 0, %v1979
        %v1981 = vrot.slane %v1976, %v1980
        %v1984 = vsel %vm687, %v1969, 0
        %1986 = vmatprep.subr.mxu0 0.0
        %1987 = vmatpush1.msra.mxu0 %v1971
        %1988 = vmatprep.subr.mxu0 0.0
        %1989 = vmatpush1.msra.mxu0 %v1972
        %1990 = vmatprep.subr.mxu0 0.0
        %1991 = vmatpush1.msra.mxu0 %v1973
        %1992 = vmatprep.subr.mxu0 0.0
        %1993 = vmatpush1.msra.mxu0 %v1974
        %1994 = vmatprep.subr.mxu0 0.0
        %1995 = vmatpush1.msra.mxu0 0.0
        %1996 = vmatprep.subr.mxu0 0.0
        %1997 = vmatpush1.msra.mxu0 0.0
        %1998 = vmatprep.subr.mxu0 0.0
        %1999 = vmatpush1.msra.mxu0 0.0
        %2000 = vmatprep.subr.mxu0 0.0
        %2001 = vmatpush1.msra.mxu0 0.0
        %2002 = vmatprep.subr.mxu0 0.0
        %2003 = vmatpush1.msra.mxu0 0.0
        %2004 = vmatprep.subr.mxu0 0.0
        %2005 = vmatpush1.msra.mxu0 0.0
        %2006 = vmatprep.subr.mxu0 0.0
        %2007 = vmatpush1.msra.mxu0 0.0
        %2008 = vmatprep.subr.mxu0 0.0
        %2009 = vmatpush1.msra.mxu0 0.0
        %2010 = vmatprep.subr.mxu0 0.0
        %2011 = vmatpush1.msra.mxu0 0.0
        %2012 = vmatprep.subr.mxu0 0.0
        %2013 = vmatpush1.msra.mxu0 0.0
        %2014 = vmatprep.subr.mxu0 0.0
        %2015 = vmatpush1.msra.mxu0 0.0
        %2016 = vmatprep.subr.mxu0 0.0
        %2017 = vmatpush1.msra.mxu0 0.0
        %2018 = vmatprep.subr.mxu0 0.0
        %2019 = vmatpush1.msra.mxu0 0.0
        %2020 = vmatprep.subr.mxu0 0.0
        %2021 = vmatpush1.msra.mxu0 0.0
        %2022 = vmatprep.subr.mxu0 0.0
        %2023 = vmatpush1.msra.mxu0 0.0
        %2024 = vmatprep.subr.mxu0 0.0
        %2025 = vmatpush1.msra.mxu0 0.0
        %2026 = vmatprep.subr.mxu0 0.0
        %2027 = vmatpush1.msra.mxu0 0.0
        %2028 = vmatprep.subr.mxu0 0.0
        %2029 = vmatpush1.msra.mxu0 0.0
        %2030 = vmatprep.subr.mxu0 0.0
        %2031 = vmatpush1.msra.mxu0 0.0
        %2032 = vmatprep.subr.mxu0 0.0
        %2033 = vmatpush1.msra.mxu0 0.0
        %2034 = vmatprep.subr.mxu0 0.0
        %2035 = vmatpush1.msra.mxu0 0.0
        %2036 = vmatprep.subr.mxu0 0.0
        %2037 = vmatpush1.msra.mxu0 0.0
        %2038 = vmatprep.subr.mxu0 0.0
        %2039 = vmatpush1.msra.mxu0 0.0
        %2040 = vmatprep.subr.mxu0 0.0
        %2041 = vmatpush1.msra.mxu0 0.0
        %2042 = vmatprep.subr.mxu0 0.0
        %2043 = vmatpush1.msra.mxu0 0.0
        %2044 = vmatprep.subr.mxu0 0.0
        %2045 = vmatpush1.msra.mxu0 0.0
        %2046 = vmatprep.subr.mxu0 0.0
        %2047 = vmatpush1.msra.mxu0 0.0
        %2048 = vmatprep.subr.mxu0 0.0
        %2049 = vmatpush1.msra.mxu0 0.0
        %2050 = vmatprep.mubr.f32.mxu0 0.0
        %2051 = vmatmul.mubr.f32.gmra.mrb[0].mxu0 %v1984
        %v2052 = vpop.f32.mrb[0].mxu0
        %v2053 = vadd.f32 %v1981, %v2052
        %v2054 = vpop.f32.mrb[0].mxu0
        %2055 = vdwg.mxu0
        %s2056 = scalar_lea.vmem %s8, 32
        %v2057 = vld [vmem:[%s2056] sm:$0xff]
        %v2058 = vld [vmem:[%s2056 + $0x8] sm:$0xff]
        %v2059 = vld [vmem:[%s2056 + $0x10] sm:$0xff]
        %v2060 = vld [vmem:[%s2056 + $0x18] sm:$0xff]
        %2062 = vrot.lane.b32.xlu0 %v2053, 96
        %v2063 = vpop.permute.xlu0 %2062
        %v2064 = vsel %vm768, %v2053, 0
        %v2066 = vsel %vm768, %v2063, 0
        %2068 = vmatprep.subr.mxu0 0.0
        %2069 = vmatpush1.xpose.msra.mxu0 %v2066
        %2070 = vmatprep.subr.mxu0 0.0
        %2071 = vmatpush1.xpose.msra.mxu0 0.0
        %2072 = vmatprep.subr.mxu0 0.0
        %2073 = vmatpush1.xpose.msra.mxu0 0.0
        %2074 = vmatprep.subr.mxu0 0.0
        %2075 = vmatpush1.xpose.msra.mxu0 0.0
        %2076 = vmatprep.subr.mxu0 0.0
        %2077 = vmatpush1.xpose.msra.mxu0 0.0
        %2078 = vmatprep.subr.mxu0 0.0
        %2079 = vmatpush1.xpose.msra.mxu0 0.0
        %2080 = vmatprep.subr.mxu0 0.0
        %2081 = vmatpush1.xpose.msra.mxu0 0.0
        %2082 = vmatprep.subr.mxu0 0.0
        %2083 = vmatpush1.xpose.msra.mxu0 0.0
        %2084 = vmatprep.subr.mxu0 0.0
        %2085 = vmatpush1.xpose.msra.mxu0 0.0
        %2086 = vmatprep.subr.mxu0 0.0
        %2087 = vmatpush1.xpose.msra.mxu0 0.0
        %2088 = vmatprep.subr.mxu0 0.0
        %2089 = vmatpush1.xpose.msra.mxu0 0.0
        %2090 = vmatprep.subr.mxu0 0.0
        %2091 = vmatpush1.xpose.msra.mxu0 0.0
        %2092 = vmatprep.subr.mxu0 0.0
        %2093 = vmatpush1.xpose.msra.mxu0 0.0
        %2094 = vmatprep.subr.mxu0 0.0
        %2095 = vmatpush1.xpose.msra.mxu0 0.0
        %2096 = vmatprep.subr.mxu0 0.0
        %2097 = vmatpush1.xpose.msra.mxu0 0.0
        %2098 = vmatprep.subr.mxu0 0.0
        %2099 = vmatpush1.xpose.msra.mxu0 0.0
        %2100 = vmatprep.subr.mxu0 0.0
        %2101 = vmatpush1.xpose.msra.mxu0 0.0
        %2102 = vmatprep.subr.mxu0 0.0
        %2103 = vmatpush1.xpose.msra.mxu0 0.0
        %2104 = vmatprep.subr.mxu0 0.0
        %2105 = vmatpush1.xpose.msra.mxu0 0.0
        %2106 = vmatprep.subr.mxu0 0.0
        %2107 = vmatpush1.xpose.msra.mxu0 0.0
        %2108 = vmatprep.subr.mxu0 0.0
        %2109 = vmatpush1.xpose.msra.mxu0 0.0
        %2110 = vmatprep.subr.mxu0 0.0
        %2111 = vmatpush1.xpose.msra.mxu0 0.0
        %2112 = vmatprep.subr.mxu0 0.0
        %2113 = vmatpush1.xpose.msra.mxu0 0.0
        %2114 = vmatprep.subr.mxu0 0.0
        %2115 = vmatpush1.xpose.msra.mxu0 0.0
        %2116 = vmatprep.subr.mxu0 0.0
        %2117 = vmatpush1.xpose.msra.mxu0 0.0
        %2118 = vmatprep.subr.mxu0 0.0
        %2119 = vmatpush1.xpose.msra.mxu0 0.0
        %2120 = vmatprep.subr.mxu0 0.0
        %2121 = vmatpush1.xpose.msra.mxu0 0.0
        %2122 = vmatprep.subr.mxu0 0.0
        %2123 = vmatpush1.xpose.msra.mxu0 0.0
        %2124 = vmatprep.subr.mxu0 0.0
        %2125 = vmatpush1.xpose.msra.mxu0 0.0
        %2126 = vmatprep.subr.mxu0 0.0
        %2127 = vmatpush1.xpose.msra.mxu0 0.0
        %2128 = vmatprep.subr.mxu0 0.0
        %2129 = vmatpush1.xpose.msra.mxu0 0.0
        %2130 = vmatprep.subr.mxu0 0.0
        %2131 = vmatpush1.xpose.msra.mxu0 0.0
        %2132 = vmatprep.mubr.f32.mxu0 0.0
        %2133 = vmatmul.mubr.f32.gmra.mrb[0].mxu0 %v2064
        %v2134 = vpop.f32.mrb[0].mxu0
        %v2135 = vadd.f32 0.0, %v2134
        %v2136 = vpop.f32.mrb[0].mxu0
        %2137 = vdwg.mxu0
        %v2138 = vmul.f32 %v2135, 0.35355338
        %v2139 = vsel %vm768, %v2138, -inf
        %2140 = vmax.xlane.f32.xlu0 %v2139
        %v2141 = vpop.xlane.xlu0 %2140
        %v2142 = vsub.f32 %v2138, %v2141
        %v2143 = vmul.f32 %v2142, 1.442695
        %v2144 = vpow.pop %v2143
        %v2145 = vsel %vm768, %v2144, 0.0
        %2146 = vadd.xlane.f32.xlu0 %v2145
        %v2147 = vpop.xlane.xlu0 %2146
        %v2148 = vrcp.pop %v2147
        %v2149 = vmul.f32 %v2144, %v2148
        %2150 = vrot.lane.b32.xlu0 %v2053, 64
        %v2151 = vpop.permute.xlu0 %2150
        %v2154 = vsel %vm768, %v2149, 0
        %2156 = vmatprep.subr.mxu0 0.0
        %2157 = vmatpush1.msra.mxu0 %v2151
        %2158 = vmatprep.subr.mxu0 0.0
        %2159 = vmatpush1.msra.mxu0 0.0
        %2160 = vmatprep.subr.mxu0 0.0
        %2161 = vmatpush1.msra.mxu0 0.0
        %2162 = vmatprep.subr.mxu0 0.0
        %2163 = vmatpush1.msra.mxu0 0.0
        %2164 = vmatprep.subr.mxu0 0.0
        %2165 = vmatpush1.msra.mxu0 0.0
        %2166 = vmatprep.subr.mxu0 0.0
        %2167 = vmatpush1.msra.mxu0 0.0
        %2168 = vmatprep.subr.mxu0 0.0
        %2169 = vmatpush1.msra.mxu0 0.0
        %2170 = vmatprep.subr.mxu0 0.0
        %2171 = vmatpush1.msra.mxu0 0.0
        %2172 = vmatprep.subr.mxu0 0.0
        %2173 = vmatpush1.msra.mxu0 0.0
        %2174 = vmatprep.subr.mxu0 0.0
        %2175 = vmatpush1.msra.mxu0 0.0
        %2176 = vmatprep.subr.mxu0 0.0
        %2177 = vmatpush1.msra.mxu0 0.0
        %2178 = vmatprep.subr.mxu0 0.0
        %2179 = vmatpush1.msra.mxu0 0.0
        %2180 = vmatprep.subr.mxu0 0.0
        %2181 = vmatpush1.msra.mxu0 0.0
        %2182 = vmatprep.subr.mxu0 0.0
        %2183 = vmatpush1.msra.mxu0 0.0
        %2184 = vmatprep.subr.mxu0 0.0
        %2185 = vmatpush1.msra.mxu0 0.0
        %2186 = vmatprep.subr.mxu0 0.0
        %2187 = vmatpush1.msra.mxu0 0.0
        %2188 = vmatprep.subr.mxu0 0.0
        %2189 = vmatpush1.msra.mxu0 0.0
        %2190 = vmatprep.subr.mxu0 0.0
        %2191 = vmatpush1.msra.mxu0 0.0
        %2192 = vmatprep.subr.mxu0 0.0
        %2193 = vmatpush1.msra.mxu0 0.0
        %2194 = vmatprep.subr.mxu0 0.0
        %2195 = vmatpush1.msra.mxu0 0.0
        %2196 = vmatprep.subr.mxu0 0.0
        %2197 = vmatpush1.msra.mxu0 0.0
        %2198 = vmatprep.subr.mxu0 0.0
        %2199 = vmatpush1.msra.mxu0 0.0
        %2200 = vmatprep.subr.mxu0 0.0
        %2201 = vmatpush1.msra.mxu0 0.0
        %2202 = vmatprep.subr.mxu0 0.0
        %2203 = vmatpush1.msra.mxu0 0.0
        %2204 = vmatprep.subr.mxu0 0.0
        %2205 = vmatpush1.msra.mxu0 0.0
        %2206 = vmatprep.subr.mxu0 0.0
        %2207 = vmatpush1.msra.mxu0 0.0
        %2208 = vmatprep.subr.mxu0 0.0
        %2209 = vmatpush1.msra.mxu0 0.0
        %2210 = vmatprep.subr.mxu0 0.0
        %2211 = vmatpush1.msra.mxu0 0.0
        %2212 = vmatprep.subr.mxu0 0.0
        %2213 = vmatpush1.msra.mxu0 0.0
        %2214 = vmatprep.subr.mxu0 0.0
        %2215 = vmatpush1.msra.mxu0 0.0
        %2216 = vmatprep.subr.mxu0 0.0
        %2217 = vmatpush1.msra.mxu0 0.0
        %2218 = vmatprep.subr.mxu0 0.0
        %2219 = vmatpush1.msra.mxu0 0.0
        %2220 = vmatprep.mubr.f32.mxu0 0.0
        %2221 = vmatmul.mubr.f32.gmra.mrb[0].mxu0 %v2154
        %v2222 = vpop.f32.mrb[0].mxu0
        %v2223 = vadd.f32 0.0, %v2222
        %v2224 = vpop.f32.mrb[0].mxu0
        %2225 = vdwg.mxu0
        %2226 = vrot.lane.b32.xlu0 %v2053, 120
        %v2227 = vpop.permute.xlu0 %2226
        %2228 = vrot.lane.b32.xlu0 %v2053, 88
        %v2229 = vpop.permute.xlu0 %2228
        %v2230 = vsel %vm768, %v2227, 0
        %v2232 = vsel %vm768, %v2229, 0
        %2234 = vmatprep.subr.mxu0 0.0
        %2235 = vmatpush1.xpose.msra.mxu0 %v2232
        %2236 = vmatprep.subr.mxu0 0.0
        %2237 = vmatpush1.xpose.msra.mxu0 0.0
        %2238 = vmatprep.subr.mxu0 0.0
        %2239 = vmatpush1.xpose.msra.mxu0 0.0
        %2240 = vmatprep.subr.mxu0 0.0
        %2241 = vmatpush1.xpose.msra.mxu0 0.0
        %2242 = vmatprep.subr.mxu0 0.0
        %2243 = vmatpush1.xpose.msra.mxu0 0.0
        %2244 = vmatprep.subr.mxu0 0.0
        %2245 = vmatpush1.xpose.msra.mxu0 0.0
        %2246 = vmatprep.subr.mxu0 0.0
        %2247 = vmatpush1.xpose.msra.mxu0 0.0
        %2248 = vmatprep.subr.mxu0 0.0
        %2249 = vmatpush1.xpose.msra.mxu0 0.0
        %2250 = vmatprep.subr.mxu0 0.0
        %2251 = vmatpush1.xpose.msra.mxu0 0.0
        %2252 = vmatprep.subr.mxu0 0.0
        %2253 = vmatpush1.xpose.msra.mxu0 0.0
        %2254 = vmatprep.subr.mxu0 0.0
        %2255 = vmatpush1.xpose.msra.mxu0 0.0
        %2256 = vmatprep.subr.mxu0 0.0
        %2257 = vmatpush1.xpose.msra.mxu0 0.0
        %2258 = vmatprep.subr.mxu0 0.0
        %2259 = vmatpush1.xpose.msra.mxu0 0.0
        %2260 = vmatprep.subr.mxu0 0.0
        %2261 = vmatpush1.xpose.msra.mxu0 0.0
        %2262 = vmatprep.subr.mxu0 0.0
        %2263 = vmatpush1.xpose.msra.mxu0 0.0
        %2264 = vmatprep.subr.mxu0 0.0
        %2265 = vmatpush1.xpose.msra.mxu0 0.0
        %2266 = vmatprep.subr.mxu0 0.0
        %2267 = vmatpush1.xpose.msra.mxu0 0.0
        %2268 = vmatprep.subr.mxu0 0.0
        %2269 = vmatpush1.xpose.msra.mxu0 0.0
        %2270 = vmatprep.subr.mxu0 0.0
        %2271 = vmatpush1.xpose.msra.mxu0 0.0
        %2272 = vmatprep.subr.mxu0 0.0
        %2273 = vmatpush1.xpose.msra.mxu0 0.0
        %2274 = vmatprep.subr.mxu0 0.0
        %2275 = vmatpush1.xpose.msra.mxu0 0.0
        %2276 = vmatprep.subr.mxu0 0.0
        %2277 = vmatpush1.xpose.msra.mxu0 0.0
        %2278 = vmatprep.subr.mxu0 0.0
        %2279 = vmatpush1.xpose.msra.mxu0 0.0
        %2280 = vmatprep.subr.mxu0 0.0
        %2281 = vmatpush1.xpose.msra.mxu0 0.0
        %2282 = vmatprep.subr.mxu0 0.0
        %2283 = vmatpush1.xpose.msra.mxu0 0.0
        %2284 = vmatprep.subr.mxu0 0.0
        %2285 = vmatpush1.xpose.msra.mxu0 0.0
        %2286 = vmatprep.subr.mxu0 0.0
        %2287 = vmatpush1.xpose.msra.mxu0 0.0
        %2288 = vmatprep.subr.mxu0 0.0
        %2289 = vmatpush1.xpose.msra.mxu0 0.0
        %2290 = vmatprep.subr.mxu0 0.0
        %2291 = vmatpush1.xpose.msra.mxu0 0.0
        %2292 = vmatprep.subr.mxu0 0.0
        %2293 = vmatpush1.xpose.msra.mxu0 0.0
        %2294 = vmatprep.subr.mxu0 0.0
        %2295 = vmatpush1.xpose.msra.mxu0 0.0
        %2296 = vmatprep.subr.mxu0 0.0
        %2297 = vmatpush1.xpose.msra.mxu0 0.0
        %2298 = vmatprep.mubr.f32.mxu0 0.0
        %2299 = vmatmul.mubr.f32.gmra.mrb[0].mxu0 %v2230
        %v2300 = vpop.f32.mrb[0].mxu0
        %v2301 = vadd.f32 0.0, %v2300
        %v2302 = vpop.f32.mrb[0].mxu0
        %2303 = vdwg.mxu0
        %v2304 = vmul.f32 %v2301, 0.35355338
        %v2305 = vsel %vm768, %v2304, -inf
        %2306 = vmax.xlane.f32.xlu0 %v2305
        %v2307 = vpop.xlane.xlu0 %2306
        %v2308 = vsub.f32 %v2304, %v2307
        %v2309 = vmul.f32 %v2308, 1.442695
        %v2310 = vpow.pop %v2309
        %v2311 = vsel %vm768, %v2310, 0.0
        %2312 = vadd.xlane.f32.xlu0 %v2311
        %v2313 = vpop.xlane.xlu0 %2312
        %v2314 = vrcp.pop %v2313
        %v2315 = vmul.f32 %v2310, %v2314
        %2316 = vrot.lane.b32.xlu0 %v2053, 56
        %v2317 = vpop.permute.xlu0 %2316
        %v2320 = vsel %vm768, %v2315, 0
        %2322 = vmatprep.subr.mxu0 0.0
        %2323 = vmatpush1.msra.mxu0 %v2317
        %2324 = vmatprep.subr.mxu0 0.0
        %2325 = vmatpush1.msra.mxu0 0.0
        %2326 = vmatprep.subr.mxu0 0.0
        %2327 = vmatpush1.msra.mxu0 0.0
        %2328 = vmatprep.subr.mxu0 0.0
        %2329 = vmatpush1.msra.mxu0 0.0
        %2330 = vmatprep.subr.mxu0 0.0
        %2331 = vmatpush1.msra.mxu0 0.0
        %2332 = vmatprep.subr.mxu0 0.0
        %2333 = vmatpush1.msra.mxu0 0.0
        %2334 = vmatprep.subr.mxu0 0.0
        %2335 = vmatpush1.msra.mxu0 0.0
        %2336 = vmatprep.subr.mxu0 0.0
        %2337 = vmatpush1.msra.mxu0 0.0
        %2338 = vmatprep.subr.mxu0 0.0
        %2339 = vmatpush1.msra.mxu0 0.0
        %2340 = vmatprep.subr.mxu0 0.0
        %2341 = vmatpush1.msra.mxu0 0.0
        %2342 = vmatprep.subr.mxu0 0.0
        %2343 = vmatpush1.msra.mxu0 0.0
        %2344 = vmatprep.subr.mxu0 0.0
        %2345 = vmatpush1.msra.mxu0 0.0
        %2346 = vmatprep.subr.mxu0 0.0
        %2347 = vmatpush1.msra.mxu0 0.0
        %2348 = vmatprep.subr.mxu0 0.0
        %2349 = vmatpush1.msra.mxu0 0.0
        %2350 = vmatprep.subr.mxu0 0.0
        %2351 = vmatpush1.msra.mxu0 0.0
        %2352 = vmatprep.subr.mxu0 0.0
        %2353 = vmatpush1.msra.mxu0 0.0
        %2354 = vmatprep.subr.mxu0 0.0
        %2355 = vmatpush1.msra.mxu0 0.0
        %2356 = vmatprep.subr.mxu0 0.0
        %2357 = vmatpush1.msra.mxu0 0.0
        %2358 = vmatprep.subr.mxu0 0.0
        %2359 = vmatpush1.msra.mxu0 0.0
        %2360 = vmatprep.subr.mxu0 0.0
        %2361 = vmatpush1.msra.mxu0 0.0
        %2362 = vmatprep.subr.mxu0 0.0
        %2363 = vmatpush1.msra.mxu0 0.0
        %2364 = vmatprep.subr.mxu0 0.0
        %2365 = vmatpush1.msra.mxu0 0.0
        %2366 = vmatprep.subr.mxu0 0.0
        %2367 = vmatpush1.msra.mxu0 0.0
        %2368 = vmatprep.subr.mxu0 0.0
        %2369 = vmatpush1.msra.mxu0 0.0
        %2370 = vmatprep.subr.mxu0 0.0
        %2371 = vmatpush1.msra.mxu0 0.0
        %2372 = vmatprep.subr.mxu0 0.0
        %2373 = vmatpush1.msra.mxu0 0.0
        %2374 = vmatprep.subr.mxu0 0.0
        %2375 = vmatpush1.msra.mxu0 0.0
        %2376 = vmatprep.subr.mxu0 0.0
        %2377 = vmatpush1.msra.mxu0 0.0
        %2378 = vmatprep.subr.mxu0 0.0
        %2379 = vmatpush1.msra.mxu0 0.0
        %2380 = vmatprep.subr.mxu0 0.0
        %2381 = vmatpush1.msra.mxu0 0.0
        %2382 = vmatprep.subr.mxu0 0.0
        %2383 = vmatpush1.msra.mxu0 0.0
        %2384 = vmatprep.subr.mxu0 0.0
        %2385 = vmatpush1.msra.mxu0 0.0
        %2386 = vmatprep.mubr.f32.mxu0 0.0
        %2387 = vmatmul.mubr.f32.gmra.mrb[0].mxu0 %v2320
        %v2388 = vpop.f32.mrb[0].mxu0
        %v2389 = vadd.f32 0.0, %v2388
        %v2390 = vpop.f32.mrb[0].mxu0
        %2391 = vdwg.mxu0
        %v2393 = vsel %vm768, %v2389, 0
        %2395 = vmatprep.subr.mxu0 0.0
        %2396 = vmatpush1.msra.mxu0 %v2058
        %2397 = vmatprep.subr.mxu0 0.0
        %2398 = vmatpush1.msra.mxu0 0.0
        %2399 = vmatprep.subr.mxu0 0.0
        %2400 = vmatpush1.msra.mxu0 0.0
        %2401 = vmatprep.subr.mxu0 0.0
        %2402 = vmatpush1.msra.mxu0 0.0
        %2403 = vmatprep.subr.mxu0 0.0
        %2404 = vmatpush1.msra.mxu0 0.0
        %2405 = vmatprep.subr.mxu0 0.0
        %2406 = vmatpush1.msra.mxu0 0.0
        %2407 = vmatprep.subr.mxu0 0.0
        %2408 = vmatpush1.msra.mxu0 0.0
        %2409 = vmatprep.subr.mxu0 0.0
        %2410 = vmatpush1.msra.mxu0 0.0
        %2411 = vmatprep.subr.mxu0 0.0
        %2412 = vmatpush1.msra.mxu0 0.0
        %2413 = vmatprep.subr.mxu0 0.0
        %2414 = vmatpush1.msra.mxu0 0.0
        %2415 = vmatprep.subr.mxu0 0.0
        %2416 = vmatpush1.msra.mxu0 0.0
        %2417 = vmatprep.subr.mxu0 0.0
        %2418 = vmatpush1.msra.mxu0 0.0
        %2419 = vmatprep.subr.mxu0 0.0
        %2420 = vmatpush1.msra.mxu0 0.0
        %2421 = vmatprep.subr.mxu0 0.0
        %2422 = vmatpush1.msra.mxu0 0.0
        %2423 = vmatprep.subr.mxu0 0.0
        %2424 = vmatpush1.msra.mxu0 0.0
        %2425 = vmatprep.subr.mxu0 0.0
        %2426 = vmatpush1.msra.mxu0 0.0
        %2427 = vmatprep.subr.mxu0 0.0
        %2428 = vmatpush1.msra.mxu0 0.0
        %2429 = vmatprep.subr.mxu0 0.0
        %2430 = vmatpush1.msra.mxu0 0.0
        %2431 = vmatprep.subr.mxu0 0.0
        %2432 = vmatpush1.msra.mxu0 0.0
        %2433 = vmatprep.subr.mxu0 0.0
        %2434 = vmatpush1.msra.mxu0 0.0
        %2435 = vmatprep.subr.mxu0 0.0
        %2436 = vmatpush1.msra.mxu0 0.0
        %2437 = vmatprep.subr.mxu0 0.0
        %2438 = vmatpush1.msra.mxu0 0.0
        %2439 = vmatprep.subr.mxu0 0.0
        %2440 = vmatpush1.msra.mxu0 0.0
        %2441 = vmatprep.subr.mxu0 0.0
        %2442 = vmatpush1.msra.mxu0 0.0
        %2443 = vmatprep.subr.mxu0 0.0
        %2444 = vmatpush1.msra.mxu0 0.0
        %2445 = vmatprep.subr.mxu0 0.0
        %2446 = vmatpush1.msra.mxu0 0.0
        %2447 = vmatprep.subr.mxu0 0.0
        %2448 = vmatpush1.msra.mxu0 0.0
        %2449 = vmatprep.subr.mxu0 0.0
        %2450 = vmatpush1.msra.mxu0 0.0
        %2451 = vmatprep.subr.mxu0 0.0
        %2452 = vmatpush1.msra.mxu0 0.0
        %2453 = vmatprep.subr.mxu0 0.0
        %2454 = vmatpush1.msra.mxu0 0.0
        %2455 = vmatprep.subr.mxu0 0.0
        %2456 = vmatpush1.msra.mxu0 0.0
        %2457 = vmatprep.subr.mxu0 0.0
        %2458 = vmatpush1.msra.mxu0 0.0
        %2459 = vmatprep.mubr.f32.mxu0 0.0
        %2460 = vmatmul.mubr.f32.gmra.mrb[0].mxu0 %v2393
        %v2461 = vpop.f32.mrb[0].mxu0
        %v2462 = vadd.f32 0.0, %v2461
        %v2463 = vpop.f32.mrb[0].mxu0
        %2464 = vdwg.mxu0
        %v2466 = vsel %vm768, %v2223, 0
        %2468 = vmatprep.subr.mxu0 0.0
        %2469 = vmatpush1.msra.mxu0 %v2057
        %2470 = vmatprep.subr.mxu0 0.0
        %2471 = vmatpush1.msra.mxu0 0.0
        %2472 = vmatprep.subr.mxu0 0.0
        %2473 = vmatpush1.msra.mxu0 0.0
        %2474 = vmatprep.subr.mxu0 0.0
        %2475 = vmatpush1.msra.mxu0 0.0
        %2476 = vmatprep.subr.mxu0 0.0
        %2477 = vmatpush1.msra.mxu0 0.0
        %2478 = vmatprep.subr.mxu0 0.0
        %2479 = vmatpush1.msra.mxu0 0.0
        %2480 = vmatprep.subr.mxu0 0.0
        %2481 = vmatpush1.msra.mxu0 0.0
        %2482 = vmatprep.subr.mxu0 0.0
        %2483 = vmatpush1.msra.mxu0 0.0
        %2484 = vmatprep.subr.mxu0 0.0
        %2485 = vmatpush1.msra.mxu0 0.0
        %2486 = vmatprep.subr.mxu0 0.0
        %2487 = vmatpush1.msra.mxu0 0.0
        %2488 = vmatprep.subr.mxu0 0.0
        %2489 = vmatpush1.msra.mxu0 0.0
        %2490 = vmatprep.subr.mxu0 0.0
        %2491 = vmatpush1.msra.mxu0 0.0
        %2492 = vmatprep.subr.mxu0 0.0
        %2493 = vmatpush1.msra.mxu0 0.0
        %2494 = vmatprep.subr.mxu0 0.0
        %2495 = vmatpush1.msra.mxu0 0.0
        %2496 = vmatprep.subr.mxu0 0.0
        %2497 = vmatpush1.msra.mxu0 0.0
        %2498 = vmatprep.subr.mxu0 0.0
        %2499 = vmatpush1.msra.mxu0 0.0
        %2500 = vmatprep.subr.mxu0 0.0
        %2501 = vmatpush1.msra.mxu0 0.0
        %2502 = vmatprep.subr.mxu0 0.0
        %2503 = vmatpush1.msra.mxu0 0.0
        %2504 = vmatprep.subr.mxu0 0.0
        %2505 = vmatpush1.msra.mxu0 0.0
        %2506 = vmatprep.subr.mxu0 0.0
        %2507 = vmatpush1.msra.mxu0 0.0
        %2508 = vmatprep.subr.mxu0 0.0
        %2509 = vmatpush1.msra.mxu0 0.0
        %2510 = vmatprep.subr.mxu0 0.0
        %2511 = vmatpush1.msra.mxu0 0.0
        %2512 = vmatprep.subr.mxu0 0.0
        %2513 = vmatpush1.msra.mxu0 0.0
        %2514 = vmatprep.subr.mxu0 0.0
        %2515 = vmatpush1.msra.mxu0 0.0
        %2516 = vmatprep.subr.mxu0 0.0
        %2517 = vmatpush1.msra.mxu0 0.0
        %2518 = vmatprep.subr.mxu0 0.0
        %2519 = vmatpush1.msra.mxu0 0.0
        %2520 = vmatprep.subr.mxu0 0.0
        %2521 = vmatpush1.msra.mxu0 0.0
        %2522 = vmatprep.subr.mxu0 0.0
        %2523 = vmatpush1.msra.mxu0 0.0
        %2524 = vmatprep.subr.mxu0 0.0
        %2525 = vmatpush1.msra.mxu0 0.0
        %2526 = vmatprep.subr.mxu0 0.0
        %2527 = vmatpush1.msra.mxu0 0.0
        %2528 = vmatprep.subr.mxu0 0.0
        %2529 = vmatpush1.msra.mxu0 0.0
        %2530 = vmatprep.subr.mxu0 0.0
        %2531 = vmatpush1.msra.mxu0 0.0
        %2532 = vmatprep.mubr.f32.mxu0 0.0
        %2533 = vmatmul.mubr.f32.gmra.mrb[0].mxu0 %v2466
        %v2534 = vpop.f32.mrb[0].mxu0
        %v2535 = vadd.f32 %v2462, %v2534
        %v2536 = vpop.f32.mrb[0].mxu0
        %2537 = vdwg.mxu0
        %2538 = vrot.lane.b32.xlu0 %v2053, 112
        %v2539 = vpop.permute.xlu0 %2538
        %2540 = vrot.lane.b32.xlu0 %v2053, 80
        %v2541 = vpop.permute.xlu0 %2540
        %v2542 = vsel %vm768, %v2539, 0
        %v2544 = vsel %vm768, %v2541, 0
        %2546 = vmatprep.subr.mxu0 0.0
        %2547 = vmatpush1.xpose.msra.mxu0 %v2544
        %2548 = vmatprep.subr.mxu0 0.0
        %2549 = vmatpush1.xpose.msra.mxu0 0.0
        %2550 = vmatprep.subr.mxu0 0.0
        %2551 = vmatpush1.xpose.msra.mxu0 0.0
        %2552 = vmatprep.subr.mxu0 0.0
        %2553 = vmatpush1.xpose.msra.mxu0 0.0
        %2554 = vmatprep.subr.mxu0 0.0
        %2555 = vmatpush1.xpose.msra.mxu0 0.0
        %2556 = vmatprep.subr.mxu0 0.0
        %2557 = vmatpush1.xpose.msra.mxu0 0.0
        %2558 = vmatprep.subr.mxu0 0.0
        %2559 = vmatpush1.xpose.msra.mxu0 0.0
        %2560 = vmatprep.subr.mxu0 0.0
        %2561 = vmatpush1.xpose.msra.mxu0 0.0
        %2562 = vmatprep.subr.mxu0 0.0
        %2563 = vmatpush1.xpose.msra.mxu0 0.0
        %2564 = vmatprep.subr.mxu0 0.0
        %2565 = vmatpush1.xpose.msra.mxu0 0.0
        %2566 = vmatprep.subr.mxu0 0.0
        %2567 = vmatpush1.xpose.msra.mxu0 0.0
        %2568 = vmatprep.subr.mxu0 0.0
        %2569 = vmatpush1.xpose.msra.mxu0 0.0
        %2570 = vmatprep.subr.mxu0 0.0
        %2571 = vmatpush1.xpose.msra.mxu0 0.0
        %2572 = vmatprep.subr.mxu0 0.0
        %2573 = vmatpush1.xpose.msra.mxu0 0.0
        %2574 = vmatprep.subr.mxu0 0.0
        %2575 = vmatpush1.xpose.msra.mxu0 0.0
        %2576 = vmatprep.subr.mxu0 0.0
        %2577 = vmatpush1.xpose.msra.mxu0 0.0
        %2578 = vmatprep.subr.mxu0 0.0
        %2579 = vmatpush1.xpose.msra.mxu0 0.0
        %2580 = vmatprep.subr.mxu0 0.0
        %2581 = vmatpush1.xpose.msra.mxu0 0.0
        %2582 = vmatprep.subr.mxu0 0.0
        %2583 = vmatpush1.xpose.msra.mxu0 0.0
        %2584 = vmatprep.subr.mxu0 0.0
        %2585 = vmatpush1.xpose.msra.mxu0 0.0
        %2586 = vmatprep.subr.mxu0 0.0
        %2587 = vmatpush1.xpose.msra.mxu0 0.0
        %2588 = vmatprep.subr.mxu0 0.0
        %2589 = vmatpush1.xpose.msra.mxu0 0.0
        %2590 = vmatprep.subr.mxu0 0.0
        %2591 = vmatpush1.xpose.msra.mxu0 0.0
        %2592 = vmatprep.subr.mxu0 0.0
        %2593 = vmatpush1.xpose.msra.mxu0 0.0
        %2594 = vmatprep.subr.mxu0 0.0
        %2595 = vmatpush1.xpose.msra.mxu0 0.0
        %2596 = vmatprep.subr.mxu0 0.0
        %2597 = vmatpush1.xpose.msra.mxu0 0.0
        %2598 = vmatprep.subr.mxu0 0.0
        %2599 = vmatpush1.xpose.msra.mxu0 0.0
        %2600 = vmatprep.subr.mxu0 0.0
        %2601 = vmatpush1.xpose.msra.mxu0 0.0
        %2602 = vmatprep.subr.mxu0 0.0
        %2603 = vmatpush1.xpose.msra.mxu0 0.0
        %2604 = vmatprep.subr.mxu0 0.0
        %2605 = vmatpush1.xpose.msra.mxu0 0.0
        %2606 = vmatprep.subr.mxu0 0.0
        %2607 = vmatpush1.xpose.msra.mxu0 0.0
        %2608 = vmatprep.subr.mxu0 0.0
        %2609 = vmatpush1.xpose.msra.mxu0 0.0
        %2610 = vmatprep.mubr.f32.mxu0 0.0
        %2611 = vmatmul.mubr.f32.gmra.mrb[0].mxu0 %v2542
        %v2612 = vpop.f32.mrb[0].mxu0
        %v2613 = vadd.f32 0.0, %v2612
        %v2614 = vpop.f32.mrb[0].mxu0
        %2615 = vdwg.mxu0
        %v2616 = vmul.f32 %v2613, 0.35355338
        %v2617 = vsel %vm768, %v2616, -inf
        %2618 = vmax.xlane.f32.xlu0 %v2617
        %v2619 = vpop.xlane.xlu0 %2618
        %v2620 = vsub.f32 %v2616, %v2619
        %v2621 = vmul.f32 %v2620, 1.442695
        %v2622 = vpow.pop %v2621
        %v2623 = vsel %vm768, %v2622, 0.0
        %2624 = vadd.xlane.f32.xlu0 %v2623
        %v2625 = vpop.xlane.xlu0 %2624
        %v2626 = vrcp.pop %v2625
        %v2627 = vmul.f32 %v2622, %v2626
        %2628 = vrot.lane.b32.xlu0 %v2053, 48
        %v2629 = vpop.permute.xlu0 %2628
        %v2632 = vsel %vm768, %v2627, 0
        %2634 = vmatprep.subr.mxu0 0.0
        %2635 = vmatpush1.msra.mxu0 %v2629
        %2636 = vmatprep.subr.mxu0 0.0
        %2637 = vmatpush1.msra.mxu0 0.0
        %2638 = vmatprep.subr.mxu0 0.0
        %2639 = vmatpush1.msra.mxu0 0.0
        %2640 = vmatprep.subr.mxu0 0.0
        %2641 = vmatpush1.msra.mxu0 0.0
        %2642 = vmatprep.subr.mxu0 0.0
        %2643 = vmatpush1.msra.mxu0 0.0
        %2644 = vmatprep.subr.mxu0 0.0
        %2645 = vmatpush1.msra.mxu0 0.0
        %2646 = vmatprep.subr.mxu0 0.0
        %2647 = vmatpush1.msra.mxu0 0.0
        %2648 = vmatprep.subr.mxu0 0.0
        %2649 = vmatpush1.msra.mxu0 0.0
        %2650 = vmatprep.subr.mxu0 0.0
        %2651 = vmatpush1.msra.mxu0 0.0
        %2652 = vmatprep.subr.mxu0 0.0
        %2653 = vmatpush1.msra.mxu0 0.0
        %2654 = vmatprep.subr.mxu0 0.0
        %2655 = vmatpush1.msra.mxu0 0.0
        %2656 = vmatprep.subr.mxu0 0.0
        %2657 = vmatpush1.msra.mxu0 0.0
        %2658 = vmatprep.subr.mxu0 0.0
        %2659 = vmatpush1.msra.mxu0 0.0
        %2660 = vmatprep.subr.mxu0 0.0
        %2661 = vmatpush1.msra.mxu0 0.0
        %2662 = vmatprep.subr.mxu0 0.0
        %2663 = vmatpush1.msra.mxu0 0.0
        %2664 = vmatprep.subr.mxu0 0.0
        %2665 = vmatpush1.msra.mxu0 0.0
        %2666 = vmatprep.subr.mxu0 0.0
        %2667 = vmatpush1.msra.mxu0 0.0
        %2668 = vmatprep.subr.mxu0 0.0
        %2669 = vmatpush1.msra.mxu0 0.0
        %2670 = vmatprep.subr.mxu0 0.0
        %2671 = vmatpush1.msra.mxu0 0.0
        %2672 = vmatprep.subr.mxu0 0.0
        %2673 = vmatpush1.msra.mxu0 0.0
        %2674 = vmatprep.subr.mxu0 0.0
        %2675 = vmatpush1.msra.mxu0 0.0
        %2676 = vmatprep.subr.mxu0 0.0
        %2677 = vmatpush1.msra.mxu0 0.0
        %2678 = vmatprep.subr.mxu0 0.0
        %2679 = vmatpush1.msra.mxu0 0.0
        %2680 = vmatprep.subr.mxu0 0.0
        %2681 = vmatpush1.msra.mxu0 0.0
        %2682 = vmatprep.subr.mxu0 0.0
        %2683 = vmatpush1.msra.mxu0 0.0
        %2684 = vmatprep.subr.mxu0 0.0
        %2685 = vmatpush1.msra.mxu0 0.0
        %2686 = vmatprep.subr.mxu0 0.0
        %2687 = vmatpush1.msra.mxu0 0.0
        %2688 = vmatprep.subr.mxu0 0.0
        %2689 = vmatpush1.msra.mxu0 0.0
        %2690 = vmatprep.subr.mxu0 0.0
        %2691 = vmatpush1.msra.mxu0 0.0
        %2692 = vmatprep.subr.mxu0 0.0
        %2693 = vmatpush1.msra.mxu0 0.0
        %2694 = vmatprep.subr.mxu0 0.0
        %2695 = vmatpush1.msra.mxu0 0.0
        %2696 = vmatprep.subr.mxu0 0.0
        %2697 = vmatpush1.msra.mxu0 0.0
        %2698 = vmatprep.mubr.f32.mxu0 0.0
        %2699 = vmatmul.mubr.f32.gmra.mrb[0].mxu0 %v2632
        %v2700 = vpop.f32.mrb[0].mxu0
        %v2701 = vadd.f32 0.0, %v2700
        %v2702 = vpop.f32.mrb[0].mxu0
        %2703 = vdwg.mxu0
        %v2705 = vsel %vm768, %v2701, 0
        %2707 = vmatprep.subr.mxu0 0.0
        %2708 = vmatpush1.msra.mxu0 %v2059
        %2709 = vmatprep.subr.mxu0 0.0
        %2710 = vmatpush1.msra.mxu0 0.0
        %2711 = vmatprep.subr.mxu0 0.0
        %2712 = vmatpush1.msra.mxu0 0.0
        %2713 = vmatprep.subr.mxu0 0.0
        %2714 = vmatpush1.msra.mxu0 0.0
        %2715 = vmatprep.subr.mxu0 0.0
        %2716 = vmatpush1.msra.mxu0 0.0
        %2717 = vmatprep.subr.mxu0 0.0
        %2718 = vmatpush1.msra.mxu0 0.0
        %2719 = vmatprep.subr.mxu0 0.0
        %2720 = vmatpush1.msra.mxu0 0.0
        %2721 = vmatprep.subr.mxu0 0.0
        %2722 = vmatpush1.msra.mxu0 0.0
        %2723 = vmatprep.subr.mxu0 0.0
        %2724 = vmatpush1.msra.mxu0 0.0
        %2725 = vmatprep.subr.mxu0 0.0
        %2726 = vmatpush1.msra.mxu0 0.0
        %2727 = vmatprep.subr.mxu0 0.0
        %2728 = vmatpush1.msra.mxu0 0.0
        %2729 = vmatprep.subr.mxu0 0.0
        %2730 = vmatpush1.msra.mxu0 0.0
        %2731 = vmatprep.subr.mxu0 0.0
        %2732 = vmatpush1.msra.mxu0 0.0
        %2733 = vmatprep.subr.mxu0 0.0
        %2734 = vmatpush1.msra.mxu0 0.0
        %2735 = vmatprep.subr.mxu0 0.0
        %2736 = vmatpush1.msra.mxu0 0.0
        %2737 = vmatprep.subr.mxu0 0.0
        %2738 = vmatpush1.msra.mxu0 0.0
        %2739 = vmatprep.subr.mxu0 0.0
        %2740 = vmatpush1.msra.mxu0 0.0
        %2741 = vmatprep.subr.mxu0 0.0
        %2742 = vmatpush1.msra.mxu0 0.0
        %2743 = vmatprep.subr.mxu0 0.0
        %2744 = vmatpush1.msra.mxu0 0.0
        %2745 = vmatprep.subr.mxu0 0.0
        %2746 = vmatpush1.msra.mxu0 0.0
        %2747 = vmatprep.subr.mxu0 0.0
        %2748 = vmatpush1.msra.mxu0 0.0
        %2749 = vmatprep.subr.mxu0 0.0
        %2750 = vmatpush1.msra.mxu0 0.0
        %2751 = vmatprep.subr.mxu0 0.0
        %2752 = vmatpush1.msra.mxu0 0.0
        %2753 = vmatprep.subr.mxu0 0.0
        %2754 = vmatpush1.msra.mxu0 0.0
        %2755 = vmatprep.subr.mxu0 0.0
        %2756 = vmatpush1.msra.mxu0 0.0
        %2757 = vmatprep.subr.mxu0 0.0
        %2758 = vmatpush1.msra.mxu0 0.0
        %2759 = vmatprep.subr.mxu0 0.0
        %2760 = vmatpush1.msra.mxu0 0.0
        %2761 = vmatprep.subr.mxu0 0.0
        %2762 = vmatpush1.msra.mxu0 0.0
        %2763 = vmatprep.subr.mxu0 0.0
        %2764 = vmatpush1.msra.mxu0 0.0
        %2765 = vmatprep.subr.mxu0 0.0
        %2766 = vmatpush1.msra.mxu0 0.0
        %2767 = vmatprep.subr.mxu0 0.0
        %2768 = vmatpush1.msra.mxu0 0.0
        %2769 = vmatprep.subr.mxu0 0.0
        %2770 = vmatpush1.msra.mxu0 0.0
        %2771 = vmatprep.mubr.f32.mxu0 0.0
        %2772 = vmatmul.mubr.f32.gmra.mrb[0].mxu0 %v2705
        %v2773 = vpop.f32.mrb[0].mxu0
        %v2774 = vadd.f32 0.0, %v2773
        %v2775 = vpop.f32.mrb[0].mxu0
        %2776 = vdwg.mxu0
        %v2777 = vadd.f32 %v2535, %v2774
        %2778 = vrot.lane.b32.xlu0 %v2053, 104
        %v2779 = vpop.permute.xlu0 %2778
        %2780 = vrot.lane.b32.xlu0 %v2053, 72
        %v2781 = vpop.permute.xlu0 %2780
        %v2782 = vsel %vm768, %v2779, 0
        %v2784 = vsel %vm768, %v2781, 0
        %2786 = vmatprep.subr.mxu0 0.0
        %2787 = vmatpush1.xpose.msra.mxu0 %v2784
        %2788 = vmatprep.subr.mxu0 0.0
        %2789 = vmatpush1.xpose.msra.mxu0 0.0
        %2790 = vmatprep.subr.mxu0 0.0
        %2791 = vmatpush1.xpose.msra.mxu0 0.0
        %2792 = vmatprep.subr.mxu0 0.0
        %2793 = vmatpush1.xpose.msra.mxu0 0.0
        %2794 = vmatprep.subr.mxu0 0.0
        %2795 = vmatpush1.xpose.msra.mxu0 0.0
        %2796 = vmatprep.subr.mxu0 0.0
        %2797 = vmatpush1.xpose.msra.mxu0 0.0
        %2798 = vmatprep.subr.mxu0 0.0
        %2799 = vmatpush1.xpose.msra.mxu0 0.0
        %2800 = vmatprep.subr.mxu0 0.0
        %2801 = vmatpush1.xpose.msra.mxu0 0.0
        %2802 = vmatprep.subr.mxu0 0.0
        %2803 = vmatpush1.xpose.msra.mxu0 0.0
        %2804 = vmatprep.subr.mxu0 0.0
        %2805 = vmatpush1.xpose.msra.mxu0 0.0
        %2806 = vmatprep.subr.mxu0 0.0
        %2807 = vmatpush1.xpose.msra.mxu0 0.0
        %2808 = vmatprep.subr.mxu0 0.0
        %2809 = vmatpush1.xpose.msra.mxu0 0.0
        %2810 = vmatprep.subr.mxu0 0.0
        %2811 = vmatpush1.xpose.msra.mxu0 0.0
        %2812 = vmatprep.subr.mxu0 0.0
        %2813 = vmatpush1.xpose.msra.mxu0 0.0
        %2814 = vmatprep.subr.mxu0 0.0
        %2815 = vmatpush1.xpose.msra.mxu0 0.0
        %2816 = vmatprep.subr.mxu0 0.0
        %2817 = vmatpush1.xpose.msra.mxu0 0.0
        %2818 = vmatprep.subr.mxu0 0.0
        %2819 = vmatpush1.xpose.msra.mxu0 0.0
        %2820 = vmatprep.subr.mxu0 0.0
        %2821 = vmatpush1.xpose.msra.mxu0 0.0
        %2822 = vmatprep.subr.mxu0 0.0
        %2823 = vmatpush1.xpose.msra.mxu0 0.0
        %2824 = vmatprep.subr.mxu0 0.0
        %2825 = vmatpush1.xpose.msra.mxu0 0.0
        %2826 = vmatprep.subr.mxu0 0.0
        %2827 = vmatpush1.xpose.msra.mxu0 0.0
        %2828 = vmatprep.subr.mxu0 0.0
        %2829 = vmatpush1.xpose.msra.mxu0 0.0
        %2830 = vmatprep.subr.mxu0 0.0
        %2831 = vmatpush1.xpose.msra.mxu0 0.0
        %2832 = vmatprep.subr.mxu0 0.0
        %2833 = vmatpush1.xpose.msra.mxu0 0.0
        %2834 = vmatprep.subr.mxu0 0.0
        %2835 = vmatpush1.xpose.msra.mxu0 0.0
        %2836 = vmatprep.subr.mxu0 0.0
        %2837 = vmatpush1.xpose.msra.mxu0 0.0
        %2838 = vmatprep.subr.mxu0 0.0
        %2839 = vmatpush1.xpose.msra.mxu0 0.0
        %2840 = vmatprep.subr.mxu0 0.0
        %2841 = vmatpush1.xpose.msra.mxu0 0.0
        %2842 = vmatprep.subr.mxu0 0.0
        %2843 = vmatpush1.xpose.msra.mxu0 0.0
        %2844 = vmatprep.subr.mxu0 0.0
        %2845 = vmatpush1.xpose.msra.mxu0 0.0
        %2846 = vmatprep.subr.mxu0 0.0
        %2847 = vmatpush1.xpose.msra.mxu0 0.0
        %2848 = vmatprep.subr.mxu0 0.0
        %2849 = vmatpush1.xpose.msra.mxu0 0.0
        %2850 = vmatprep.mubr.f32.mxu0 0.0
        %2851 = vmatmul.mubr.f32.gmra.mrb[0].mxu0 %v2782
        %v2852 = vpop.f32.mrb[0].mxu0
        %v2853 = vadd.f32 0.0, %v2852
        %v2854 = vpop.f32.mrb[0].mxu0
        %2855 = vdwg.mxu0
        %v2856 = vmul.f32 %v2853, 0.35355338
        %v2857 = vsel %vm768, %v2856, -inf
        %2858 = vmax.xlane.f32.xlu0 %v2857
        %v2859 = vpop.xlane.xlu0 %2858
        %v2860 = vsub.f32 %v2856, %v2859
        %v2861 = vmul.f32 %v2860, 1.442695
        %v2862 = vpow.pop %v2861
        %v2863 = vsel %vm768, %v2862, 0.0
        %2864 = vadd.xlane.f32.xlu0 %v2863
        %v2865 = vpop.xlane.xlu0 %2864
        %v2866 = vrcp.pop %v2865
        %v2867 = vmul.f32 %v2862, %v2866
        %2868 = vrot.lane.b32.xlu0 %v2053, 40
        %v2869 = vpop.permute.xlu0 %2868
        %v2872 = vsel %vm768, %v2867, 0
        %2874 = vmatprep.subr.mxu0 0.0
        %2875 = vmatpush1.msra.mxu0 %v2869
        %2876 = vmatprep.subr.mxu0 0.0
        %2877 = vmatpush1.msra.mxu0 0.0
        %2878 = vmatprep.subr.mxu0 0.0
        %2879 = vmatpush1.msra.mxu0 0.0
        %2880 = vmatprep.subr.mxu0 0.0
        %2881 = vmatpush1.msra.mxu0 0.0
        %2882 = vmatprep.subr.mxu0 0.0
        %2883 = vmatpush1.msra.mxu0 0.0
        %2884 = vmatprep.subr.mxu0 0.0
        %2885 = vmatpush1.msra.mxu0 0.0
        %2886 = vmatprep.subr.mxu0 0.0
        %2887 = vmatpush1.msra.mxu0 0.0
        %2888 = vmatprep.subr.mxu0 0.0
        %2889 = vmatpush1.msra.mxu0 0.0
        %2890 = vmatprep.subr.mxu0 0.0
        %2891 = vmatpush1.msra.mxu0 0.0
        %2892 = vmatprep.subr.mxu0 0.0
        %2893 = vmatpush1.msra.mxu0 0.0
        %2894 = vmatprep.subr.mxu0 0.0
        %2895 = vmatpush1.msra.mxu0 0.0
        %2896 = vmatprep.subr.mxu0 0.0
        %2897 = vmatpush1.msra.mxu0 0.0
        %2898 = vmatprep.subr.mxu0 0.0
        %2899 = vmatpush1.msra.mxu0 0.0
        %2900 = vmatprep.subr.mxu0 0.0
        %2901 = vmatpush1.msra.mxu0 0.0
        %2902 = vmatprep.subr.mxu0 0.0
        %2903 = vmatpush1.msra.mxu0 0.0
        %2904 = vmatprep.subr.mxu0 0.0
        %2905 = vmatpush1.msra.mxu0 0.0
        %2906 = vmatprep.subr.mxu0 0.0
        %2907 = vmatpush1.msra.mxu0 0.0
        %2908 = vmatprep.subr.mxu0 0.0
        %2909 = vmatpush1.msra.mxu0 0.0
        %2910 = vmatprep.subr.mxu0 0.0
        %2911 = vmatpush1.msra.mxu0 0.0
        %2912 = vmatprep.subr.mxu0 0.0
        %2913 = vmatpush1.msra.mxu0 0.0
        %2914 = vmatprep.subr.mxu0 0.0
        %2915 = vmatpush1.msra.mxu0 0.0
        %2916 = vmatprep.subr.mxu0 0.0
        %2917 = vmatpush1.msra.mxu0 0.0
        %2918 = vmatprep.subr.mxu0 0.0
        %2919 = vmatpush1.msra.mxu0 0.0
        %2920 = vmatprep.subr.mxu0 0.0
        %2921 = vmatpush1.msra.mxu0 0.0
        %2922 = vmatprep.subr.mxu0 0.0
        %2923 = vmatpush1.msra.mxu0 0.0
        %2924 = vmatprep.subr.mxu0 0.0
        %2925 = vmatpush1.msra.mxu0 0.0
        %2926 = vmatprep.subr.mxu0 0.0
        %2927 = vmatpush1.msra.mxu0 0.0
        %2928 = vmatprep.subr.mxu0 0.0
        %2929 = vmatpush1.msra.mxu0 0.0
        %2930 = vmatprep.subr.mxu0 0.0
        %2931 = vmatpush1.msra.mxu0 0.0
        %2932 = vmatprep.subr.mxu0 0.0
        %2933 = vmatpush1.msra.mxu0 0.0
        %2934 = vmatprep.subr.mxu0 0.0
        %2935 = vmatpush1.msra.mxu0 0.0
        %2936 = vmatprep.subr.mxu0 0.0
        %2937 = vmatpush1.msra.mxu0 0.0
        %2938 = vmatprep.mubr.f32.mxu0 0.0
        %2939 = vmatmul.mubr.f32.gmra.mrb[0].mxu0 %v2872
        %v2940 = vpop.f32.mrb[0].mxu0
        %v2941 = vadd.f32 0.0, %v2940
        %v2942 = vpop.f32.mrb[0].mxu0
        %2943 = vdwg.mxu0
        %v2945 = vsel %vm768, %v2941, 0
        %2947 = vmatprep.subr.mxu0 0.0
        %2948 = vmatpush1.msra.mxu0 %v2060
        %2949 = vmatprep.subr.mxu0 0.0
        %2950 = vmatpush1.msra.mxu0 0.0
        %2951 = vmatprep.subr.mxu0 0.0
        %2952 = vmatpush1.msra.mxu0 0.0
        %2953 = vmatprep.subr.mxu0 0.0
        %2954 = vmatpush1.msra.mxu0 0.0
        %2955 = vmatprep.subr.mxu0 0.0
        %2956 = vmatpush1.msra.mxu0 0.0
        %2957 = vmatprep.subr.mxu0 0.0
        %2958 = vmatpush1.msra.mxu0 0.0
        %2959 = vmatprep.subr.mxu0 0.0
        %2960 = vmatpush1.msra.mxu0 0.0
        %2961 = vmatprep.subr.mxu0 0.0
        %2962 = vmatpush1.msra.mxu0 0.0
        %2963 = vmatprep.subr.mxu0 0.0
        %2964 = vmatpush1.msra.mxu0 0.0
        %2965 = vmatprep.subr.mxu0 0.0
        %2966 = vmatpush1.msra.mxu0 0.0
        %2967 = vmatprep.subr.mxu0 0.0
        %2968 = vmatpush1.msra.mxu0 0.0
        %2969 = vmatprep.subr.mxu0 0.0
        %2970 = vmatpush1.msra.mxu0 0.0
        %2971 = vmatprep.subr.mxu0 0.0
        %2972 = vmatpush1.msra.mxu0 0.0
        %2973 = vmatprep.subr.mxu0 0.0
        %2974 = vmatpush1.msra.mxu0 0.0
        %2975 = vmatprep.subr.mxu0 0.0
        %2976 = vmatpush1.msra.mxu0 0.0
        %2977 = vmatprep.subr.mxu0 0.0
        %2978 = vmatpush1.msra.mxu0 0.0
        %2979 = vmatprep.subr.mxu0 0.0
        %2980 = vmatpush1.msra.mxu0 0.0
        %2981 = vmatprep.subr.mxu0 0.0
        %2982 = vmatpush1.msra.mxu0 0.0
        %2983 = vmatprep.subr.mxu0 0.0
        %2984 = vmatpush1.msra.mxu0 0.0
        %2985 = vmatprep.subr.mxu0 0.0
        %2986 = vmatpush1.msra.mxu0 0.0
        %2987 = vmatprep.subr.mxu0 0.0
        %2988 = vmatpush1.msra.mxu0 0.0
        %2989 = vmatprep.subr.mxu0 0.0
        %2990 = vmatpush1.msra.mxu0 0.0
        %2991 = vmatprep.subr.mxu0 0.0
        %2992 = vmatpush1.msra.mxu0 0.0
        %2993 = vmatprep.subr.mxu0 0.0
        %2994 = vmatpush1.msra.mxu0 0.0
        %2995 = vmatprep.subr.mxu0 0.0
        %2996 = vmatpush1.msra.mxu0 0.0
        %2997 = vmatprep.subr.mxu0 0.0
        %2998 = vmatpush1.msra.mxu0 0.0
        %2999 = vmatprep.subr.mxu0 0.0
        %3000 = vmatpush1.msra.mxu0 0.0
        %3001 = vmatprep.subr.mxu0 0.0
        %3002 = vmatpush1.msra.mxu0 0.0
        %3003 = vmatprep.subr.mxu0 0.0
        %3004 = vmatpush1.msra.mxu0 0.0
        %3005 = vmatprep.subr.mxu0 0.0
        %3006 = vmatpush1.msra.mxu0 0.0
        %3007 = vmatprep.subr.mxu0 0.0
        %3008 = vmatpush1.msra.mxu0 0.0
        %3009 = vmatprep.subr.mxu0 0.0
        %3010 = vmatpush1.msra.mxu0 0.0
        %3011 = vmatprep.mubr.f32.mxu0 0.0
        %3012 = vmatmul.mubr.f32.gmra.mrb[0].mxu0 %v2945
        %v3013 = vpop.f32.mrb[0].mxu0
        %v3014 = vadd.f32 0.0, %v3013
        %v3015 = vpop.f32.mrb[0].mxu0
        %3016 = vdwg.mxu0
        %v3017 = vadd.f32 %v2777, %v3014
        %s3018 = scalar_lea.vmem %s9, 1
        %v3019 = vld [vmem:[%s3018] sm:$0x1]
        %v3021 = vlaneseq
        %v3022 = vshrl.u32 %v3021, 7
        %v3023 = vsub.s32 0, %v3022
        %v3024 = vrot.slane %v3019, %v3023
        %v3026 = vadd.f32 %v3017, %v3024
        %v3027 = vadd.f32 %v1969, %v3026
        %s3028 = scalar_lea.vmem %s10, 1
        %v3029 = vld [vmem:[%s3028] sm:$0x1]
        %s3030 = scalar_lea.vmem %s11, 1
        %v3031 = vld [vmem:[%s3030] sm:$0x1]
        %v3032 = vsel %vm687, %v3027, 0.0
        %3033 = vadd.xlane.f32.xlu0 %v3032
        %v3034 = vpop.xlane.xlu0 %3033
        %v3035 = vmul.f32 %v3034, %v1737
        %v3036 = vsub.f32 %v3027, %v3035
        %v3037 = vmul.f32 %v3036, %v3036
        %v3038 = vsel %vm687, %v3037, 0.0
        %3039 = vadd.xlane.f32.xlu0 %v3038
        %v3040 = vpop.xlane.xlu0 %3039
        %v3041 = vmul.f32 %v3040, %v1737
        %v3042 = vadd.f32 %v3041, 1e-05
        %v3043 = vrsqrt.pop %v3042
        %v3044 = vmul.f32 %v3036, %v3043
        %v3046 = vlaneseq
        %v3047 = vshrl.u32 %v3046, 7
        %v3048 = vsub.s32 0, %v3047
        %v3049 = vrot.slane %v3029, %v3048
        %v3051 = vmul.f32 %v3044, %v3049
        %v3053 = vlaneseq
        %v3054 = vshrl.u32 %v3053, 7
        %v3055 = vsub.s32 0, %v3054
        %v3056 = vrot.slane %v3031, %v3055
        %v3058 = vadd.f32 %v3051, %v3056
        %s3059 = scalar_lea.vmem %s12, 32
        %v3060 = vld [vmem:[%s3059] sm:$0xff]
        %v3061 = vld [vmem:[%s3059 + $0x8] sm:$0xff]
        %v3062 = vld [vmem:[%s3059 + $0x10] sm:$0xff]
        %v3063 = vld [vmem:[%s3059 + $0x18] sm:$0xff]
        %s3064 = scalar_lea.vmem %s13, 1
        %v3065 = vld [vmem:[%s3064] sm:$0x1]
        %v3067 = vlaneseq
        %v3068 = vshrl.u32 %v3067, 7
        %v3069 = vsub.s32 0, %v3068
        %v3070 = vrot.slane %v3065, %v3069
        %v3073 = vsel %vm687, %v3058, 0
        %3075 = vmatprep.subr.mxu0 0.0
        %3076 = vmatpush1.msra.mxu0 %v3060
        %3077 = vmatprep.subr.mxu0 0.0
        %3078 = vmatpush1.msra.mxu0 %v3061
        %3079 = vmatprep.subr.mxu0 0.0
        %3080 = vmatpush1.msra.mxu0 %v3062
        %3081 = vmatprep.subr.mxu0 0.0
        %3082 = vmatpush1.msra.mxu0 %v3063
        %3083 = vmatprep.subr.mxu0 0.0
        %3084 = vmatpush1.msra.mxu0 0.0
        %3085 = vmatprep.subr.mxu0 0.0
        %3086 = vmatpush1.msra.mxu0 0.0
        %3087 = vmatprep.subr.mxu0 0.0
        %3088 = vmatpush1.msra.mxu0 0.0
        %3089 = vmatprep.subr.mxu0 0.0
        %3090 = vmatpush1.msra.mxu0 0.0
        %3091 = vmatprep.subr.mxu0 0.0
        %3092 = vmatpush1.msra.mxu0 0.0
        %3093 = vmatprep.subr.mxu0 0.0
        %3094 = vmatpush1.msra.mxu0 0.0
        %3095 = vmatprep.subr.mxu0 0.0
        %3096 = vmatpush1.msra.mxu0 0.0
        %3097 = vmatprep.subr.mxu0 0.0
        %3098 = vmatpush1.msra.mxu0 0.0
        %3099 = vmatprep.subr.mxu0 0.0
        %3100 = vmatpush1.msra.mxu0 0.0
        %3101 = vmatprep.subr.mxu0 0.0
        %3102 = vmatpush1.msra.mxu0 0.0
        %3103 = vmatprep.subr.mxu0 0.0
        %3104 = vmatpush1.msra.mxu0 0.0
        %3105 = vmatprep.subr.mxu0 0.0
        %3106 = vmatpush1.msra.mxu0 0.0
        %3107 = vmatprep.subr.mxu0 0.0
        %3108 = vmatpush1.msra.mxu0 0.0
        %3109 = vmatprep.subr.mxu0 0.0
        %3110 = vmatpush1.msra.mxu0 0.0
        %3111 = vmatprep.subr.mxu0 0.0
        %3112 = vmatpush1.msra.mxu0 0.0
        %3113 = vmatprep.subr.mxu0 0.0
        %3114 = vmatpush1.msra.mxu0 0.0
        %3115 = vmatprep.subr.mxu0 0.0
        %3116 = vmatpush1.msra.mxu0 0.0
        %3117 = vmatprep.subr.mxu0 0.0
        %3118 = vmatpush1.msra.mxu0 0.0
        %3119 = vmatprep.subr.mxu0 0.0
        %3120 = vmatpush1.msra.mxu0 0.0
        %3121 = vmatprep.subr.mxu0 0.0
        %3122 = vmatpush1.msra.mxu0 0.0
        %3123 = vmatprep.subr.mxu0 0.0
        %3124 = vmatpush1.msra.mxu0 0.0
        %3125 = vmatprep.subr.mxu0 0.0
        %3126 = vmatpush1.msra.mxu0 0.0
        %3127 = vmatprep.subr.mxu0 0.0
        %3128 = vmatpush1.msra.mxu0 0.0
        %3129 = vmatprep.subr.mxu0 0.0
        %3130 = vmatpush1.msra.mxu0 0.0
        %3131 = vmatprep.subr.mxu0 0.0
        %3132 = vmatpush1.msra.mxu0 0.0
        %3133 = vmatprep.subr.mxu0 0.0
        %3134 = vmatpush1.msra.mxu0 0.0
        %3135 = vmatprep.subr.mxu0 0.0
        %3136 = vmatpush1.msra.mxu0 0.0
        %3137 = vmatprep.subr.mxu0 0.0
        %3138 = vmatpush1.msra.mxu0 0.0
        %3139 = vmatprep.mubr.f32.mxu0 0.0
        %3140 = vmatmul.mubr.f32.gmra.mrb[0].mxu0 %v3073
        %v3141 = vpop.f32.mrb[0].mxu0
        %v3142 = vadd.f32 %v3070, %v3141
        %v3143 = vpop.f32.mrb[0].mxu0
        %3144 = vdwg.mxu0
        %v3145 = vmax.f32 %v3142, 0.0
        %s3146 = scalar_lea.vmem %s14, 128
        %v3147 = vld [vmem:[%s3146] sm:$0xff]
        %v3148 = vld [vmem:[%s3146 + $0x8] sm:$0xff]
        %v3149 = vld [vmem:[%s3146 + $0x10] sm:$0xff]
        %v3150 = vld [vmem:[%s3146 + $0x18] sm:$0xff]
        %v3151 = vld [vmem:[%s3146 + $0x20] sm:$0xff]
        %v3152 = vld [vmem:[%s3146 + $0x28] sm:$0xff]
        %v3153 = vld [vmem:[%s3146 + $0x30] sm:$0xff]
        %v3154 = vld [vmem:[%s3146 + $0x38] sm:$0xff]
        %v3155 = vld [vmem:[%s3146 + $0x40] sm:$0xff]
        %v3156 = vld [vmem:[%s3146 + $0x48] sm:$0xff]
        %v3157 = vld [vmem:[%s3146 + $0x50] sm:$0xff]
        %v3158 = vld [vmem:[%s3146 + $0x58] sm:$0xff]
        %v3159 = vld [vmem:[%s3146 + $0x60] sm:$0xff]
        %v3160 = vld [vmem:[%s3146 + $0x68] sm:$0xff]
        %v3161 = vld [vmem:[%s3146 + $0x70] sm:$0xff]
        %v3162 = vld [vmem:[%s3146 + $0x78] sm:$0xff]
        %s3163 = scalar_lea.vmem %s15, 1
        %v3164 = vld [vmem:[%s3163] sm:$0x1]
        %v3166 = vlaneseq
        %v3167 = vshrl.u32 %v3166, 7
        %v3168 = vsub.s32 0, %v3167
        %v3169 = vrot.slane %v3164, %v3168
        %3171 = vmatprep.subr.mxu0 0.0
        %3172 = vmatpush1.msra.mxu0 %v3147
        %3173 = vmatprep.subr.mxu0 0.0
        %3174 = vmatpush1.msra.mxu0 %v3148
        %3175 = vmatprep.subr.mxu0 0.0
        %3176 = vmatpush1.msra.mxu0 %v3149
        %3177 = vmatprep.subr.mxu0 0.0
        %3178 = vmatpush1.msra.mxu0 %v3150
        %3179 = vmatprep.subr.mxu0 0.0
        %3180 = vmatpush1.msra.mxu0 %v3151
        %3181 = vmatprep.subr.mxu0 0.0
        %3182 = vmatpush1.msra.mxu0 %v3152
        %3183 = vmatprep.subr.mxu0 0.0
        %3184 = vmatpush1.msra.mxu0 %v3153
        %3185 = vmatprep.subr.mxu0 0.0
        %3186 = vmatpush1.msra.mxu0 %v3154
        %3187 = vmatprep.subr.mxu0 0.0
        %3188 = vmatpush1.msra.mxu0 %v3155
        %3189 = vmatprep.subr.mxu0 0.0
        %3190 = vmatpush1.msra.mxu0 %v3156
        %3191 = vmatprep.subr.mxu0 0.0
        %3192 = vmatpush1.msra.mxu0 %v3157
        %3193 = vmatprep.subr.mxu0 0.0
        %3194 = vmatpush1.msra.mxu0 %v3158
        %3195 = vmatprep.subr.mxu0 0.0
        %3196 = vmatpush1.msra.mxu0 %v3159
        %3197 = vmatprep.subr.mxu0 0.0
        %3198 = vmatpush1.msra.mxu0 %v3160
        %3199 = vmatprep.subr.mxu0 0.0
        %3200 = vmatpush1.msra.mxu0 %v3161
        %3201 = vmatprep.subr.mxu0 0.0
        %3202 = vmatpush1.msra.mxu0 %v3162
        %3203 = vmatprep.subr.mxu0 0.0
        %3204 = vmatpush1.msra.mxu0 0.0
        %3205 = vmatprep.subr.mxu0 0.0
        %3206 = vmatpush1.msra.mxu0 0.0
        %3207 = vmatprep.subr.mxu0 0.0
        %3208 = vmatpush1.msra.mxu0 0.0
        %3209 = vmatprep.subr.mxu0 0.0
        %3210 = vmatpush1.msra.mxu0 0.0
        %3211 = vmatprep.subr.mxu0 0.0
        %3212 = vmatpush1.msra.mxu0 0.0
        %3213 = vmatprep.subr.mxu0 0.0
        %3214 = vmatpush1.msra.mxu0 0.0
        %3215 = vmatprep.subr.mxu0 0.0
        %3216 = vmatpush1.msra.mxu0 0.0
        %3217 = vmatprep.subr.mxu0 0.0
        %3218 = vmatpush1.msra.mxu0 0.0
        %3219 = vmatprep.subr.mxu0 0.0
        %3220 = vmatpush1.msra.mxu0 0.0
        %3221 = vmatprep.subr.mxu0 0.0
        %3222 = vmatpush1.msra.mxu0 0.0
        %3223 = vmatprep.subr.mxu0 0.0
        %3224 = vmatpush1.msra.mxu0 0.0
        %3225 = vmatprep.subr.mxu0 0.0
        %3226 = vmatpush1.msra.mxu0 0.0
        %3227 = vmatprep.subr.mxu0 0.0
        %3228 = vmatpush1.msra.mxu0 0.0
        %3229 = vmatprep.subr.mxu0 0.0
        %3230 = vmatpush1.msra.mxu0 0.0
        %3231 = vmatprep.subr.mxu0 0.0
        %3232 = vmatpush1.msra.mxu0 0.0
        %3233 = vmatprep.subr.mxu0 0.0
        %3234 = vmatpush1.msra.mxu0 0.0
        %3235 = vmatprep.mubr.f32.mxu0 0.0
        %3236 = vmatmul.mubr.f32.gmra.mrb[0].mxu0 %v3145
        %v3237 = vpop.f32.mrb[0].mxu0
        %v3238 = vadd.f32 %v3169, %v3237
        %v3239 = vpop.f32.mrb[0].mxu0
        %3240 = vdwg.mxu0
        %v3241 = vadd.f32 %v3058, %v3238
        %s3242 = scalar_lea.vmem %s16, 1
        %v3243 = vld [vmem:[%s3242] sm:$0x1]
        %s3244 = scalar_lea.vmem %s17, 1
        %v3245 = vld [vmem:[%s3244] sm:$0x1]
        %v3246 = vsel %vm687, %v3241, 0.0
        %3247 = vadd.xlane.f32.xlu0 %v3246
        %v3248 = vpop.xlane.xlu0 %3247
        %v3249 = vmul.f32 %v3248, %v1737
        %v3250 = vsub.f32 %v3241, %v3249
        %v3251 = vmul.f32 %v3250, %v3250
        %v3252 = vsel %vm687, %v3251, 0.0
        %3253 = vadd.xlane.f32.xlu0 %v3252
        %v3254 = vpop.xlane.xlu0 %3253
        %v3255 = vmul.f32 %v3254, %v1737
        %v3256 = vadd.f32 %v3255, 1e-05
        %v3257 = vrsqrt.pop %v3256
        %v3258 = vmul.f32 %v3250, %v3257
        %v3260 = vlaneseq
        %v3261 = vshrl.u32 %v3260, 7
        %v3262 = vsub.s32 0, %v3261
        %v3263 = vrot.slane %v3243, %v3262
        %v3265 = vmul.f32 %v3258, %v3263
        %v3267 = vlaneseq
        %v3268 = vshrl.u32 %v3267, 7
        %v3269 = vsub.s32 0, %v3268
        %v3270 = vrot.slane %v3245, %v3269
        %v3272 = vadd.f32 %v3265, %v3270
        %v3273 = vld [vmem:[%s4] sm:$0xff]
        %v3274 = vld [vmem:[%s4 + $0x8] sm:$0xff]
        %v3275 = vld [vmem:[%s4 + $0x10] sm:$0xff]
        %v3276 = vld [vmem:[%s4 + $0x18] sm:$0xff]
        %v3277 = vld [vmem:[%s5] sm:$0x1]
        %v3279 = vrot.slane %v3272, 7
        %v3280 = vsel %vm687, %v3279, 0
        %3282 = vmatprep.subr.mxu0 0.0
        %3283 = vmatpush1.msra.mxu0 %v3273
        %3284 = vmatprep.subr.mxu0 0.0
        %3285 = vmatpush1.msra.mxu0 %v3274
        %3286 = vmatprep.subr.mxu0 0.0
        %3287 = vmatpush1.msra.mxu0 %v3275
        %3288 = vmatprep.subr.mxu0 0.0
        %3289 = vmatpush1.msra.mxu0 %v3276
        %3290 = vmatprep.subr.mxu0 0.0
        %3291 = vmatpush1.msra.mxu0 0.0
        %3292 = vmatprep.subr.mxu0 0.0
        %3293 = vmatpush1.msra.mxu0 0.0
        %3294 = vmatprep.subr.mxu0 0.0
        %3295 = vmatpush1.msra.mxu0 0.0
        %3296 = vmatprep.subr.mxu0 0.0
        %3297 = vmatpush1.msra.mxu0 0.0
        %3298 = vmatprep.subr.mxu0 0.0
        %3299 = vmatpush1.msra.mxu0 0.0
        %3300 = vmatprep.subr.mxu0 0.0
        %3301 = vmatpush1.msra.mxu0 0.0
        %3302 = vmatprep.subr.mxu0 0.0
        %3303 = vmatpush1.msra.mxu0 0.0
        %3304 = vmatprep.subr.mxu0 0.0
        %3305 = vmatpush1.msra.mxu0 0.0
        %3306 = vmatprep.subr.mxu0 0.0
        %3307 = vmatpush1.msra.mxu0 0.0
        %3308 = vmatprep.subr.mxu0 0.0
        %3309 = vmatpush1.msra.mxu0 0.0
        %3310 = vmatprep.subr.mxu0 0.0
        %3311 = vmatpush1.msra.mxu0 0.0
        %3312 = vmatprep.subr.mxu0 0.0
        %3313 = vmatpush1.msra.mxu0 0.0
        %3314 = vmatprep.subr.mxu0 0.0
        %3315 = vmatpush1.msra.mxu0 0.0
        %3316 = vmatprep.subr.mxu0 0.0
        %3317 = vmatpush1.msra.mxu0 0.0
        %3318 = vmatprep.subr.mxu0 0.0
        %3319 = vmatpush1.msra.mxu0 0.0
        %3320 = vmatprep.subr.mxu0 0.0
        %3321 = vmatpush1.msra.mxu0 0.0
        %3322 = vmatprep.subr.mxu0 0.0
        %3323 = vmatpush1.msra.mxu0 0.0
        %3324 = vmatprep.subr.mxu0 0.0
        %3325 = vmatpush1.msra.mxu0 0.0
        %3326 = vmatprep.subr.mxu0 0.0
        %3327 = vmatpush1.msra.mxu0 0.0
        %3328 = vmatprep.subr.mxu0 0.0
        %3329 = vmatpush1.msra.mxu0 0.0
        %3330 = vmatprep.subr.mxu0 0.0
        %3331 = vmatpush1.msra.mxu0 0.0
        %3332 = vmatprep.subr.mxu0 0.0
        %3333 = vmatpush1.msra.mxu0 0.0
        %3334 = vmatprep.subr.mxu0 0.0
        %3335 = vmatpush1.msra.mxu0 0.0
        %3336 = vmatprep.subr.mxu0 0.0
        %3337 = vmatpush1.msra.mxu0 0.0
        %3338 = vmatprep.subr.mxu0 0.0
        %3339 = vmatpush1.msra.mxu0 0.0
        %3340 = vmatprep.subr.mxu0 0.0
        %3341 = vmatpush1.msra.mxu0 0.0
        %3342 = vmatprep.subr.mxu0 0.0
        %3343 = vmatpush1.msra.mxu0 0.0
        %3344 = vmatprep.subr.mxu0 0.0
        %3345 = vmatpush1.msra.mxu0 0.0
        %3346 = vmatprep.mubr.f32.mxu0 0.0
        %3347 = vmatmul.mubr.f32.gmra.mrb[0].mxu0 %v3280
        %v3348 = vpop.f32.mrb[0].mxu0
        %v3349 = vadd.f32 %v3277, %v3348
        %v3350 = vpop.f32.mrb[0].mxu0
        %3351 = vdwg.mxu0
        %vm3352 = vcmask 32768
        %3353 = vst.msk [vmem:[%s576] sm:$0x1] %vm3352, %v3349
        %s3354 = sand.u32 %s428, 1
        %s3355 = scalar_lea.sflag [#allocation3], %s3354
        %s3356 = sand.u32 %s428, 1
        %s3357 = scalar_lea.vmem [#allocation2], %s3356
        // Predicated region
        $region93: #{transformer_forward.1} parent=91 // pred_check
          %p3358 = pneg %p438
        $region94: #{transformer_forward.1} parent=91 // pred_check_branch
          %3360 = sbr.rel (%p3358) target = $region96
        $region95: #{transformer_forward.1} parent=91 // pred_region
          %s3362 = ssub.s32 16, 16
          %3363 = vsyncadd %s3355, %s3362
          %s3364 = smul.addr %s32, 16
          %s3365 = scalar_lea.hbm %s18, %s3364
          %s3367 = sshll.u32 %s3357, 4
          %s3368 = int_to_ptr.vmem [resolvable:$true] %s3367
          %3370 = dma.vmem_to_hbm [thread:$0]  %s3368, 16, %s3365, %s3355
        $region96: #{transformer_forward.1} parent=91 // pred_fallthru
          _
      $region92: #{transformer_forward.1} parent=5 // pred_fallthru
        _
      %p3371 = scmp.le.s32.totalorder 2, %s27
      // Predicated region
      $region97: #{transformer_forward.1} parent=5 // pred_check
        %p3372 = pneg %p3371
      $region98: #{transformer_forward.1} parent=5 // pred_check_branch
        %3374 = sbr.rel (%p3372) target = $region100
      $region99: #{transformer_forward.1} parent=5 // pred_region
        %s3375 = ssub.s32 %s27, 2
        // Predicated region
        $region101: #{transformer_forward.1} parent=99 // pred_check
          %p3376 = pneg %p444
        $region102: #{transformer_forward.1} parent=99 // pred_check_branch
          %3378 = sbr.rel (%p3376) target = $region104
        $region103: #{transformer_forward.1} parent=99 // pred_region
          %s3379 = sand.u32 %s429, 1
          %s3380 = scalar_lea.sflag [#allocation3], %s3379
          %s3381 = sand.u32 %s429, 1
          %s3382 = scalar_lea.vmem [#allocation2], %s3381
          %3383 = dma.done %s3380, 16
        $region104: #{transformer_forward.1} parent=99 // pred_fallthru
          _
      $region100: #{transformer_forward.1} parent=5 // pred_fallthru
        _
    $region6: #{transformer_forward.1} parent=1 // loop_footer
      %s31 = sadd.s32 1, %s27
    $region7: #{transformer_forward.1} parent=1 // loop_footer_branch
      %26 = sbr.rel target = $region3
    $region8: #{transformer_forward.1} parent=1 // loop_exit
      _
    %3384 = vsyncpa [#allocation3], 1
    %s3385 = scalar_lea.sflag [#allocation3], 1
    %3386 = vsyncpa %s3385, 1

</llo_original>
